<compile_context>
chip_gen: v5e
topology: v5e:2x2
jax: 0.10.0
libtpu: 0.0.40
codegen_flags: <defaults>
</compile_context>

<pallas_src>
import math
import jax
import jax.numpy as jnp
from jax.experimental import pallas as pl
from jax.experimental.pallas import tpu as pltpu

NUM_HEADS = 4
LN_EPS = 1e-5
MASK_VALUE = -1000000.0

MXU_DTYPE = jnp.bfloat16      # MXU operand dtype (accumulation stays f32)
WEIGHT_DTYPE = jnp.bfloat16   # storage dtype of stacked matmul weights
KV_DTYPE = jnp.bfloat16       # dtype of the per-layer key_values writeback


# ---------------------------------------------------------------------------
# Wrapper + fused kernel (kernel is a closure so B/T/Te/L/... are constants).
# ---------------------------------------------------------------------------
def positional_encoding_table(max_len, num_hiddens):
    pos = jnp.arange(max_len, dtype=jnp.float32)[:, None]
    div = jnp.power(10000.0,
                    jnp.arange(0, num_hiddens, 2, dtype=jnp.float32) / num_hiddens)
    X = pos / div
    P = jnp.zeros((max_len, num_hiddens), jnp.float32)
    P = P.at[:, 0::2].set(jnp.sin(X))
    P = P.at[:, 1::2].set(jnp.cos(X))
    return P


_BF16_KEYS = ['wq1', 'wk1', 'wv1', 'wo1', 'wq2', 'wk2', 'wv2', 'wo2',
              'wf1', 'wf2']
_F32_KEYS = ['bf1', 'bf2', 'g1', 'b1', 'g2', 'b2', 'g3', 'b3']


def transformer_decoder_forward(tokens, enc_outputs, enc_valid_lens, params):
    """Equivalent of TransformerDecoder.forward(X, state) with freshly
    init'd state (state[2][i] == None), training mode, dropout = 0."""
    B, T = tokens.shape
    H = params['embedding'].shape[1]
    V = params['dense_w'].shape[1]
    Te = enc_outputs.shape[1]
    L = len(params['blocks'])
    F = params['blocks'][0]['wf1'].shape[1]
    nh = NUM_HEADS
    hd = H // nh
    scale = 1.0 / math.sqrt(hd)

    Vpad = ((V + 127) // 128) * 128
    TILE_V = math.gcd(Vpad, 2048)     # lane-dense vocab tile (multiple of 128)
    NV = Vpad // TILE_V

    # ---------------- plain-JAX glue ----------------
    # TODO(synk): token-embedding gather + positional-encoding add stay in
    # plain JAX (a dynamic vocab gather has no clean single-kernel Pallas
    # equivalent worth writing at this size).
    x = params['embedding'][tokens].astype(jnp.float32) * math.sqrt(H)
    x = x + params['pos_P'][:T][None, :, :]
    x2d = x.reshape(B * T, H)
    enc2d = enc_outputs.reshape(B * Te, H).astype(MXU_DTYPE)

    # Additive masks, computed once (no per-head jnp.where / iota in kernel).
    q_idx = jnp.arange(T, dtype=jnp.int32)
    self_bias = jnp.where(q_idx[None, :] <= q_idx[:, None],
                          0.0, MASK_VALUE).astype(jnp.float32)          # (T,T)
    k_idx = jnp.arange(Te, dtype=jnp.float32)
    cross_bias = jnp.where(
        k_idx[None, :] < enc_valid_lens.astype(jnp.float32)[:, None],
        0.0, MASK_VALUE).astype(jnp.float32)                            # (B,Te)
    # pre-expand to one row per (batch, head) -> matches the z = b*nh + h fold
    cross_bias_z = jnp.repeat(cross_bias, nh, axis=0)[:, None, :]   # (B*nh,1,Te)

    # Stack per-layer weights along a leading layer axis.  Matmul operands in
    # bf16 (halves DMA); additive/LN params stay f32.
    def stack(key, dtype):
        return jnp.stack([blk[key] for blk in params['blocks']]).astype(dtype)

    w = {k: stack(k, WEIGHT_DTYPE) for k in _BF16_KEYS}
    p = {k: stack(k, jnp.float32) for k in _F32_KEYS}

    # Vocab projection, padded so every logits store is lane-dense.
    dense_w = jnp.pad(params['dense_w'],
                      ((0, 0), (0, Vpad - V))).astype(WEIGHT_DTYPE)
    dense_b = jnp.pad(params['dense_b'],
                      ((0, 0), (0, Vpad - V))).astype(jnp.float32)

    # ---------------- fused kernel ----------------
    def kernel(x_ref, enc_ref, sbias_ref, cbias_ref,
               wq1_ref, wk1_ref, wv1_ref, wo1_ref,
               wq2_ref, wk2_ref, wv2_ref, wo2_ref,
               wf1_ref, bf1_ref, wf2_ref, bf2_ref,
               g1_ref, b1_ref, g2_ref, b2_ref, g3_ref, b3_ref,
               dw_ref, db_ref,
               logits_ref, kv_ref, x_sc):
        i = pl.program_id(0)

        def mm(a, b):
            return jnp.dot(a.astype(MXU_DTYPE), b,
                           preferred_element_type=jnp.float32)

        def layer_norm(z, g, b):
            # one-pass E[x], E[x^2] variance (one cross-lane reduce fewer)
            mu = jnp.mean(z, axis=-1, keepdims=True)
            ex2 = jnp.mean(z * z, axis=-1, keepdims=True)
            var = jnp.maximum(ex2 - mu * mu, 0.0)
            return (z - mu) * jax.lax.rsqrt(var + LN_EPS) * g + b

        def split_heads(z2d, t):
            # (B*t, H) -> (B*nh, t, hd), z = b*nh + h
            z = z2d.reshape(B, t, nh, hd)
            return z.transpose(0, 2, 1, 3).reshape(B * nh, t, hd)

        def mha(q2d, kv2d, tq, tk, wq, wk, wv, wo, bias):
            q = split_heads(mm(q2d, wq), tq)
            k = split_heads(mm(kv2d, wk), tk)
            v = split_heads(mm(kv2d, wv), tk)
            s = jnp.einsum('zqe,zke->zqk',
                           q.astype(MXU_DTYPE), k.astype(MXU_DTYPE),
                           preferred_element_type=jnp.float32) * scale
            s = s + bias                                  # additive mask bias
            m = jnp.max(s, axis=-1, keepdims=True)
            pr = jnp.exp(s - m)
            denom = jnp.sum(pr, axis=-1, keepdims=True)
            pr = pr * pl.reciprocal(denom, approx=True)   # EUP reciprocal
            o = jnp.einsum('zqk,zke->zqe',
                           pr.astype(MXU_DTYPE), v.astype(MXU_DTYPE),
                           preferred_element_type=jnp.float32)
            o = o.reshape(B, nh, tq, hd).transpose(0, 2, 1, 3).reshape(B * tq, H)
            return mm(o, wo)

        # -- step 0: load the embedded input into the persistent activation --
        @pl.when(i == 0)
        def _():
            x_sc[...] = x_ref[...]

        # -- steps 0..L-1: one DecoderBlock per grid step (weights streamed) --
        @pl.when(i < L)
        def _():
            xa = x_sc[...]                                # (B*T, H) f32
            # state[2][l] = key_values (= block input X), training-mode call
            kv_ref[...] = xa.reshape(B, T, H).astype(kv_ref.dtype)

            # masked self-attention -> add & norm
            x2 = mha(xa, xa, T, T, wq1_ref[...], wk1_ref[...], wv1_ref[...],
                     wo1_ref[...], sbias_ref[...][None, :, :])
            y = layer_norm(xa + x2, g1_ref[...], b1_ref[...])

            # encoder-decoder cross attention -> add & norm
            y2 = mha(y, enc_ref[...], T, Te, wq2_ref[...], wk2_ref[...],
                     wv2_ref[...], wo2_ref[...], cbias_ref[...])
            z = layer_norm(y + y2, g2_ref[...], b2_ref[...])

            # position-wise FFN -> add & norm
            h1 = jnp.maximum(mm(z, wf1_ref[...]) + bf1_ref[...], 0.0)
            f = mm(h1, wf2_ref[...]) + bf2_ref[...]
            x_sc[...] = layer_norm(z + f, g3_ref[...], b3_ref[...])

        # -- steps L..L+NV-1: lane-dense vocab-projection tiles --
        @pl.when(i >= L)
        def _():
            logits_ref[...] = mm(x_sc[...], dw_ref[...]) + db_ref[...]

    # ---------------- specs ----------------
    def const_spec(shape):
        nd = len(shape)
        return pl.BlockSpec(shape, lambda i, nd=nd: (0,) * nd)

    def layer_spec(tail):
        nd = len(tail)
        return pl.BlockSpec(
            (None,) + tail,
            lambda i, nd=nd: (jnp.minimum(i, L - 1),) + (0,) * nd)

    vocab_idx = lambda i: (0, jnp.maximum(i - L, 0))

    in_specs = (
        [const_spec((B * T, H)),            # x (embedded, batch-folded)
         const_spec((B * Te, H)),           # enc outputs (bf16, batch-folded)
         const_spec((T, T)),                # causal additive bias
         const_spec((B * nh, 1, Te))]       # cross additive bias, per (b,h) row
        + [layer_spec((H, H))] * 8          # wq1..wo1, wq2..wo2
        + [layer_spec((H, F)), layer_spec((1, F)),
           layer_spec((F, H)), layer_spec((1, H))]          # wf1,bf1,wf2,bf2
        + [layer_spec((1, H))] * 6                           # g1,b1,g2,b2,g3,b3
        + [pl.BlockSpec((H, TILE_V), vocab_idx),             # dense_w tile
           pl.BlockSpec((1, TILE_V), vocab_idx)])            # dense_b tile

    out_shape = (jax.ShapeDtypeStruct((B * T, Vpad), jnp.float32),
                 jax.ShapeDtypeStruct((L, B, T, H), KV_DTYPE))
    out_specs = (
        pl.BlockSpec((B * T, TILE_V), vocab_idx),
        pl.BlockSpec((None, B, T, H),
                     lambda i: (jnp.minimum(i, L - 1), 0, 0, 0)))

    logits2d, kv_states = pl.pallas_call(
        kernel,
        grid=(L + NV,),
        in_specs=in_specs,
        out_specs=out_specs,
        out_shape=out_shape,
        scratch_shapes=[pltpu.VMEM((B * T, H), jnp.float32)],
        compiler_params=pltpu.CompilerParams(
            dimension_semantics=("arbitrary",),     # layers are sequential
            vmem_limit_bytes=32 * 1024 * 1024),
    )(x2d, enc2d, self_bias, cross_bias_z,
      w['wq1'], w['wk1'], w['wv1'], w['wo1'],
      w['wq2'], w['wk2'], w['wv2'], w['wo2'],
      w['wf1'], p['bf1'], w['wf2'], p['bf2'],
      p['g1'], p['b1'], p['g2'], p['b2'], p['g3'], p['b3'],
      dense_w, dense_b)

    logits = logits2d.reshape(B, T, Vpad)[..., :V]
    state = [enc_outputs, enc_valid_lens, [kv_states[l] for l in range(L)]]
    return logits, state


# ---------------------------------------------------------------------------
# Pure-JAX reference (for the correctness check only)
# ---------------------------------------------------------------------------
def _reference_forward(tokens, enc_outputs, enc_valid_lens, params):
    B, T = tokens.shape
    H = params['embedding'].shape[1]
    nh, hd = NUM_HEADS, H // NUM_HEADS
    x = params['embedding'][tokens] * math.sqrt(H)
    x = x + params['pos_P'][:T][None]

    def mha(q_in, kv_in, wq, wk, wv, wo, valid_per_row):
        def split(z, w):
            zz = jnp.einsum('btd,dh->bth', z, w)
            return zz.reshape(z.shape[0], z.shape[1], nh, hd).transpose(0, 2, 1, 3)
        q, k, v = split(q_in, wq), split(kv_in, wk), split(kv_in, wv)
        s = jnp.einsum('bhqd,bhkd->bhqk', q, k) / math.sqrt(hd)
        kidx = jnp.arange(k.shape[2], dtype=jnp.float32)
        mask = kidx[None, None, None, :] < valid_per_row[:, None, :, None]
        s = jnp.where(mask, s, MASK_VALUE)
        a = jax.nn.softmax(s, axis=-1)
        o = jnp.einsum('bhqk,bhkd->bhqd', a, v)
        o = o.transpose(0, 2, 1, 3).reshape(q_in.shape[0], q_in.shape[1], H)
        return jnp.einsum('btd,dh->bth', o, wo)

    def ln(z, g, b):
        mu = z.mean(-1, keepdims=True)
        var = ((z - mu) ** 2).mean(-1, keepdims=True)
        return (z - mu) / jnp.sqrt(var + LN_EPS) * g.reshape(-1) + b.reshape(-1)

    dec_valid = jnp.broadcast_to(
        jnp.arange(1, T + 1, dtype=jnp.float32)[None], (B, T))
    enc_valid = jnp.broadcast_to(
        enc_valid_lens.astype(jnp.float32)[:, None], (B, T))
    for p in params['blocks']:
        x2 = mha(x, x, p['wq1'], p['wk1'], p['wv1'], p['wo1'], dec_valid)
        y = ln(x + x2, p['g1'], p['b1'])
        y2 = mha(y, enc_outputs, p['wq2'], p['wk2'], p['wv2'], p['wo2'], enc_valid)
        z = ln(y + y2, p['g2'], p['b2'])
        h1 = jax.nn.relu(jnp.einsum('btd,df->btf', z, p['wf1'])
                         + p['bf1'].reshape(-1))
        f = jnp.einsum('btf,fd->btd', h1, p['wf2']) + p['bf2'].reshape(-1)
        x = ln(z + f, p['g3'], p['b3'])
    return (jnp.einsum('btd,dv->btv', x, params['dense_w'])
            + params['dense_b'].reshape(-1))


# ---------------------------------------------------------------------------
if __name__ == "__main__":
    vocab_size = 16
    num_hiddens = 32
    ffn_num_hiddens = 64
    num_layers = 2
    B, T, Te = 2, 8, 8

    key = jax.random.PRNGKey(0)
    kit = iter(jax.random.split(key, 64))

    def nrm(shape, scale=0.1):
        return scale * jax.random.normal(next(kit), shape, jnp.float32)

    params = {
        'embedding': nrm((vocab_size, num_hiddens), 0.3),
        'pos_P': positional_encoding_table(1000, num_hiddens),
        'dense_w': nrm((num_hiddens, vocab_size)),
        'dense_b': nrm((1, vocab_size)),
        'blocks': [],
    }
    for _ in range(num_layers):
        blk = {
            'wq1': nrm((num_hiddens, num_hiddens)),
            'wk1': nrm((num_hiddens, num_hiddens)),
            'wv1': nrm((num_hiddens, num_hiddens)),
            'wo1': nrm((num_hiddens, num_hiddens)),
            'wq2': nrm((num_hiddens, num_hiddens)),
            'wk2': nrm((num_hiddens, num_hiddens)),
            'wv2': nrm((num_hiddens, num_hiddens)),
            'wo2': nrm((num_hiddens, num_hiddens)),
            'wf1': nrm((num_hiddens, ffn_num_hiddens)),
            'bf1': nrm((1, ffn_num_hiddens)),
            'wf2': nrm((ffn_num_hiddens, num_hiddens)),
            'bf2': nrm((1, num_hiddens)),
            # LayerNorm default init: weight = 1, bias = 0
            'g1': jnp.ones((1, num_hiddens), jnp.float32),
            'b1': jnp.zeros((1, num_hiddens), jnp.float32),
            'g2': jnp.ones((1, num_hiddens), jnp.float32),
            'b2': jnp.zeros((1, num_hiddens), jnp.float32),
            'g3': jnp.ones((1, num_hiddens), jnp.float32),
            'b3': jnp.zeros((1, num_hiddens), jnp.float32),
        }
        params['blocks'].append(blk)

    tokens = jax.random.randint(next(kit), (B, T), 0, vocab_size, jnp.int32)
    enc_outputs = nrm((B, Te, num_hiddens), 1.0)
    enc_valid_lens = jnp.array([5, 8], dtype=jnp.int32)

    logits, state = transformer_decoder_forward(
        tokens, enc_outputs, enc_valid_lens, params)
    logits = jax.block_until_ready(logits)

    ref = _reference_forward(tokens, enc_outputs, enc_valid_lens, params)
    # Tolerance: MXU operands + stacked weights are bf16 (per perf review),
    # softmax uses the approx EUP reciprocal; the pure-f32 reference therefore
    # differs by a few % of the logit scale (~0.5 std here).
    err = float(jnp.max(jnp.abs(logits - ref)))
    if not jnp.allclose(logits, ref, atol=5e-2, rtol=5e-2):
        raise AssertionError(
            f"Pallas output does not match JAX reference (max abs err {err})")

    assert logits.shape == (B, T, vocab_size)
    assert len(state[2]) == num_layers
    assert state[2][0].shape == (B, T, num_hiddens)
    print("KERNEL_OK")
</pallas_src>

<mosaic_0001>
module attributes {stable_mosaic.version = 11 : i64} {
  func.func @kernel(%arg0: i32, %arg1: memref<16x32xf32, #tpu.memory_space<vmem>>, %arg2: memref<16x32xbf16, #tpu.memory_space<vmem>>, %arg3: memref<8x8xf32, #tpu.memory_space<vmem>>, %arg4: memref<8x1x8xf32, #tpu.memory_space<vmem>>, %arg5: memref<1x32x32xbf16, #tpu.memory_space<vmem>>, %arg6: memref<1x32x32xbf16, #tpu.memory_space<vmem>>, %arg7: memref<1x32x32xbf16, #tpu.memory_space<vmem>>, %arg8: memref<1x32x32xbf16, #tpu.memory_space<vmem>>, %arg9: memref<1x32x32xbf16, #tpu.memory_space<vmem>>, %arg10: memref<1x32x32xbf16, #tpu.memory_space<vmem>>, %arg11: memref<1x32x32xbf16, #tpu.memory_space<vmem>>, %arg12: memref<1x32x32xbf16, #tpu.memory_space<vmem>>, %arg13: memref<1x32x64xbf16, #tpu.memory_space<vmem>>, %arg14: memref<1x1x64xf32, #tpu.memory_space<vmem>>, %arg15: memref<1x64x32xbf16, #tpu.memory_space<vmem>>, %arg16: memref<1x1x32xf32, #tpu.memory_space<vmem>>, %arg17: memref<1x1x32xf32, #tpu.memory_space<vmem>>, %arg18: memref<1x1x32xf32, #tpu.memory_space<vmem>>, %arg19: memref<1x1x32xf32, #tpu.memory_space<vmem>>, %arg20: memref<1x1x32xf32, #tpu.memory_space<vmem>>, %arg21: memref<1x1x32xf32, #tpu.memory_space<vmem>>, %arg22: memref<1x1x32xf32, #tpu.memory_space<vmem>>, %arg23: memref<32x128xbf16, #tpu.memory_space<vmem>>, %arg24: memref<1x128xf32, #tpu.memory_space<vmem>>, %arg25: memref<16x128xf32, #tpu.memory_space<vmem>>, %arg26: memref<1x2x8x32xbf16, #tpu.memory_space<vmem>>, %arg27: memref<16x32xf32, #tpu.memory_space<vmem>>) attributes {dimension_semantics = [#tpu.dimension_semantics<arbitrary>], iteration_bounds = array<i64: 3>, scalar_prefetch = 0 : i64, scratch_operands = 1 : i64, tpu.core_type = #tpu.core_type<tc>, window_params = [{pipeline_mode = #tpu.pipeline_mode<synchronous>, transform_indices = @transform_0, window_bounds = array<i64: 16, 32>}, {pipeline_mode = #tpu.pipeline_mode<synchronous>, transform_indices = @transform_1, window_bounds = array<i64: 16, 32>}, {pipeline_mode = #tpu.pipeline_mode<synchronous>, transform_indices = @transform_2, window_bounds = array<i64: 8, 8>}, {pipeline_mode = #tpu.pipeline_mode<synchronous>, transform_indices = @transform_3, window_bounds = array<i64: 8, 1, 8>}, {transform_indices = @transform_4, window_bounds = array<i64: 1, 32, 32>}, {transform_indices = @transform_5, window_bounds = array<i64: 1, 32, 32>}, {transform_indices = @transform_6, window_bounds = array<i64: 1, 32, 32>}, {transform_indices = @transform_7, window_bounds = array<i64: 1, 32, 32>}, {transform_indices = @transform_8, window_bounds = array<i64: 1, 32, 32>}, {transform_indices = @transform_9, window_bounds = array<i64: 1, 32, 32>}, {transform_indices = @transform_10, window_bounds = array<i64: 1, 32, 32>}, {transform_indices = @transform_11, window_bounds = array<i64: 1, 32, 32>}, {transform_indices = @transform_12, window_bounds = array<i64: 1, 32, 64>}, {transform_indices = @transform_13, window_bounds = array<i64: 1, 1, 64>}, {transform_indices = @transform_14, window_bounds = array<i64: 1, 64, 32>}, {transform_indices = @transform_15, window_bounds = array<i64: 1, 1, 32>}, {transform_indices = @transform_16, window_bounds = array<i64: 1, 1, 32>}, {transform_indices = @transform_17, window_bounds = array<i64: 1, 1, 32>}, {transform_indices = @transform_18, window_bounds = array<i64: 1, 1, 32>}, {transform_indices = @transform_19, window_bounds = array<i64: 1, 1, 32>}, {transform_indices = @transform_20, window_bounds = array<i64: 1, 1, 32>}, {transform_indices = @transform_21, window_bounds = array<i64: 1, 1, 32>}, {transform_indices = @transform_22, window_bounds = array<i64: 32, 128>}, {transform_indices = @transform_23, window_bounds = array<i64: 1, 128>}, {transform_indices = @transform_24, window_bounds = array<i64: 16, 128>}, {transform_indices = @transform_25, window_bounds = array<i64: 1, 2, 8, 32>}]} {
    %c0_i32 = arith.constant 0 : i32
    %0 = arith.cmpi eq, %arg0, %c0_i32 : i32
    %1 = arith.extui %0 : i1 to i32
    %c0_i32_0 = arith.constant 0 : i32
    %2 = arith.cmpi ne, %1, %c0_i32_0 : i32
    scf.if %2 {
      %c0 = arith.constant 0 : index
      %c0_4 = arith.constant 0 : index
      %9 = vector.load %arg1[%c0, %c0_4] : memref<16x32xf32, #tpu.memory_space<vmem>>, vector<16x32xf32>
      %c0_5 = arith.constant 0 : index
      %c0_6 = arith.constant 0 : index
      %10 = vector.load %arg27[%c0_5, %c0_6] : memref<16x32xf32, #tpu.memory_space<vmem>>, vector<16x32xf32>
      tpu.vector_store %arg27[%c0_5, %c0_6], %9 {strides = array<i32>} : memref<16x32xf32, #tpu.memory_space<vmem>>, vector<16x32xf32>,
    } else {
    }
    %c2_i32 = arith.constant 2 : i32
    %3 = arith.cmpi slt, %arg0, %c2_i32 : i32
    %4 = arith.extui %3 : i1 to i32
    %c0_i32_1 = arith.constant 0 : i32
    %5 = arith.cmpi ne, %4, %c0_i32_1 : i32
    scf.if %5 {
      %c0 = arith.constant 0 : index
      %c0_4 = arith.constant 0 : index
      %9 = vector.load %arg27[%c0, %c0_4] : memref<16x32xf32, #tpu.memory_space<vmem>>, vector<16x32xf32>
      %10 = vector.shape_cast %9 : vector<16x32xf32> to vector<2x8x32xf32>
      %11 = arith.truncf %10 : vector<2x8x32xf32> to vector<2x8x32xbf16>
      %c0_5 = arith.constant 0 : index
      %c0_6 = arith.constant 0 : index
      %c0_7 = arith.constant 0 : index
      %c0_8 = arith.constant 0 : index
      %12 = vector.load %arg26[%c0_5, %c0_6, %c0_7, %c0_8] : memref<1x2x8x32xbf16, #tpu.memory_space<vmem>>, vector<1x2x8x32xbf16>
      %13 = vector.shape_cast %12 : vector<1x2x8x32xbf16> to vector<2x8x32xbf16>
      %14 = vector.shape_cast %11 : vector<2x8x32xbf16> to vector<1x2x8x32xbf16>
      tpu.vector_store %arg26[%c0_5, %c0_6, %c0_7, %c0_8], %14 {strides = array<i32>} : memref<1x2x8x32xbf16, #tpu.memory_space<vmem>>, vector<1x2x8x32xbf16>,
      %c0_9 = arith.constant 0 : index
      %c0_10 = arith.constant 0 : index
      %c0_11 = arith.constant 0 : index
      %15 = vector.load %arg5[%c0_9, %c0_10, %c0_11] : memref<1x32x32xbf16, #tpu.memory_space<vmem>>, vector<1x32x32xbf16>
      %16 = vector.shape_cast %15 : vector<1x32x32xbf16> to vector<32x32xbf16>
      %c0_12 = arith.constant 0 : index
      %c0_13 = arith.constant 0 : index
      %c0_14 = arith.constant 0 : index
      %17 = vector.load %arg6[%c0_12, %c0_13, %c0_14] : memref<1x32x32xbf16, #tpu.memory_space<vmem>>, vector<1x32x32xbf16>
      %18 = vector.shape_cast %17 : vector<1x32x32xbf16> to vector<32x32xbf16>
      %c0_15 = arith.constant 0 : index
      %c0_16 = arith.constant 0 : index
      %c0_17 = arith.constant 0 : index
      %19 = vector.load %arg7[%c0_15, %c0_16, %c0_17] : memref<1x32x32xbf16, #tpu.memory_space<vmem>>, vector<1x32x32xbf16>
      %20 = vector.shape_cast %19 : vector<1x32x32xbf16> to vector<32x32xbf16>
      %c0_18 = arith.constant 0 : index
      %c0_19 = arith.constant 0 : index
      %c0_20 = arith.constant 0 : index
      %21 = vector.load %arg8[%c0_18, %c0_19, %c0_20] : memref<1x32x32xbf16, #tpu.memory_space<vmem>>, vector<1x32x32xbf16>
      %22 = vector.shape_cast %21 : vector<1x32x32xbf16> to vector<32x32xbf16>
      %c0_21 = arith.constant 0 : index
      %c0_22 = arith.constant 0 : index
      %23 = vector.load %arg3[%c0_21, %c0_22] : memref<8x8xf32, #tpu.memory_space<vmem>>, vector<8x8xf32>
      %24 = vector.shape_cast %23 : vector<8x8xf32> to vector<1x8x8xf32>
      %25 = arith.truncf %9 : vector<16x32xf32> to vector<16x32xbf16>
      %cst = arith.constant dense<0.000000e+00> : vector<16x32xf32>
      %26 = tpu.matmul %25, %16, %cst {dimension_numbers = #tpu.dot_dimension_numbers<[1], [0], [0], [1], [0, 0, 1, 1], [], []>} : vector<16x32xbf16>, vector<32x32xbf16>, vector<16x32xf32> -> vector<16x32xf32>
      %27 = vector.shape_cast %26 : vector<16x32xf32> to vector<2x8x4x8xf32>
      %28 = tpu.transpose %27, [0, 2, 1, 3] : vector<2x8x4x8xf32> -> vector<2x4x8x8xf32>
      %29 = vector.shape_cast %28 : vector<2x4x8x8xf32> to vector<8x8x8xf32>
      %30 = arith.truncf %9 : vector<16x32xf32> to vector<16x32xbf16>
      %cst_23 = arith.constant dense<0.000000e+00> : vector<16x32xf32>
      %31 = tpu.matmul %30, %18, %cst_23 {dimension_numbers = #tpu.dot_dimension_numbers<[1], [0], [0], [1], [0, 0, 1, 1], [], []>} : vector<16x32xbf16>, vector<32x32xbf16>, vector<16x32xf32> -> vector<16x32xf32>
      %32 = vector.shape_cast %31 : vector<16x32xf32> to vector<2x8x4x8xf32>
      %33 = tpu.transpose %32, [0, 2, 1, 3] : vector<2x8x4x8xf32> -> vector<2x4x8x8xf32>
      %34 = vector.shape_cast %33 : vector<2x4x8x8xf32> to vector<8x8x8xf32>
      %35 = arith.truncf %9 : vector<16x32xf32> to vector<16x32xbf16>
      %cst_24 = arith.constant dense<0.000000e+00> : vector<16x32xf32>
      %36 = tpu.matmul %35, %20, %cst_24 {dimension_numbers = #tpu.dot_dimension_numbers<[1], [0], [0], [1], [0, 0, 1, 1], [], []>} : vector<16x32xbf16>, vector<32x32xbf16>, vector<16x32xf32> -> vector<16x32xf32>
      %37 = vector.shape_cast %36 : vector<16x32xf32> to vector<2x8x4x8xf32>
      %38 = tpu.transpose %37, [0, 2, 1, 3] : vector<2x8x4x8xf32> -> vector<2x4x8x8xf32>
      %39 = vector.shape_cast %38 : vector<2x4x8x8xf32> to vector<8x8x8xf32>
      %40 = arith.truncf %29 : vector<8x8x8xf32> to vector<8x8x8xbf16>
      %41 = arith.truncf %34 : vector<8x8x8xf32> to vector<8x8x8xbf16>
      "tpu.trace_start"() <{level = 10 : i32, message = "zqe,zke->zqk"}> : () -> ()
      %cst_25 = arith.constant dense<0.000000e+00> : vector<8x8x8xf32>
      %42 = tpu.matmul %40, %41, %cst_25 {dimension_numbers = #tpu.dot_dimension_numbers<[2], [2], [1], [1], [0, 0, 0, 1, 1, 1], [0], [0]>} : vector<8x8x8xbf16>, vector<8x8x8xbf16>, vector<8x8x8xf32> -> vector<8x8x8xf32>
      "tpu.trace_stop"() : () -> ()
      %cst_26 = arith.constant 0.353553385 : f32
      %43 = vector.broadcast %cst_26 : f32 to vector<8x8x8xf32>
      %44 = arith.mulf %42, %43 : vector<8x8x8xf32>
      %45 = vector.broadcast %24 : vector<1x8x8xf32> to vector<8x8x8xf32>
      %46 = arith.addf %44, %45 : vector<8x8x8xf32>
      %cst_27 = arith.constant dense<0xFF800000> : vector<8x8xf32>
      %47 = vector.multi_reduction <maximumf>, %46, %cst_27 [2] : vector<8x8x8xf32> to vector<8x8xf32>
      %48 = vector.shape_cast %47 : vector<8x8xf32> to vector<8x8x1xf32>
      %49 = vector.broadcast %48 : vector<8x8x1xf32> to vector<8x8x8xf32>
      %50 = arith.subf %46, %49 : vector<8x8x8xf32>
      %51 = math.exp %50 : vector<8x8x8xf32>
      %cst_28 = arith.constant dense<0.000000e+00> : vector<8x8xf32>
      %52 = vector.multi_reduction <add>, %51, %cst_28 [2] : vector<8x8x8xf32> to vector<8x8xf32>
      %53 = vector.shape_cast %52 : vector<8x8xf32> to vector<8x8x1xf32>
      %54 = tpu.reciprocal %53 {approx = true} : vector<8x8x1xf32> -> vector<8x8x1xf32>
      %55 = vector.broadcast %54 : vector<8x8x1xf32> to vector<8x8x8xf32>
      %56 = arith.mulf %51, %55 : vector<8x8x8xf32>
      %57 = arith.truncf %56 : vector<8x8x8xf32> to vector<8x8x8xbf16>
      %58 = arith.truncf %39 : vector<8x8x8xf32> to vector<8x8x8xbf16>
      "tpu.trace_start"() <{level = 10 : i32, message = "zqk,zke->zqe"}> : () -> ()
      %cst_29 = arith.constant dense<0.000000e+00> : vector<8x8x8xf32>
      %59 = tpu.matmul %57, %58, %cst_29 {dimension_numbers = #tpu.dot_dimension_numbers<[2], [1], [1], [2], [0, 0, 0, 1, 1, 2], [0], [0]>} : vector<8x8x8xbf16>, vector<8x8x8xbf16>, vector<8x8x8xf32> -> vector<8x8x8xf32>
      "tpu.trace_stop"() : () -> ()
      %60 = vector.shape_cast %59 : vector<8x8x8xf32> to vector<2x4x8x8xf32>
      %61 = tpu.transpose %60, [0, 2, 1, 3] : vector<2x4x8x8xf32> -> vector<2x8x4x8xf32>
      %62 = vector.shape_cast %61 : vector<2x8x4x8xf32> to vector<16x32xf32>
      %63 = arith.truncf %62 : vector<16x32xf32> to vector<16x32xbf16>
      %cst_30 = arith.constant dense<0.000000e+00> : vector<16x32xf32>
      %64 = tpu.matmul %63, %22, %cst_30 {dimension_numbers = #tpu.dot_dimension_numbers<[1], [0], [0], [1], [0, 0, 1, 1], [], []>} : vector<16x32xbf16>, vector<32x32xbf16>, vector<16x32xf32> -> vector<16x32xf32>
      %65 = arith.addf %9, %64 : vector<16x32xf32>
      %c0_31 = arith.constant 0 : index
      %c0_32 = arith.constant 0 : index
      %c0_33 = arith.constant 0 : index
      %66 = vector.load %arg17[%c0_31, %c0_32, %c0_33] : memref<1x1x32xf32, #tpu.memory_space<vmem>>, vector<1x1x32xf32>
      %67 = vector.shape_cast %66 : vector<1x1x32xf32> to vector<1x32xf32>
      %c0_34 = arith.constant 0 : index
      %c0_35 = arith.constant 0 : index
      %c0_36 = arith.constant 0 : index
      %68 = vector.load %arg18[%c0_34, %c0_35, %c0_36] : memref<1x1x32xf32, #tpu.memory_space<vmem>>, vector<1x1x32xf32>
      %69 = vector.shape_cast %68 : vector<1x1x32xf32> to vector<1x32xf32>
      %cst_37 = arith.constant dense<0.000000e+00> : vector<16xf32>
      %70 = vector.multi_reduction <add>, %65, %cst_37 [1] : vector<16x32xf32> to vector<16xf32>
      %71 = vector.shape_cast %70 : vector<16xf32> to vector<16x1xf32>
      %cst_38 = arith.constant 3.200000e+01 : f32
      %72 = vector.broadcast %cst_38 : f32 to vector<16x1xf32>
      %73 = arith.divf %71, %72 : vector<16x1xf32>
      %74 = arith.mulf %65, %65 : vector<16x32xf32>
      %cst_39 = arith.constant dense<0.000000e+00> : vector<16xf32>
      %75 = vector.multi_reduction <add>, %74, %cst_39 [1] : vector<16x32xf32> to vector<16xf32>
      %76 = vector.shape_cast %75 : vector<16xf32> to vector<16x1xf32>
      %cst_40 = arith.constant 3.200000e+01 : f32
      %77 = vector.broadcast %cst_40 : f32 to vector<16x1xf32>
      %78 = arith.divf %76, %77 : vector<16x1xf32>
      %79 = arith.mulf %73, %73 : vector<16x1xf32>
      %80 = arith.subf %78, %79 : vector<16x1xf32>
      %cst_41 = arith.constant 0.000000e+00 : f32
      %81 = vector.broadcast %cst_41 : f32 to vector<16x1xf32>
      %82 = arith.maximumf %80, %81 : vector<16x1xf32>
      %83 = vector.broadcast %73 : vector<16x1xf32> to vector<16x32xf32>
      %84 = arith.subf %65, %83 : vector<16x32xf32>
      %cst_42 = arith.constant 9.99999974E-6 : f32
      %85 = vector.broadcast %cst_42 : f32 to vector<16x1xf32>
      %86 = arith.addf %82, %85 : vector<16x1xf32>
      %87 = math.rsqrt %86 : vector<16x1xf32>
      %88 = vector.broadcast %87 : vector<16x1xf32> to vector<16x32xf32>
      %89 = arith.mulf %84, %88 : vector<16x32xf32>
      %90 = vector.broadcast %67 : vector<1x32xf32> to vector<16x32xf32>
      %91 = arith.mulf %89, %90 : vector<16x32xf32>
      %92 = vector.broadcast %69 : vector<1x32xf32> to vector<16x32xf32>
      %93 = arith.addf %91, %92 : vector<16x32xf32>
      %c0_43 = arith.constant 0 : index
      %c0_44 = arith.constant 0 : index
      %94 = vector.load %arg2[%c0_43, %c0_44] : memref<16x32xbf16, #tpu.memory_space<vmem>>, vector<16x32xbf16>
      %c0_45 = arith.constant 0 : index
      %c0_46 = arith.constant 0 : index
      %c0_47 = arith.constant 0 : index
      %95 = vector.load %arg9[%c0_45, %c0_46, %c0_47] : memref<1x32x32xbf16, #tpu.memory_space<vmem>>, vector<1x32x32xbf16>
      %96 = vector.shape_cast %95 : vector<1x32x32xbf16> to vector<32x32xbf16>
      %c0_48 = arith.constant 0 : index
      %c0_49 = arith.constant 0 : index
      %c0_50 = arith.constant 0 : index
      %97 = vector.load %arg10[%c0_48, %c0_49, %c0_50] : memref<1x32x32xbf16, #tpu.memory_space<vmem>>, vector<1x32x32xbf16>
      %98 = vector.shape_cast %97 : vector<1x32x32xbf16> to vector<32x32xbf16>
      %c0_51 = arith.constant 0 : index
      %c0_52 = arith.constant 0 : index
      %c0_53 = arith.constant 0 : index
      %99 = vector.load %arg11[%c0_51, %c0_52, %c0_53] : memref<1x32x32xbf16, #tpu.memory_space<vmem>>, vector<1x32x32xbf16>
      %100 = vector.shape_cast %99 : vector<1x32x32xbf16> to vector<32x32xbf16>
      %c0_54 = arith.constant 0 : index
      %c0_55 = arith.constant 0 : index
      %c0_56 = arith.constant 0 : index
      %101 = vector.load %arg12[%c0_54, %c0_55, %c0_56] : memref<1x32x32xbf16, #tpu.memory_space<vmem>>, vector<1x32x32xbf16>
      %102 = vector.shape_cast %101 : vector<1x32x32xbf16> to vector<32x32xbf16>
      %c0_57 = arith.constant 0 : index
      %c0_58 = arith.constant 0 : index
      %c0_59 = arith.constant 0 : index
      %103 = vector.load %arg4[%c0_57, %c0_58, %c0_59] : memref<8x1x8xf32, #tpu.memory_space<vmem>>, vector<8x1x8xf32>
      %104 = arith.truncf %93 : vector<16x32xf32> to vector<16x32xbf16>
      %cst_60 = arith.constant dense<0.000000e+00> : vector<16x32xf32>
      %105 = tpu.matmul %104, %96, %cst_60 {dimension_numbers = #tpu.dot_dimension_numbers<[1], [0], [0], [1], [0, 0, 1, 1], [], []>} : vector<16x32xbf16>, vector<32x32xbf16>, vector<16x32xf32> -> vector<16x32xf32>
      %106 = vector.shape_cast %105 : vector<16x32xf32> to vector<2x8x4x8xf32>
      %107 = tpu.transpose %106, [0, 2, 1, 3] : vector<2x8x4x8xf32> -> vector<2x4x8x8xf32>
      %108 = vector.shape_cast %107 : vector<2x4x8x8xf32> to vector<8x8x8xf32>
      %cst_61 = arith.constant dense<0.000000e+00> : vector<16x32xf32>
      %109 = tpu.matmul %94, %98, %cst_61 {dimension_numbers = #tpu.dot_dimension_numbers<[1], [0], [0], [1], [0, 0, 1, 1], [], []>} : vector<16x32xbf16>, vector<32x32xbf16>, vector<16x32xf32> -> vector<16x32xf32>
      %110 = vector.shape_cast %109 : vector<16x32xf32> to vector<2x8x4x8xf32>
      %111 = tpu.transpose %110, [0, 2, 1, 3] : vector<2x8x4x8xf32> -> vector<2x4x8x8xf32>
      %112 = vector.shape_cast %111 : vector<2x4x8x8xf32> to vector<8x8x8xf32>
      %cst_62 = arith.constant dense<0.000000e+00> : vector<16x32xf32>
      %113 = tpu.matmul %94, %100, %cst_62 {dimension_numbers = #tpu.dot_dimension_numbers<[1], [0], [0], [1], [0, 0, 1, 1], [], []>} : vector<16x32xbf16>, vector<32x32xbf16>, vector<16x32xf32> -> vector<16x32xf32>
      %114 = vector.shape_cast %113 : vector<16x32xf32> to vector<2x8x4x8xf32>
      %115 = tpu.transpose %114, [0, 2, 1, 3] : vector<2x8x4x8xf32> -> vector<2x4x8x8xf32>
      %116 = vector.shape_cast %115 : vector<2x4x8x8xf32> to vector<8x8x8xf32>
      %117 = arith.truncf %108 : vector<8x8x8xf32> to vector<8x8x8xbf16>
      %118 = arith.truncf %112 : vector<8x8x8xf32> to vector<8x8x8xbf16>
      "tpu.trace_start"() <{level = 10 : i32, message = "zqe,zke->zqk"}> : () -> ()
      %cst_63 = arith.constant dense<0.000000e+00> : vector<8x8x8xf32>
      %119 = tpu.matmul %117, %118, %cst_63 {dimension_numbers = #tpu.dot_dimension_numbers<[2], [2], [1], [1], [0, 0, 0, 1, 1, 1], [0], [0]>} : vector<8x8x8xbf16>, vector<8x8x8xbf16>, vector<8x8x8xf32> -> vector<8x8x8xf32>
      "tpu.trace_stop"() : () -> ()
      %cst_64 = arith.constant 0.353553385 : f32
      %120 = vector.broadcast %cst_64 : f32 to vector<8x8x8xf32>
      %121 = arith.mulf %119, %120 : vector<8x8x8xf32>
      %122 = vector.broadcast %103 : vector<8x1x8xf32> to vector<8x8x8xf32>
      %123 = arith.addf %121, %122 : vector<8x8x8xf32>
      %cst_65 = arith.constant dense<0xFF800000> : vector<8x8xf32>
      %124 = vector.multi_reduction <maximumf>, %123, %cst_65 [2] : vector<8x8x8xf32> to vector<8x8xf32>
      %125 = vector.shape_cast %124 : vector<8x8xf32> to vector<8x8x1xf32>
      %126 = vector.broadcast %125 : vector<8x8x1xf32> to vector<8x8x8xf32>
      %127 = arith.subf %123, %126 : vector<8x8x8xf32>
      %128 = math.exp %127 : vector<8x8x8xf32>
      %cst_66 = arith.constant dense<0.000000e+00> : vector<8x8xf32>
      %129 = vector.multi_reduction <add>, %128, %cst_66 [2] : vector<8x8x8xf32> to vector<8x8xf32>
      %130 = vector.shape_cast %129 : vector<8x8xf32> to vector<8x8x1xf32>
      %131 = tpu.reciprocal %130 {approx = true} : vector<8x8x1xf32> -> vector<8x8x1xf32>
      %132 = vector.broadcast %131 : vector<8x8x1xf32> to vector<8x8x8xf32>
      %133 = arith.mulf %128, %132 : vector<8x8x8xf32>
      %134 = arith.truncf %133 : vector<8x8x8xf32> to vector<8x8x8xbf16>
      %135 = arith.truncf %116 : vector<8x8x8xf32> to vector<8x8x8xbf16>
      "tpu.trace_start"() <{level = 10 : i32, message = "zqk,zke->zqe"}> : () -> ()
      %cst_67 = arith.constant dense<0.000000e+00> : vector<8x8x8xf32>
      %136 = tpu.matmul %134, %135, %cst_67 {dimension_numbers = #tpu.dot_dimension_numbers<[2], [1], [1], [2], [0, 0, 0, 1, 1, 2], [0], [0]>} : vector<8x8x8xbf16>, vector<8x8x8xbf16>, vector<8x8x8xf32> -> vector<8x8x8xf32>
      "tpu.trace_stop"() : () -> ()
      %137 = vector.shape_cast %136 : vector<8x8x8xf32> to vector<2x4x8x8xf32>
      %138 = tpu.transpose %137, [0, 2, 1, 3] : vector<2x4x8x8xf32> -> vector<2x8x4x8xf32>
      %139 = vector.shape_cast %138 : vector<2x8x4x8xf32> to vector<16x32xf32>
      %140 = arith.truncf %139 : vector<16x32xf32> to vector<16x32xbf16>
      %cst_68 = arith.constant dense<0.000000e+00> : vector<16x32xf32>
      %141 = tpu.matmul %140, %102, %cst_68 {dimension_numbers = #tpu.dot_dimension_numbers<[1], [0], [0], [1], [0, 0, 1, 1], [], []>} : vector<16x32xbf16>, vector<32x32xbf16>, vector<16x32xf32> -> vector<16x32xf32>
      %142 = arith.addf %93, %141 : vector<16x32xf32>
      %c0_69 = arith.constant 0 : index
      %c0_70 = arith.constant 0 : index
      %c0_71 = arith.constant 0 : index
      %143 = vector.load %arg19[%c0_69, %c0_70, %c0_71] : memref<1x1x32xf32, #tpu.memory_space<vmem>>, vector<1x1x32xf32>
      %144 = vector.shape_cast %143 : vector<1x1x32xf32> to vector<1x32xf32>
      %c0_72 = arith.constant 0 : index
      %c0_73 = arith.constant 0 : index
      %c0_74 = arith.constant 0 : index
      %145 = vector.load %arg20[%c0_72, %c0_73, %c0_74] : memref<1x1x32xf32, #tpu.memory_space<vmem>>, vector<1x1x32xf32>
      %146 = vector.shape_cast %145 : vector<1x1x32xf32> to vector<1x32xf32>
      %cst_75 = arith.constant dense<0.000000e+00> : vector<16xf32>
      %147 = vector.multi_reduction <add>, %142, %cst_75 [1] : vector<16x32xf32> to vector<16xf32>
      %148 = vector.shape_cast %147 : vector<16xf32> to vector<16x1xf32>
      %cst_76 = arith.constant 3.200000e+01 : f32
      %149 = vector.broadcast %cst_76 : f32 to vector<16x1xf32>
      %150 = arith.divf %148, %149 : vector<16x1xf32>
      %151 = arith.mulf %142, %142 : vector<16x32xf32>
      %cst_77 = arith.constant dense<0.000000e+00> : vector<16xf32>
      %152 = vector.multi_reduction <add>, %151, %cst_77 [1] : vector<16x32xf32> to vector<16xf32>
      %153 = vector.shape_cast %152 : vector<16xf32> to vector<16x1xf32>
      %cst_78 = arith.constant 3.200000e+01 : f32
      %154 = vector.broadcast %cst_78 : f32 to vector<16x1xf32>
      %155 = arith.divf %153, %154 : vector<16x1xf32>
      %156 = arith.mulf %150, %150 : vector<16x1xf32>
      %157 = arith.subf %155, %156 : vector<16x1xf32>
      %cst_79 = arith.constant 0.000000e+00 : f32
      %158 = vector.broadcast %cst_79 : f32 to vector<16x1xf32>
      %159 = arith.maximumf %157, %158 : vector<16x1xf32>
      %160 = vector.broadcast %150 : vector<16x1xf32> to vector<16x32xf32>
      %161 = arith.subf %142, %160 : vector<16x32xf32>
      %cst_80 = arith.constant 9.99999974E-6 : f32
      %162 = vector.broadcast %cst_80 : f32 to vector<16x1xf32>
      %163 = arith.addf %159, %162 : vector<16x1xf32>
      %164 = math.rsqrt %163 : vector<16x1xf32>
      %165 = vector.broadcast %164 : vector<16x1xf32> to vector<16x32xf32>
      %166 = arith.mulf %161, %165 : vector<16x32xf32>
      %167 = vector.broadcast %144 : vector<1x32xf32> to vector<16x32xf32>
      %168 = arith.mulf %166, %167 : vector<16x32xf32>
      %169 = vector.broadcast %146 : vector<1x32xf32> to vector<16x32xf32>
      %170 = arith.addf %168, %169 : vector<16x32xf32>
      %c0_81 = arith.constant 0 : index
      %c0_82 = arith.constant 0 : index
      %c0_83 = arith.constant 0 : index
      %171 = vector.load %arg13[%c0_81, %c0_82, %c0_83] : memref<1x32x64xbf16, #tpu.memory_space<vmem>>, vector<1x32x64xbf16>
      %172 = vector.shape_cast %171 : vector<1x32x64xbf16> to vector<32x64xbf16>
      %173 = arith.truncf %170 : vector<16x32xf32> to vector<16x32xbf16>
      %cst_84 = arith.constant dense<0.000000e+00> : vector<16x64xf32>
      %174 = tpu.matmul %173, %172, %cst_84 {dimension_numbers = #tpu.dot_dimension_numbers<[1], [0], [0], [1], [0, 0, 1, 1], [], []>} : vector<16x32xbf16>, vector<32x64xbf16>, vector<16x64xf32> -> vector<16x64xf32>
      %c0_85 = arith.constant 0 : index
      %c0_86 = arith.constant 0 : index
      %c0_87 = arith.constant 0 : index
      %175 = vector.load %arg14[%c0_85, %c0_86, %c0_87] : memref<1x1x64xf32, #tpu.memory_space<vmem>>, vector<1x1x64xf32>
      %176 = vector.shape_cast %175 : vector<1x1x64xf32> to vector<1x64xf32>
      %177 = vector.broadcast %176 : vector<1x64xf32> to vector<16x64xf32>
      %178 = arith.addf %174, %177 : vector<16x64xf32>
      %cst_88 = arith.constant 0.000000e+00 : f32
      %179 = vector.broadcast %cst_88 : f32 to vector<16x64xf32>
      %180 = arith.maximumf %178, %179 : vector<16x64xf32>
      %c0_89 = arith.constant 0 : index
      %c0_90 = arith.constant 0 : index
      %c0_91 = arith.constant 0 : index
      %181 = vector.load %arg15[%c0_89, %c0_90, %c0_91] : memref<1x64x32xbf16, #tpu.memory_space<vmem>>, vector<1x64x32xbf16>
      %182 = vector.shape_cast %181 : vector<1x64x32xbf16> to vector<64x32xbf16>
      %183 = arith.truncf %180 : vector<16x64xf32> to vector<16x64xbf16>
      %cst_92 = arith.constant dense<0.000000e+00> : vector<16x32xf32>
      %184 = tpu.matmul %183, %182, %cst_92 {dimension_numbers = #tpu.dot_dimension_numbers<[1], [0], [0], [1], [0, 0, 1, 1], [], []>} : vector<16x64xbf16>, vector<64x32xbf16>, vector<16x32xf32> -> vector<16x32xf32>
      %c0_93 = arith.constant 0 : index
      %c0_94 = arith.constant 0 : index
      %c0_95 = arith.constant 0 : index
      %185 = vector.load %arg16[%c0_93, %c0_94, %c0_95] : memref<1x1x32xf32, #tpu.memory_space<vmem>>, vector<1x1x32xf32>
      %186 = vector.shape_cast %185 : vector<1x1x32xf32> to vector<1x32xf32>
      %187 = vector.broadcast %186 : vector<1x32xf32> to vector<16x32xf32>
      %188 = arith.addf %184, %187 : vector<16x32xf32>
      %189 = arith.addf %170, %188 : vector<16x32xf32>
      %c0_96 = arith.constant 0 : index
      %c0_97 = arith.constant 0 : index
      %c0_98 = arith.constant 0 : index
      %190 = vector.load %arg21[%c0_96, %c0_97, %c0_98] : memref<1x1x32xf32, #tpu.memory_space<vmem>>, vector<1x1x32xf32>
      %191 = vector.shape_cast %190 : vector<1x1x32xf32> to vector<1x32xf32>
      %c0_99 = arith.constant 0 : index
      %c0_100 = arith.constant 0 : index
      %c0_101 = arith.constant 0 : index
      %192 = vector.load %arg22[%c0_99, %c0_100, %c0_101] : memref<1x1x32xf32, #tpu.memory_space<vmem>>, vector<1x1x32xf32>
      %193 = vector.shape_cast %192 : vector<1x1x32xf32> to vector<1x32xf32>
      %cst_102 = arith.constant dense<0.000000e+00> : vector<16xf32>
      %194 = vector.multi_reduction <add>, %189, %cst_102 [1] : vector<16x32xf32> to vector<16xf32>
      %195 = vector.shape_cast %194 : vector<16xf32> to vector<16x1xf32>
      %cst_103 = arith.constant 3.200000e+01 : f32
      %196 = vector.broadcast %cst_103 : f32 to vector<16x1xf32>
      %197 = arith.divf %195, %196 : vector<16x1xf32>
      %198 = arith.mulf %189, %189 : vector<16x32xf32>
      %cst_104 = arith.constant dense<0.000000e+00> : vector<16xf32>
      %199 = vector.multi_reduction <add>, %198, %cst_104 [1] : vector<16x32xf32> to vector<16xf32>
      %200 = vector.shape_cast %199 : vector<16xf32> to vector<16x1xf32>
      %cst_105 = arith.constant 3.200000e+01 : f32
      %201 = vector.broadcast %cst_105 : f32 to vector<16x1xf32>
      %202 = arith.divf %200, %201 : vector<16x1xf32>
      %203 = arith.mulf %197, %197 : vector<16x1xf32>
      %204 = arith.subf %202, %203 : vector<16x1xf32>
      %cst_106 = arith.constant 0.000000e+00 : f32
      %205 = vector.broadcast %cst_106 : f32 to vector<16x1xf32>
      %206 = arith.maximumf %204, %205 : vector<16x1xf32>
      %207 = vector.broadcast %197 : vector<16x1xf32> to vector<16x32xf32>
      %208 = arith.subf %189, %207 : vector<16x32xf32>
      %cst_107 = arith.constant 9.99999974E-6 : f32
      %209 = vector.broadcast %cst_107 : f32 to vector<16x1xf32>
      %210 = arith.addf %206, %209 : vector<16x1xf32>
      %211 = math.rsqrt %210 : vector<16x1xf32>
      %212 = vector.broadcast %211 : vector<16x1xf32> to vector<16x32xf32>
      %213 = arith.mulf %208, %212 : vector<16x32xf32>
      %214 = vector.broadcast %191 : vector<1x32xf32> to vector<16x32xf32>
      %215 = arith.mulf %213, %214 : vector<16x32xf32>
      %216 = vector.broadcast %193 : vector<1x32xf32> to vector<16x32xf32>
      %217 = arith.addf %215, %216 : vector<16x32xf32>
      %c0_108 = arith.constant 0 : index
      %c0_109 = arith.constant 0 : index
      %218 = vector.load %arg27[%c0_108, %c0_109] : memref<16x32xf32, #tpu.memory_space<vmem>>, vector<16x32xf32>
      tpu.vector_store %arg27[%c0_108, %c0_109], %217 {strides = array<i32>} : memref<16x32xf32, #tpu.memory_space<vmem>>, vector<16x32xf32>,
    } else {
    }
    %c2_i32_2 = arith.constant 2 : i32
    %6 = arith.cmpi sge, %arg0, %c2_i32_2 : i32
    %7 = arith.extui %6 : i1 to i32
    %c0_i32_3 = arith.constant 0 : i32
    %8 = arith.cmpi ne, %7, %c0_i32_3 : i32
    scf.if %8 {
      %c0 = arith.constant 0 : index
      %c0_4 = arith.constant 0 : index
      %9 = vector.load %arg27[%c0, %c0_4] : memref<16x32xf32, #tpu.memory_space<vmem>>, vector<16x32xf32>
      %c0_5 = arith.constant 0 : index
      %c0_6 = arith.constant 0 : index
      %10 = vector.load %arg23[%c0_5, %c0_6] : memref<32x128xbf16, #tpu.memory_space<vmem>>, vector<32x128xbf16>
      %11 = arith.truncf %9 : vector<16x32xf32> to vector<16x32xbf16>
      %cst = arith.constant dense<0.000000e+00> : vector<16x128xf32>
      %12 = tpu.matmul %11, %10, %cst {dimension_numbers = #tpu.dot_dimension_numbers<[1], [0], [0], [1], [0, 0, 1, 1], [], []>} : vector<16x32xbf16>, vector<32x128xbf16>, vector<16x128xf32> -> vector<16x128xf32>
      %c0_7 = arith.constant 0 : index
      %c0_8 = arith.constant 0 : index
      %13 = vector.load %arg24[%c0_7, %c0_8] : memref<1x128xf32, #tpu.memory_space<vmem>>, vector<1x128xf32>
      %14 = vector.broadcast %13 : vector<1x128xf32> to vector<16x128xf32>
      %15 = arith.addf %12, %14 : vector<16x128xf32>
      %c0_9 = arith.constant 0 : index
      %c0_10 = arith.constant 0 : index
      %16 = vector.load %arg25[%c0_9, %c0_10] : memref<16x128xf32, #tpu.memory_space<vmem>>, vector<16x128xf32>
      tpu.vector_store %arg25[%c0_9, %c0_10], %15 {strides = array<i32>} : memref<16x128xf32, #tpu.memory_space<vmem>>, vector<16x128xf32>,
    } else {
    }
    return
  }
  func.func @transform_0(%arg0: i32) -> (i32, i32) {
    %c0_i32 = arith.constant 0 : i32
    %c0_i32_0 = arith.constant 0 : i32
    %c0_i32_1 = arith.constant 0 : i32
    return %c0_i32, %c0_i32_0 : i32, i32
  }
  func.func @transform_1(%arg0: i32) -> (i32, i32) {
    %c0_i32 = arith.constant 0 : i32
    %c0_i32_0 = arith.constant 0 : i32
    %c0_i32_1 = arith.constant 0 : i32
    return %c0_i32, %c0_i32_0 : i32, i32
  }
  func.func @transform_2(%arg0: i32) -> (i32, i32) {
    %c0_i32 = arith.constant 0 : i32
    %c0_i32_0 = arith.constant 0 : i32
    %c0_i32_1 = arith.constant 0 : i32
    return %c0_i32, %c0_i32_0 : i32, i32
  }
  func.func @transform_3(%arg0: i32) -> (i32, i32, i32) {
    %c0_i32 = arith.constant 0 : i32
    %c0_i32_0 = arith.constant 0 : i32
    %c0_i32_1 = arith.constant 0 : i32
    %c0_i32_2 = arith.constant 0 : i32
    return %c0_i32, %c0_i32_0, %c0_i32_1 : i32, i32, i32
  }
  func.func @transform_4(%arg0: i32) -> (i32, i32, i32) {
    %c1_i32 = arith.constant 1 : i32
    %0 = arith.minsi %arg0, %c1_i32 : i32
    %c0_i32 = arith.constant 0 : i32
    %c0_i32_0 = arith.constant 0 : i32
    %c0_i32_1 = arith.constant 0 : i32
    return %0, %c0_i32, %c0_i32_0 : i32, i32, i32
  }
  func.func @transform_5(%arg0: i32) -> (i32, i32, i32) {
    %c1_i32 = arith.constant 1 : i32
    %0 = arith.minsi %arg0, %c1_i32 : i32
    %c0_i32 = arith.constant 0 : i32
    %c0_i32_0 = arith.constant 0 : i32
    %c0_i32_1 = arith.constant 0 : i32
    return %0, %c0_i32, %c0_i32_0 : i32, i32, i32
  }
  func.func @transform_6(%arg0: i32) -> (i32, i32, i32) {
    %c1_i32 = arith.constant 1 : i32
    %0 = arith.minsi %arg0, %c1_i32 : i32
    %c0_i32 = arith.constant 0 : i32
    %c0_i32_0 = arith.constant 0 : i32
    %c0_i32_1 = arith.constant 0 : i32
    return %0, %c0_i32, %c0_i32_0 : i32, i32, i32
  }
  func.func @transform_7(%arg0: i32) -> (i32, i32, i32) {
    %c1_i32 = arith.constant 1 : i32
    %0 = arith.minsi %arg0, %c1_i32 : i32
    %c0_i32 = arith.constant 0 : i32
    %c0_i32_0 = arith.constant 0 : i32
    %c0_i32_1 = arith.constant 0 : i32
    return %0, %c0_i32, %c0_i32_0 : i32, i32, i32
  }
  func.func @transform_8(%arg0: i32) -> (i32, i32, i32) {
    %c1_i32 = arith.constant 1 : i32
    %0 = arith.minsi %arg0, %c1_i32 : i32
    %c0_i32 = arith.constant 0 : i32
    %c0_i32_0 = arith.constant 0 : i32
    %c0_i32_1 = arith.constant 0 : i32
    return %0, %c0_i32, %c0_i32_0 : i32, i32, i32
  }
  func.func @transform_9(%arg0: i32) -> (i32, i32, i32) {
    %c1_i32 = arith.constant 1 : i32
    %0 = arith.minsi %arg0, %c1_i32 : i32
    %c0_i32 = arith.constant 0 : i32
    %c0_i32_0 = arith.constant 0 : i32
    %c0_i32_1 = arith.constant 0 : i32
    return %0, %c0_i32, %c0_i32_0 : i32, i32, i32
  }
  func.func @transform_10(%arg0: i32) -> (i32, i32, i32) {
    %c1_i32 = arith.constant 1 : i32
    %0 = arith.minsi %arg0, %c1_i32 : i32
    %c0_i32 = arith.constant 0 : i32
    %c0_i32_0 = arith.constant 0 : i32
    %c0_i32_1 = arith.constant 0 : i32
    return %0, %c0_i32, %c0_i32_0 : i32, i32, i32
  }
  func.func @transform_11(%arg0: i32) -> (i32, i32, i32) {
    %c1_i32 = arith.constant 1 : i32
    %0 = arith.minsi %arg0, %c1_i32 : i32
    %c0_i32 = arith.constant 0 : i32
    %c0_i32_0 = arith.constant 0 : i32
    %c0_i32_1 = arith.constant 0 : i32
    return %0, %c0_i32, %c0_i32_0 : i32, i32, i32
  }
  func.func @transform_12(%arg0: i32) -> (i32, i32, i32) {
    %c1_i32 = arith.constant 1 : i32
    %0 = arith.minsi %arg0, %c1_i32 : i32
    %c0_i32 = arith.constant 0 : i32
    %c0_i32_0 = arith.constant 0 : i32
    %c0_i32_1 = arith.constant 0 : i32
    return %0, %c0_i32, %c0_i32_0 : i32, i32, i32
  }
  func.func @transform_13(%arg0: i32) -> (i32, i32, i32) {
    %c1_i32 = arith.constant 1 : i32
    %0 = arith.minsi %arg0, %c1_i32 : i32
    %c0_i32 = arith.constant 0 : i32
    %c0_i32_0 = arith.constant 0 : i32
    %c0_i32_1 = arith.constant 0 : i32
    return %0, %c0_i32, %c0_i32_0 : i32, i32, i32
  }
  func.func @transform_14(%arg0: i32) -> (i32, i32, i32) {
    %c1_i32 = arith.constant 1 : i32
    %0 = arith.minsi %arg0, %c1_i32 : i32
    %c0_i32 = arith.constant 0 : i32
    %c0_i32_0 = arith.constant 0 : i32
    %c0_i32_1 = arith.constant 0 : i32
    return %0, %c0_i32, %c0_i32_0 : i32, i32, i32
  }
  func.func @transform_15(%arg0: i32) -> (i32, i32, i32) {
    %c1_i32 = arith.constant 1 : i32
    %0 = arith.minsi %arg0, %c1_i32 : i32
    %c0_i32 = arith.constant 0 : i32
    %c0_i32_0 = arith.constant 0 : i32
    %c0_i32_1 = arith.constant 0 : i32
    return %0, %c0_i32, %c0_i32_0 : i32, i32, i32
  }
  func.func @transform_16(%arg0: i32) -> (i32, i32, i32) {
    %c1_i32 = arith.constant 1 : i32
    %0 = arith.minsi %arg0, %c1_i32 : i32
    %c0_i32 = arith.constant 0 : i32
    %c0_i32_0 = arith.constant 0 : i32
    %c0_i32_1 = arith.constant 0 : i32
    return %0, %c0_i32, %c0_i32_0 : i32, i32, i32
  }
  func.func @transform_17(%arg0: i32) -> (i32, i32, i32) {
    %c1_i32 = arith.constant 1 : i32
    %0 = arith.minsi %arg0, %c1_i32 : i32
    %c0_i32 = arith.constant 0 : i32
    %c0_i32_0 = arith.constant 0 : i32
    %c0_i32_1 = arith.constant 0 : i32
    return %0, %c0_i32, %c0_i32_0 : i32, i32, i32
  }
  func.func @transform_18(%arg0: i32) -> (i32, i32, i32) {
    %c1_i32 = arith.constant 1 : i32
    %0 = arith.minsi %arg0, %c1_i32 : i32
    %c0_i32 = arith.constant 0 : i32
    %c0_i32_0 = arith.constant 0 : i32
    %c0_i32_1 = arith.constant 0 : i32
    return %0, %c0_i32, %c0_i32_0 : i32, i32, i32
  }
  func.func @transform_19(%arg0: i32) -> (i32, i32, i32) {
    %c1_i32 = arith.constant 1 : i32
    %0 = arith.minsi %arg0, %c1_i32 : i32
    %c0_i32 = arith.constant 0 : i32
    %c0_i32_0 = arith.constant 0 : i32
    %c0_i32_1 = arith.constant 0 : i32
    return %0, %c0_i32, %c0_i32_0 : i32, i32, i32
  }
  func.func @transform_20(%arg0: i32) -> (i32, i32, i32) {
    %c1_i32 = arith.constant 1 : i32
    %0 = arith.minsi %arg0, %c1_i32 : i32
    %c0_i32 = arith.constant 0 : i32
    %c0_i32_0 = arith.constant 0 : i32
    %c0_i32_1 = arith.constant 0 : i32
    return %0, %c0_i32, %c0_i32_0 : i32, i32, i32
  }
  func.func @transform_21(%arg0: i32) -> (i32, i32, i32) {
    %c1_i32 = arith.constant 1 : i32
    %0 = arith.minsi %arg0, %c1_i32 : i32
    %c0_i32 = arith.constant 0 : i32
    %c0_i32_0 = arith.constant 0 : i32
    %c0_i32_1 = arith.constant 0 : i32
    return %0, %c0_i32, %c0_i32_0 : i32, i32, i32
  }
  func.func @transform_22(%arg0: i32) -> (i32, i32) {
    %c2_i32 = arith.constant 2 : i32
    %0 = arith.subi %arg0, %c2_i32 : i32
    %c0_i32 = arith.constant 0 : i32
    %1 = arith.maxsi %0, %c0_i32 : i32
    %c0_i32_0 = arith.constant 0 : i32
    %c0_i32_1 = arith.constant 0 : i32
    return %c0_i32_0, %1 : i32, i32
  }
  func.func @transform_23(%arg0: i32) -> (i32, i32) {
    %c2_i32 = arith.constant 2 : i32
    %0 = arith.subi %arg0, %c2_i32 : i32
    %c0_i32 = arith.constant 0 : i32
    %1 = arith.maxsi %0, %c0_i32 : i32
    %c0_i32_0 = arith.constant 0 : i32
    %c0_i32_1 = arith.constant 0 : i32
    return %c0_i32_0, %1 : i32, i32
  }
  func.func @transform_24(%arg0: i32) -> (i32, i32) {
    %c2_i32 = arith.constant 2 : i32
    %0 = arith.subi %arg0, %c2_i32 : i32
    %c0_i32 = arith.constant 0 : i32
    %1 = arith.maxsi %0, %c0_i32 : i32
    %c0_i32_0 = arith.constant 0 : i32
    %c0_i32_1 = arith.constant 0 : i32
    return %c0_i32_0, %1 : i32, i32
  }
  func.func @transform_25(%arg0: i32) -> (i32, i32, i32, i32) {
    %c1_i32 = arith.constant 1 : i32
    %0 = arith.minsi %arg0, %c1_i32 : i32
    %c0_i32 = arith.constant 0 : i32
    %c0_i32_0 = arith.constant 0 : i32
    %c0_i32_1 = arith.constant 0 : i32
    %c0_i32_2 = arith.constant 0 : i32
    return %0, %c0_i32, %c0_i32_0, %c0_i32_1 : i32, i32, i32, i32
  }
}

</mosaic_0001>

<llo_original>
// kernel: tpu_custom_call.1
$region0: #{tpu_custom_call.1}
  #allocation0 [shape = 'u32[]', space=smem, size = 0x4, offset = 0x4, fixed_abs, tag = 'smem constant byte address 0x4 - core index']
  #allocation1 [shape = 'u32[72,128]{1,0:T(1,128)}', space=vmem, size = 0x9000, scoped, tag = 'internal scratch']
  #allocation2 [shape = 'f32[16,32]{1,0:T(8,128)}', space=vmem, size = 0x2000, scoped, tag = 'scratch operand']
  %s0 = inlined_call_operand.hbm [shape: f32[16,32], index: 0, kind: input, shape index: {}]
  %s1 = inlined_call_operand.hbm [shape: bf16[16,32], index: 1, kind: input, shape index: {}]
  %s2 = inlined_call_operand.hbm [shape: f32[8,8], index: 2, kind: input, shape index: {}]
  %s3 = inlined_call_operand.hbm [shape: f32[8,1,8], index: 3, kind: input, shape index: {}]
  %s4 = inlined_call_operand.vmem [shape: bf16[2,32,32], index: 4, kind: input, shape index: {}]
  %s5 = inlined_call_operand.vmem [shape: bf16[2,32,32], index: 5, kind: input, shape index: {}]
  %s6 = inlined_call_operand.vmem [shape: bf16[2,32,32], index: 6, kind: input, shape index: {}]
  %s7 = inlined_call_operand.hbm [shape: bf16[2,32,32], index: 7, kind: input, shape index: {}]
  %s8 = inlined_call_operand.hbm [shape: bf16[2,32,32], index: 8, kind: input, shape index: {}]
  %s9 = inlined_call_operand.hbm [shape: bf16[2,32,32], index: 9, kind: input, shape index: {}]
  %s10 = inlined_call_operand.hbm [shape: bf16[2,32,32], index: 10, kind: input, shape index: {}]
  %s11 = inlined_call_operand.hbm [shape: bf16[2,32,32], index: 11, kind: input, shape index: {}]
  %s12 = inlined_call_operand.hbm [shape: bf16[2,32,64], index: 12, kind: input, shape index: {}]
  %s13 = inlined_call_operand.hbm [shape: f32[2,1,64], index: 13, kind: input, shape index: {}]
  %s14 = inlined_call_operand.vmem [shape: bf16[2,64,32], index: 14, kind: input, shape index: {}]
  %s15 = inlined_call_operand.hbm [shape: f32[2,1,32], index: 15, kind: input, shape index: {}]
  %s16 = inlined_call_operand.hbm [shape: f32[2,1,32], index: 16, kind: input, shape index: {}]
  %s17 = inlined_call_operand.hbm [shape: f32[2,1,32], index: 17, kind: input, shape index: {}]
  %s18 = inlined_call_operand.hbm [shape: f32[2,1,32], index: 18, kind: input, shape index: {}]
  %s19 = inlined_call_operand.hbm [shape: f32[2,1,32], index: 19, kind: input, shape index: {}]
  %s20 = inlined_call_operand.vmem [shape: f32[2,1,32], index: 20, kind: input, shape index: {}]
  %s21 = inlined_call_operand.hbm [shape: f32[2,1,32], index: 21, kind: input, shape index: {}]
  %s22 = inlined_call_operand.vmem [shape: bf16[32,128], index: 22, kind: input, shape index: {}]
  %s23 = inlined_call_operand.vmem [shape: f32[1,128], index: 23, kind: input, shape index: {}]
  %s24 = inlined_call_operand.hbm [shape: f32[16,128], index: 24, kind: output, shape index: {0}]
  %s25 = inlined_call_operand.hbm [shape: bf16[2,2,8,32], index: 25, kind: output, shape index: {1}]
  %26 = xla_tuple %s24, %s25
  %s27 = sld [smem:[#allocation0]]
  $region217: #{tpu_custom_call.1} parent=0
    _
  %s29 = ssub.s32 1, %s27
  %s30 = scalar_select 0, %s29, %s27
  $region1: #{tpu_custom_call.1} parent=0
    #allocation3 [shape = 'u8[8192]{0}', space=vmem, size = 0x2000, scoped, tag = 'input window, operand 0, single buffered']
    #allocation4 [shape = 's32[2]{0}', space=sflag, size = 0x8, scoped, tag = 'scoped memory for tpu_custom_call.1']
    #allocation5 [shape = 's32[2]{0}', space=sflag, size = 0x8, scoped, tag = 'scoped memory for tpu_custom_call.1']
    #allocation6 [shape = 'u8[4096]{0}', space=vmem, size = 0x1000, scoped, tag = 'input window, operand 1, single buffered']
    #allocation7 [shape = 's32[1]{0}', space=sflag, size = 0x4, scoped, tag = 'scoped memory for tpu_custom_call.1']
    #allocation8 [shape = 'u8[4096]{0}', space=vmem, size = 0x1000, scoped, tag = 'input window, operand 2, single buffered']
    #allocation9 [shape = 'u8[4096]{0}', space=vmem, size = 0x1000, scoped, tag = 'input window, operand 3, single buffered']
    #allocation10 [shape = 's32[1]{0}', space=sflag, size = 0x4, scoped, tag = 'scoped memory for tpu_custom_call.1']
    #allocation11 [shape = 'u8[16384]{0}', space=vmem, size = 0x4000, scoped, tag = 'input window, operand 7']
    #allocation12 [shape = 'u8[16384]{0}', space=vmem, size = 0x4000, scoped, tag = 'input window, operand 8']
    #allocation13 [shape = 'u8[16384]{0}', space=vmem, size = 0x4000, scoped, tag = 'input window, operand 9']
    #allocation14 [shape = 'u8[16384]{0}', space=vmem, size = 0x4000, scoped, tag = 'input window, operand 10']
    #allocation15 [shape = 'u8[16384]{0}', space=vmem, size = 0x4000, scoped, tag = 'input window, operand 11']
    #allocation16 [shape = 'u8[16384]{0}', space=vmem, size = 0x4000, scoped, tag = 'input window, operand 12']
    #allocation17 [shape = 'u8[1024]{0}', space=vmem, size = 0x400, scoped, tag = 'input window, operand 13']
    #allocation18 [shape = 'u8[1024]{0}', space=vmem, size = 0x400, scoped, tag = 'input window, operand 15']
    #allocation19 [shape = 'u8[1024]{0}', space=vmem, size = 0x400, scoped, tag = 'input window, operand 16']
    #allocation20 [shape = 'u8[1024]{0}', space=vmem, size = 0x400, scoped, tag = 'input window, operand 17']
    #allocation21 [shape = 'u8[1024]{0}', space=vmem, size = 0x400, scoped, tag = 'input window, operand 18']
    #allocation22 [shape = 'u8[1024]{0}', space=vmem, size = 0x400, scoped, tag = 'input window, operand 19']
    #allocation23 [shape = 'u8[1024]{0}', space=vmem, size = 0x400, scoped, tag = 'input window, operand 21']
    #allocation24 [shape = 'u8[16384]{0}', space=vmem, size = 0x4000, scoped, tag = 'output window, operand 0']
    #allocation25 [shape = 'u8[8192]{0}', space=vmem, size = 0x2000, scoped, tag = 'output window, operand 1']
    #allocation26 [shape = 's32[2]{0}', space=sflag, size = 0x8, scoped, tag = 'scoped memory for tpu_custom_call.1']
    %31 = vsyncpa [#allocation4], 0
    %32 = vsyncpa [#allocation7], 0
    %33 = vsyncpa [#allocation10], 0
    %34 = vsyncpa [#allocation5], 0
    %s35 = scalar_lea.sflag [#allocation5], 1
    %36 = vsyncpa %s35, 0
    %37 = vsyncpa [#allocation26], 0
    %s38 = scalar_lea.sflag [#allocation26], 1
    %39 = vsyncpa %s38, 0
    loop: start=0, step=1, limit=5
    $region2: #{tpu_custom_call.1} parent=1 // loop_pre_header
      _
    $region3: #{tpu_custom_call.1} parent=1 // loop_header
      %s41 = sphi 0, %s45
      %p42 = scmp.ge.s32.totalorder %s41, 5
      %s49 = sphi 0, %s49
      %s51 = sphi 0, %s49
      %s52 = sphi 0, %s51
      %s66 = sphi 0, %s52
      %s70 = sphi 0, %s70
      %s72 = sphi 0, %s70
      %s73 = sphi 0, %s72
      %s87 = sphi 0, %s73
      %s91 = sphi 0, %s91
      %s93 = sphi 0, %s91
      %s94 = sphi 0, %s93
      %s108 = sphi 0, %s94
      %s112 = sphi 0, %s112
      %s114 = sphi 0, %s112
      %s115 = sphi 0, %s114
      %s129 = sphi 0, %s115
      %s139 = sphi 0, %s141
      %s142 = sphi 0, %s139
      %s143 = sphi 0, %s142
      %s159 = sphi 0, %s143
      %s169 = sphi 0, %s171
      %s172 = sphi 0, %s169
      %s173 = sphi 0, %s172
      %s189 = sphi 0, %s173
      %s199 = sphi 0, %s201
      %s202 = sphi 0, %s199
      %s203 = sphi 0, %s202
      %s219 = sphi 0, %s203
      %s229 = sphi 0, %s231
      %s232 = sphi 0, %s229
      %s233 = sphi 0, %s232
      %s249 = sphi 0, %s233
      %s259 = sphi 0, %s261
      %s262 = sphi 0, %s259
      %s263 = sphi 0, %s262
      %s279 = sphi 0, %s263
      %s289 = sphi 0, %s291
      %s292 = sphi 0, %s289
      %s293 = sphi 0, %s292
      %s309 = sphi 0, %s293
      %s319 = sphi 0, %s321
      %s322 = sphi 0, %s319
      %s323 = sphi 0, %s322
      %s339 = sphi 0, %s323
      %s349 = sphi 0, %s351
      %s352 = sphi 0, %s349
      %s353 = sphi 0, %s352
      %s369 = sphi 0, %s353
      %s379 = sphi 0, %s381
      %s382 = sphi 0, %s379
      %s383 = sphi 0, %s382
      %s399 = sphi 0, %s383
      %s409 = sphi 0, %s411
      %s412 = sphi 0, %s409
      %s413 = sphi 0, %s412
      %s429 = sphi 0, %s413
      %s439 = sphi 0, %s441
      %s442 = sphi 0, %s439
      %s443 = sphi 0, %s442
      %s459 = sphi 0, %s443
      %s469 = sphi 0, %s471
      %s472 = sphi 0, %s469
      %s473 = sphi 0, %s472
      %s489 = sphi 0, %s473
      %s499 = sphi 0, %s501
      %s502 = sphi 0, %s499
      %s503 = sphi 0, %s502
      %s519 = sphi 0, %s503
      %s529 = sphi 0, %s531
      %s532 = sphi 0, %s529
      %s533 = sphi 0, %s532
      %s549 = sphi 0, %s533
      %s559 = sphi 0, %s561
      %s562 = sphi 0, %s559
      %s563 = sphi 0, %s562
      %s579 = sphi 0, %s563
      %s589 = sphi 0, %s591
      %s592 = sphi 0, %s589
      %s593 = sphi 0, %s592
      %s609 = sphi 0, %s593
      %s619 = sphi 0, %s621
      %s622 = sphi 0, %s619
      %s623 = sphi 0, %s622
      %s639 = sphi 0, %s623
      %s649 = sphi 0, %s651
      %s652 = sphi 0, %s649
      %s653 = sphi 0, %s652
      %s669 = sphi 0, %s653
      %s681 = sphi 0, %s683
      %s684 = sphi 0, %s681
      %s685 = sphi 0, %s684
      %s701 = sphi 0, %s685
      %s713 = sphi 0, %s715
      %s716 = sphi 0, %s713
      %s717 = sphi 0, %s716
      %s733 = sphi 0, %s717
      %s745 = sphi 0, %s747
      %s748 = sphi 0, %s745
      %s749 = sphi 0, %s748
      %s765 = sphi 0, %s749
      %s775 = sphi 0, %s777
      %s778 = sphi 0, %s775
      %s779 = sphi 0, %s778
      %s795 = sphi 0, %s779
    $region4: #{tpu_custom_call.1} parent=1 // loop_header_branch
      %44 = sbr.rel (%p42) target = $region8
    $region5: #{tpu_custom_call.1} parent=1 // loop_body
      %s46 = ssub.s32 %s41, 1
      %s47 = ssub.s32 %s41, 2
      %s48 = sadd.s32 %s41, 1
      %s50 = sadd.s32 %s49, 1
      %p53 = scmp.eq.s32.totalorder %s41, 2
      %p54 = scmp.ne.s32.totalorder %s49, %s51
      %p55 = scmp.eq.s32.totalorder %s41, 0
      %p56 = por %p54, %p55
      %p57 = scmp.ne.s32.totalorder %s49, %s51
      %p58 = scmp.eq.s32.totalorder %s46, 2
      %p59 = por %p57, %p58
      %p60 = scmp.ne.s32.totalorder %s51, %s52
      %p61 = scmp.eq.s32.totalorder %s46, 0
      %p62 = por %p60, %p61
      %p63 = scmp.ne.s32.totalorder %s51, %s52
      %p64 = scmp.eq.s32.totalorder %s47, 2
      %p65 = por %p63, %p64
      %p67 = scmp.ne.s32.totalorder %s52, %s66
      %p68 = scmp.eq.s32.totalorder %s47, 0
      %p69 = por %p67, %p68
      %s71 = sadd.s32 %s70, 1
      %p74 = scmp.eq.s32.totalorder %s41, 2
      %p75 = scmp.ne.s32.totalorder %s70, %s72
      %p76 = scmp.eq.s32.totalorder %s41, 0
      %p77 = por %p75, %p76
      %p78 = scmp.ne.s32.totalorder %s70, %s72
      %p79 = scmp.eq.s32.totalorder %s46, 2
      %p80 = por %p78, %p79
      %p81 = scmp.ne.s32.totalorder %s72, %s73
      %p82 = scmp.eq.s32.totalorder %s46, 0
      %p83 = por %p81, %p82
      %p84 = scmp.ne.s32.totalorder %s72, %s73
      %p85 = scmp.eq.s32.totalorder %s47, 2
      %p86 = por %p84, %p85
      %p88 = scmp.ne.s32.totalorder %s73, %s87
      %p89 = scmp.eq.s32.totalorder %s47, 0
      %p90 = por %p88, %p89
      %s92 = sadd.s32 %s91, 1
      %p95 = scmp.eq.s32.totalorder %s41, 2
      %p96 = scmp.ne.s32.totalorder %s91, %s93
      %p97 = scmp.eq.s32.totalorder %s41, 0
      %p98 = por %p96, %p97
      %p99 = scmp.ne.s32.totalorder %s91, %s93
      %p100 = scmp.eq.s32.totalorder %s46, 2
      %p101 = por %p99, %p100
      %p102 = scmp.ne.s32.totalorder %s93, %s94
      %p103 = scmp.eq.s32.totalorder %s46, 0
      %p104 = por %p102, %p103
      %p105 = scmp.ne.s32.totalorder %s93, %s94
      %p106 = scmp.eq.s32.totalorder %s47, 2
      %p107 = por %p105, %p106
      %p109 = scmp.ne.s32.totalorder %s94, %s108
      %p110 = scmp.eq.s32.totalorder %s47, 0
      %p111 = por %p109, %p110
      %s113 = sadd.s32 %s112, 1
      %p116 = scmp.eq.s32.totalorder %s41, 2
      %p117 = scmp.ne.s32.totalorder %s112, %s114
      %p118 = scmp.eq.s32.totalorder %s41, 0
      %p119 = por %p117, %p118
      %p120 = scmp.ne.s32.totalorder %s112, %s114
      %p121 = scmp.eq.s32.totalorder %s46, 2
      %p122 = por %p120, %p121
      %p123 = scmp.ne.s32.totalorder %s114, %s115
      %p124 = scmp.eq.s32.totalorder %s46, 0
      %p125 = por %p123, %p124
      %p126 = scmp.ne.s32.totalorder %s114, %s115
      %p127 = scmp.eq.s32.totalorder %s47, 2
      %p128 = por %p126, %p127
      %p130 = scmp.ne.s32.totalorder %s115, %s129
      %p131 = scmp.eq.s32.totalorder %s47, 0
      %p132 = por %p130, %p131
      %p133 = scmp.lt.s32.totalorder %s41, 1
      %s134 = scalar_select %p133, %s41, 1
      %p135 = scmp.lt.s32.totalorder %s48, 1
      %s136 = scalar_select %p135, %s48, 1
      %s137 = ssub.s32 %s134, %s136
      %p138 = scmp.eq.s32.totalorder %s137, 0
      %s140 = sadd.s32 %s139, 1
      %s141 = scalar_select %p138, %s139, %s140
      %p144 = pneg %p138
      %p145 = scmp.eq.s32.totalorder %s41, 2
      %p146 = por %p144, %p145
      %p147 = scmp.ne.s32.totalorder %s139, %s142
      %p148 = scmp.eq.s32.totalorder %s41, 0
      %p149 = por %p147, %p148
      %p150 = scmp.ne.s32.totalorder %s139, %s142
      %p151 = scmp.eq.s32.totalorder %s46, 2
      %p152 = por %p150, %p151
      %p153 = scmp.ne.s32.totalorder %s142, %s143
      %p154 = scmp.eq.s32.totalorder %s46, 0
      %p155 = por %p153, %p154
      %p156 = scmp.ne.s32.totalorder %s142, %s143
      %p157 = scmp.eq.s32.totalorder %s47, 2
      %p158 = por %p156, %p157
      %p160 = scmp.ne.s32.totalorder %s143, %s159
      %p161 = scmp.eq.s32.totalorder %s47, 0
      %p162 = por %p160, %p161
      %p163 = scmp.lt.s32.totalorder %s41, 1
      %s164 = scalar_select %p163, %s41, 1
      %p165 = scmp.lt.s32.totalorder %s48, 1
      %s166 = scalar_select %p165, %s48, 1
      %s167 = ssub.s32 %s164, %s166
      %p168 = scmp.eq.s32.totalorder %s167, 0
      %s170 = sadd.s32 %s169, 1
      %s171 = scalar_select %p168, %s169, %s170
      %p174 = pneg %p168
      %p175 = scmp.eq.s32.totalorder %s41, 2
      %p176 = por %p174, %p175
      %p177 = scmp.ne.s32.totalorder %s169, %s172
      %p178 = scmp.eq.s32.totalorder %s41, 0
      %p179 = por %p177, %p178
      %p180 = scmp.ne.s32.totalorder %s169, %s172
      %p181 = scmp.eq.s32.totalorder %s46, 2
      %p182 = por %p180, %p181
      %p183 = scmp.ne.s32.totalorder %s172, %s173
      %p184 = scmp.eq.s32.totalorder %s46, 0
      %p185 = por %p183, %p184
      %p186 = scmp.ne.s32.totalorder %s172, %s173
      %p187 = scmp.eq.s32.totalorder %s47, 2
      %p188 = por %p186, %p187
      %p190 = scmp.ne.s32.totalorder %s173, %s189
      %p191 = scmp.eq.s32.totalorder %s47, 0
      %p192 = por %p190, %p191
      %p193 = scmp.lt.s32.totalorder %s41, 1
      %s194 = scalar_select %p193, %s41, 1
      %p195 = scmp.lt.s32.totalorder %s48, 1
      %s196 = scalar_select %p195, %s48, 1
      %s197 = ssub.s32 %s194, %s196
      %p198 = scmp.eq.s32.totalorder %s197, 0
      %s200 = sadd.s32 %s199, 1
      %s201 = scalar_select %p198, %s199, %s200
      %p204 = pneg %p198
      %p205 = scmp.eq.s32.totalorder %s41, 2
      %p206 = por %p204, %p205
      %p207 = scmp.ne.s32.totalorder %s199, %s202
      %p208 = scmp.eq.s32.totalorder %s41, 0
      %p209 = por %p207, %p208
      %p210 = scmp.ne.s32.totalorder %s199, %s202
      %p211 = scmp.eq.s32.totalorder %s46, 2
      %p212 = por %p210, %p211
      %p213 = scmp.ne.s32.totalorder %s202, %s203
      %p214 = scmp.eq.s32.totalorder %s46, 0
      %p215 = por %p213, %p214
      %p216 = scmp.ne.s32.totalorder %s202, %s203
      %p217 = scmp.eq.s32.totalorder %s47, 2
      %p218 = por %p216, %p217
      %p220 = scmp.ne.s32.totalorder %s203, %s219
      %p221 = scmp.eq.s32.totalorder %s47, 0
      %p222 = por %p220, %p221
      %p223 = scmp.lt.s32.totalorder %s41, 1
      %s224 = scalar_select %p223, %s41, 1
      %p225 = scmp.lt.s32.totalorder %s48, 1
      %s226 = scalar_select %p225, %s48, 1
      %s227 = ssub.s32 %s224, %s226
      %p228 = scmp.eq.s32.totalorder %s227, 0
      %s230 = sadd.s32 %s229, 1
      %s231 = scalar_select %p228, %s229, %s230
      %p234 = pneg %p228
      %p235 = scmp.eq.s32.totalorder %s41, 2
      %p236 = por %p234, %p235
      %p237 = scmp.ne.s32.totalorder %s229, %s232
      %p238 = scmp.eq.s32.totalorder %s41, 0
      %p239 = por %p237, %p238
      %p240 = scmp.ne.s32.totalorder %s229, %s232
      %p241 = scmp.eq.s32.totalorder %s46, 2
      %p242 = por %p240, %p241
      %p243 = scmp.ne.s32.totalorder %s232, %s233
      %p244 = scmp.eq.s32.totalorder %s46, 0
      %p245 = por %p243, %p244
      %p246 = scmp.ne.s32.totalorder %s232, %s233
      %p247 = scmp.eq.s32.totalorder %s47, 2
      %p248 = por %p246, %p247
      %p250 = scmp.ne.s32.totalorder %s233, %s249
      %p251 = scmp.eq.s32.totalorder %s47, 0
      %p252 = por %p250, %p251
      %p253 = scmp.lt.s32.totalorder %s41, 1
      %s254 = scalar_select %p253, %s41, 1
      %p255 = scmp.lt.s32.totalorder %s48, 1
      %s256 = scalar_select %p255, %s48, 1
      %s257 = ssub.s32 %s254, %s256
      %p258 = scmp.eq.s32.totalorder %s257, 0
      %s260 = sadd.s32 %s259, 1
      %s261 = scalar_select %p258, %s259, %s260
      %p264 = pneg %p258
      %p265 = scmp.eq.s32.totalorder %s41, 2
      %p266 = por %p264, %p265
      %p267 = scmp.ne.s32.totalorder %s259, %s262
      %p268 = scmp.eq.s32.totalorder %s41, 0
      %p269 = por %p267, %p268
      %p270 = scmp.ne.s32.totalorder %s259, %s262
      %p271 = scmp.eq.s32.totalorder %s46, 2
      %p272 = por %p270, %p271
      %p273 = scmp.ne.s32.totalorder %s262, %s263
      %p274 = scmp.eq.s32.totalorder %s46, 0
      %p275 = por %p273, %p274
      %p276 = scmp.ne.s32.totalorder %s262, %s263
      %p277 = scmp.eq.s32.totalorder %s47, 2
      %p278 = por %p276, %p277
      %p280 = scmp.ne.s32.totalorder %s263, %s279
      %p281 = scmp.eq.s32.totalorder %s47, 0
      %p282 = por %p280, %p281
      %p283 = scmp.lt.s32.totalorder %s41, 1
      %s284 = scalar_select %p283, %s41, 1
      %p285 = scmp.lt.s32.totalorder %s48, 1
      %s286 = scalar_select %p285, %s48, 1
      %s287 = ssub.s32 %s284, %s286
      %p288 = scmp.eq.s32.totalorder %s287, 0
      %s290 = sadd.s32 %s289, 1
      %s291 = scalar_select %p288, %s289, %s290
      %p294 = pneg %p288
      %p295 = scmp.eq.s32.totalorder %s41, 2
      %p296 = por %p294, %p295
      %p297 = scmp.ne.s32.totalorder %s289, %s292
      %p298 = scmp.eq.s32.totalorder %s41, 0
      %p299 = por %p297, %p298
      %p300 = scmp.ne.s32.totalorder %s289, %s292
      %p301 = scmp.eq.s32.totalorder %s46, 2
      %p302 = por %p300, %p301
      %p303 = scmp.ne.s32.totalorder %s292, %s293
      %p304 = scmp.eq.s32.totalorder %s46, 0
      %p305 = por %p303, %p304
      %p306 = scmp.ne.s32.totalorder %s292, %s293
      %p307 = scmp.eq.s32.totalorder %s47, 2
      %p308 = por %p306, %p307
      %p310 = scmp.ne.s32.totalorder %s293, %s309
      %p311 = scmp.eq.s32.totalorder %s47, 0
      %p312 = por %p310, %p311
      %p313 = scmp.lt.s32.totalorder %s41, 1
      %s314 = scalar_select %p313, %s41, 1
      %p315 = scmp.lt.s32.totalorder %s48, 1
      %s316 = scalar_select %p315, %s48, 1
      %s317 = ssub.s32 %s314, %s316
      %p318 = scmp.eq.s32.totalorder %s317, 0
      %s320 = sadd.s32 %s319, 1
      %s321 = scalar_select %p318, %s319, %s320
      %p324 = pneg %p318
      %p325 = scmp.eq.s32.totalorder %s41, 2
      %p326 = por %p324, %p325
      %p327 = scmp.ne.s32.totalorder %s319, %s322
      %p328 = scmp.eq.s32.totalorder %s41, 0
      %p329 = por %p327, %p328
      %p330 = scmp.ne.s32.totalorder %s319, %s322
      %p331 = scmp.eq.s32.totalorder %s46, 2
      %p332 = por %p330, %p331
      %p333 = scmp.ne.s32.totalorder %s322, %s323
      %p334 = scmp.eq.s32.totalorder %s46, 0
      %p335 = por %p333, %p334
      %p336 = scmp.ne.s32.totalorder %s322, %s323
      %p337 = scmp.eq.s32.totalorder %s47, 2
      %p338 = por %p336, %p337
      %p340 = scmp.ne.s32.totalorder %s323, %s339
      %p341 = scmp.eq.s32.totalorder %s47, 0
      %p342 = por %p340, %p341
      %p343 = scmp.lt.s32.totalorder %s41, 1
      %s344 = scalar_select %p343, %s41, 1
      %p345 = scmp.lt.s32.totalorder %s48, 1
      %s346 = scalar_select %p345, %s48, 1
      %s347 = ssub.s32 %s344, %s346
      %p348 = scmp.eq.s32.totalorder %s347, 0
      %s350 = sadd.s32 %s349, 1
      %s351 = scalar_select %p348, %s349, %s350
      %p354 = pneg %p348
      %p355 = scmp.eq.s32.totalorder %s41, 2
      %p356 = por %p354, %p355
      %p357 = scmp.ne.s32.totalorder %s349, %s352
      %p358 = scmp.eq.s32.totalorder %s41, 0
      %p359 = por %p357, %p358
      %p360 = scmp.ne.s32.totalorder %s349, %s352
      %p361 = scmp.eq.s32.totalorder %s46, 2
      %p362 = por %p360, %p361
      %p363 = scmp.ne.s32.totalorder %s352, %s353
      %p364 = scmp.eq.s32.totalorder %s46, 0
      %p365 = por %p363, %p364
      %p366 = scmp.ne.s32.totalorder %s352, %s353
      %p367 = scmp.eq.s32.totalorder %s47, 2
      %p368 = por %p366, %p367
      %p370 = scmp.ne.s32.totalorder %s353, %s369
      %p371 = scmp.eq.s32.totalorder %s47, 0
      %p372 = por %p370, %p371
      %p373 = scmp.lt.s32.totalorder %s41, 1
      %s374 = scalar_select %p373, %s41, 1
      %p375 = scmp.lt.s32.totalorder %s48, 1
      %s376 = scalar_select %p375, %s48, 1
      %s377 = ssub.s32 %s374, %s376
      %p378 = scmp.eq.s32.totalorder %s377, 0
      %s380 = sadd.s32 %s379, 1
      %s381 = scalar_select %p378, %s379, %s380
      %p384 = pneg %p378
      %p385 = scmp.eq.s32.totalorder %s41, 2
      %p386 = por %p384, %p385
      %p387 = scmp.ne.s32.totalorder %s379, %s382
      %p388 = scmp.eq.s32.totalorder %s41, 0
      %p389 = por %p387, %p388
      %p390 = scmp.ne.s32.totalorder %s379, %s382
      %p391 = scmp.eq.s32.totalorder %s46, 2
      %p392 = por %p390, %p391
      %p393 = scmp.ne.s32.totalorder %s382, %s383
      %p394 = scmp.eq.s32.totalorder %s46, 0
      %p395 = por %p393, %p394
      %p396 = scmp.ne.s32.totalorder %s382, %s383
      %p397 = scmp.eq.s32.totalorder %s47, 2
      %p398 = por %p396, %p397
      %p400 = scmp.ne.s32.totalorder %s383, %s399
      %p401 = scmp.eq.s32.totalorder %s47, 0
      %p402 = por %p400, %p401
      %p403 = scmp.lt.s32.totalorder %s41, 1
      %s404 = scalar_select %p403, %s41, 1
      %p405 = scmp.lt.s32.totalorder %s48, 1
      %s406 = scalar_select %p405, %s48, 1
      %s407 = ssub.s32 %s404, %s406
      %p408 = scmp.eq.s32.totalorder %s407, 0
      %s410 = sadd.s32 %s409, 1
      %s411 = scalar_select %p408, %s409, %s410
      %p414 = pneg %p408
      %p415 = scmp.eq.s32.totalorder %s41, 2
      %p416 = por %p414, %p415
      %p417 = scmp.ne.s32.totalorder %s409, %s412
      %p418 = scmp.eq.s32.totalorder %s41, 0
      %p419 = por %p417, %p418
      %p420 = scmp.ne.s32.totalorder %s409, %s412
      %p421 = scmp.eq.s32.totalorder %s46, 2
      %p422 = por %p420, %p421
      %p423 = scmp.ne.s32.totalorder %s412, %s413
      %p424 = scmp.eq.s32.totalorder %s46, 0
      %p425 = por %p423, %p424
      %p426 = scmp.ne.s32.totalorder %s412, %s413
      %p427 = scmp.eq.s32.totalorder %s47, 2
      %p428 = por %p426, %p427
      %p430 = scmp.ne.s32.totalorder %s413, %s429
      %p431 = scmp.eq.s32.totalorder %s47, 0
      %p432 = por %p430, %p431
      %p433 = scmp.lt.s32.totalorder %s41, 1
      %s434 = scalar_select %p433, %s41, 1
      %p435 = scmp.lt.s32.totalorder %s48, 1
      %s436 = scalar_select %p435, %s48, 1
      %s437 = ssub.s32 %s434, %s436
      %p438 = scmp.eq.s32.totalorder %s437, 0
      %s440 = sadd.s32 %s439, 1
      %s441 = scalar_select %p438, %s439, %s440
      %p444 = pneg %p438
      %p445 = scmp.eq.s32.totalorder %s41, 2
      %p446 = por %p444, %p445
      %p447 = scmp.ne.s32.totalorder %s439, %s442
      %p448 = scmp.eq.s32.totalorder %s41, 0
      %p449 = por %p447, %p448
      %p450 = scmp.ne.s32.totalorder %s439, %s442
      %p451 = scmp.eq.s32.totalorder %s46, 2
      %p452 = por %p450, %p451
      %p453 = scmp.ne.s32.totalorder %s442, %s443
      %p454 = scmp.eq.s32.totalorder %s46, 0
      %p455 = por %p453, %p454
      %p456 = scmp.ne.s32.totalorder %s442, %s443
      %p457 = scmp.eq.s32.totalorder %s47, 2
      %p458 = por %p456, %p457
      %p460 = scmp.ne.s32.totalorder %s443, %s459
      %p461 = scmp.eq.s32.totalorder %s47, 0
      %p462 = por %p460, %p461
      %p463 = scmp.lt.s32.totalorder %s41, 1
      %s464 = scalar_select %p463, %s41, 1
      %p465 = scmp.lt.s32.totalorder %s48, 1
      %s466 = scalar_select %p465, %s48, 1
      %s467 = ssub.s32 %s464, %s466
      %p468 = scmp.eq.s32.totalorder %s467, 0
      %s470 = sadd.s32 %s469, 1
      %s471 = scalar_select %p468, %s469, %s470
      %p474 = pneg %p468
      %p475 = scmp.eq.s32.totalorder %s41, 2
      %p476 = por %p474, %p475
      %p477 = scmp.ne.s32.totalorder %s469, %s472
      %p478 = scmp.eq.s32.totalorder %s41, 0
      %p479 = por %p477, %p478
      %p480 = scmp.ne.s32.totalorder %s469, %s472
      %p481 = scmp.eq.s32.totalorder %s46, 2
      %p482 = por %p480, %p481
      %p483 = scmp.ne.s32.totalorder %s472, %s473
      %p484 = scmp.eq.s32.totalorder %s46, 0
      %p485 = por %p483, %p484
      %p486 = scmp.ne.s32.totalorder %s472, %s473
      %p487 = scmp.eq.s32.totalorder %s47, 2
      %p488 = por %p486, %p487
      %p490 = scmp.ne.s32.totalorder %s473, %s489
      %p491 = scmp.eq.s32.totalorder %s47, 0
      %p492 = por %p490, %p491
      %p493 = scmp.lt.s32.totalorder %s41, 1
      %s494 = scalar_select %p493, %s41, 1
      %p495 = scmp.lt.s32.totalorder %s48, 1
      %s496 = scalar_select %p495, %s48, 1
      %s497 = ssub.s32 %s494, %s496
      %p498 = scmp.eq.s32.totalorder %s497, 0
      %s500 = sadd.s32 %s499, 1
      %s501 = scalar_select %p498, %s499, %s500
      %p504 = pneg %p498
      %p505 = scmp.eq.s32.totalorder %s41, 2
      %p506 = por %p504, %p505
      %p507 = scmp.ne.s32.totalorder %s499, %s502
      %p508 = scmp.eq.s32.totalorder %s41, 0
      %p509 = por %p507, %p508
      %p510 = scmp.ne.s32.totalorder %s499, %s502
      %p511 = scmp.eq.s32.totalorder %s46, 2
      %p512 = por %p510, %p511
      %p513 = scmp.ne.s32.totalorder %s502, %s503
      %p514 = scmp.eq.s32.totalorder %s46, 0
      %p515 = por %p513, %p514
      %p516 = scmp.ne.s32.totalorder %s502, %s503
      %p517 = scmp.eq.s32.totalorder %s47, 2
      %p518 = por %p516, %p517
      %p520 = scmp.ne.s32.totalorder %s503, %s519
      %p521 = scmp.eq.s32.totalorder %s47, 0
      %p522 = por %p520, %p521
      %p523 = scmp.lt.s32.totalorder %s41, 1
      %s524 = scalar_select %p523, %s41, 1
      %p525 = scmp.lt.s32.totalorder %s48, 1
      %s526 = scalar_select %p525, %s48, 1
      %s527 = ssub.s32 %s524, %s526
      %p528 = scmp.eq.s32.totalorder %s527, 0
      %s530 = sadd.s32 %s529, 1
      %s531 = scalar_select %p528, %s529, %s530
      %p534 = pneg %p528
      %p535 = scmp.eq.s32.totalorder %s41, 2
      %p536 = por %p534, %p535
      %p537 = scmp.ne.s32.totalorder %s529, %s532
      %p538 = scmp.eq.s32.totalorder %s41, 0
      %p539 = por %p537, %p538
      %p540 = scmp.ne.s32.totalorder %s529, %s532
      %p541 = scmp.eq.s32.totalorder %s46, 2
      %p542 = por %p540, %p541
      %p543 = scmp.ne.s32.totalorder %s532, %s533
      %p544 = scmp.eq.s32.totalorder %s46, 0
      %p545 = por %p543, %p544
      %p546 = scmp.ne.s32.totalorder %s532, %s533
      %p547 = scmp.eq.s32.totalorder %s47, 2
      %p548 = por %p546, %p547
      %p550 = scmp.ne.s32.totalorder %s533, %s549
      %p551 = scmp.eq.s32.totalorder %s47, 0
      %p552 = por %p550, %p551
      %p553 = scmp.lt.s32.totalorder %s41, 1
      %s554 = scalar_select %p553, %s41, 1
      %p555 = scmp.lt.s32.totalorder %s48, 1
      %s556 = scalar_select %p555, %s48, 1
      %s557 = ssub.s32 %s554, %s556
      %p558 = scmp.eq.s32.totalorder %s557, 0
      %s560 = sadd.s32 %s559, 1
      %s561 = scalar_select %p558, %s559, %s560
      %p564 = pneg %p558
      %p565 = scmp.eq.s32.totalorder %s41, 2
      %p566 = por %p564, %p565
      %p567 = scmp.ne.s32.totalorder %s559, %s562
      %p568 = scmp.eq.s32.totalorder %s41, 0
      %p569 = por %p567, %p568
      %p570 = scmp.ne.s32.totalorder %s559, %s562
      %p571 = scmp.eq.s32.totalorder %s46, 2
      %p572 = por %p570, %p571
      %p573 = scmp.ne.s32.totalorder %s562, %s563
      %p574 = scmp.eq.s32.totalorder %s46, 0
      %p575 = por %p573, %p574
      %p576 = scmp.ne.s32.totalorder %s562, %s563
      %p577 = scmp.eq.s32.totalorder %s47, 2
      %p578 = por %p576, %p577
      %p580 = scmp.ne.s32.totalorder %s563, %s579
      %p581 = scmp.eq.s32.totalorder %s47, 0
      %p582 = por %p580, %p581
      %p583 = scmp.lt.s32.totalorder %s41, 1
      %s584 = scalar_select %p583, %s41, 1
      %p585 = scmp.lt.s32.totalorder %s48, 1
      %s586 = scalar_select %p585, %s48, 1
      %s587 = ssub.s32 %s584, %s586
      %p588 = scmp.eq.s32.totalorder %s587, 0
      %s590 = sadd.s32 %s589, 1
      %s591 = scalar_select %p588, %s589, %s590
      %p594 = pneg %p588
      %p595 = scmp.eq.s32.totalorder %s41, 2
      %p596 = por %p594, %p595
      %p597 = scmp.ne.s32.totalorder %s589, %s592
      %p598 = scmp.eq.s32.totalorder %s41, 0
      %p599 = por %p597, %p598
      %p600 = scmp.ne.s32.totalorder %s589, %s592
      %p601 = scmp.eq.s32.totalorder %s46, 2
      %p602 = por %p600, %p601
      %p603 = scmp.ne.s32.totalorder %s592, %s593
      %p604 = scmp.eq.s32.totalorder %s46, 0
      %p605 = por %p603, %p604
      %p606 = scmp.ne.s32.totalorder %s592, %s593
      %p607 = scmp.eq.s32.totalorder %s47, 2
      %p608 = por %p606, %p607
      %p610 = scmp.ne.s32.totalorder %s593, %s609
      %p611 = scmp.eq.s32.totalorder %s47, 0
      %p612 = por %p610, %p611
      %p613 = scmp.lt.s32.totalorder %s41, 1
      %s614 = scalar_select %p613, %s41, 1
      %p615 = scmp.lt.s32.totalorder %s48, 1
      %s616 = scalar_select %p615, %s48, 1
      %s617 = ssub.s32 %s614, %s616
      %p618 = scmp.eq.s32.totalorder %s617, 0
      %s620 = sadd.s32 %s619, 1
      %s621 = scalar_select %p618, %s619, %s620
      %p624 = pneg %p618
      %p625 = scmp.eq.s32.totalorder %s41, 2
      %p626 = por %p624, %p625
      %p627 = scmp.ne.s32.totalorder %s619, %s622
      %p628 = scmp.eq.s32.totalorder %s41, 0
      %p629 = por %p627, %p628
      %p630 = scmp.ne.s32.totalorder %s619, %s622
      %p631 = scmp.eq.s32.totalorder %s46, 2
      %p632 = por %p630, %p631
      %p633 = scmp.ne.s32.totalorder %s622, %s623
      %p634 = scmp.eq.s32.totalorder %s46, 0
      %p635 = por %p633, %p634
      %p636 = scmp.ne.s32.totalorder %s622, %s623
      %p637 = scmp.eq.s32.totalorder %s47, 2
      %p638 = por %p636, %p637
      %p640 = scmp.ne.s32.totalorder %s623, %s639
      %p641 = scmp.eq.s32.totalorder %s47, 0
      %p642 = por %p640, %p641
      %p643 = scmp.lt.s32.totalorder %s41, 1
      %s644 = scalar_select %p643, %s41, 1
      %p645 = scmp.lt.s32.totalorder %s48, 1
      %s646 = scalar_select %p645, %s48, 1
      %s647 = ssub.s32 %s644, %s646
      %p648 = scmp.eq.s32.totalorder %s647, 0
      %s650 = sadd.s32 %s649, 1
      %s651 = scalar_select %p648, %s649, %s650
      %p654 = pneg %p648
      %p655 = scmp.eq.s32.totalorder %s41, 2
      %p656 = por %p654, %p655
      %p657 = scmp.ne.s32.totalorder %s649, %s652
      %p658 = scmp.eq.s32.totalorder %s41, 0
      %p659 = por %p657, %p658
      %p660 = scmp.ne.s32.totalorder %s649, %s652
      %p661 = scmp.eq.s32.totalorder %s46, 2
      %p662 = por %p660, %p661
      %p663 = scmp.ne.s32.totalorder %s652, %s653
      %p664 = scmp.eq.s32.totalorder %s46, 0
      %p665 = por %p663, %p664
      %p666 = scmp.ne.s32.totalorder %s652, %s653
      %p667 = scmp.eq.s32.totalorder %s47, 2
      %p668 = por %p666, %p667
      %p670 = scmp.ne.s32.totalorder %s653, %s669
      %p671 = scmp.eq.s32.totalorder %s47, 0
      %p672 = por %p670, %p671
      %s673 = ssub.s32 %s41, 2
      %p674 = scmp.gt.s32.totalorder %s673, 0
      %s675 = scalar_select %p674, %s673, 0
      %s676 = ssub.s32 %s48, 2
      %p677 = scmp.gt.s32.totalorder %s676, 0
      %s678 = scalar_select %p677, %s676, 0
      %s679 = ssub.s32 %s675, %s678
      %p680 = scmp.eq.s32.totalorder %s679, 0
      %s682 = sadd.s32 %s681, 1
      %s683 = scalar_select %p680, %s681, %s682
      %p686 = pneg %p680
      %p687 = scmp.eq.s32.totalorder %s41, 2
      %p688 = por %p686, %p687
      %p689 = scmp.ne.s32.totalorder %s681, %s684
      %p690 = scmp.eq.s32.totalorder %s41, 0
      %p691 = por %p689, %p690
      %p692 = scmp.ne.s32.totalorder %s681, %s684
      %p693 = scmp.eq.s32.totalorder %s46, 2
      %p694 = por %p692, %p693
      %p695 = scmp.ne.s32.totalorder %s684, %s685
      %p696 = scmp.eq.s32.totalorder %s46, 0
      %p697 = por %p695, %p696
      %p698 = scmp.ne.s32.totalorder %s684, %s685
      %p699 = scmp.eq.s32.totalorder %s47, 2
      %p700 = por %p698, %p699
      %p702 = scmp.ne.s32.totalorder %s685, %s701
      %p703 = scmp.eq.s32.totalorder %s47, 0
      %p704 = por %p702, %p703
      %s705 = ssub.s32 %s41, 2
      %p706 = scmp.gt.s32.totalorder %s705, 0
      %s707 = scalar_select %p706, %s705, 0
      %s708 = ssub.s32 %s48, 2
      %p709 = scmp.gt.s32.totalorder %s708, 0
      %s710 = scalar_select %p709, %s708, 0
      %s711 = ssub.s32 %s707, %s710
      %p712 = scmp.eq.s32.totalorder %s711, 0
      %s714 = sadd.s32 %s713, 1
      %s715 = scalar_select %p712, %s713, %s714
      %p718 = pneg %p712
      %p719 = scmp.eq.s32.totalorder %s41, 2
      %p720 = por %p718, %p719
      %p721 = scmp.ne.s32.totalorder %s713, %s716
      %p722 = scmp.eq.s32.totalorder %s41, 0
      %p723 = por %p721, %p722
      %p724 = scmp.ne.s32.totalorder %s713, %s716
      %p725 = scmp.eq.s32.totalorder %s46, 2
      %p726 = por %p724, %p725
      %p727 = scmp.ne.s32.totalorder %s716, %s717
      %p728 = scmp.eq.s32.totalorder %s46, 0
      %p729 = por %p727, %p728
      %p730 = scmp.ne.s32.totalorder %s716, %s717
      %p731 = scmp.eq.s32.totalorder %s47, 2
      %p732 = por %p730, %p731
      %p734 = scmp.ne.s32.totalorder %s717, %s733
      %p735 = scmp.eq.s32.totalorder %s47, 0
      %p736 = por %p734, %p735
      %s737 = ssub.s32 %s41, 2
      %p738 = scmp.gt.s32.totalorder %s737, 0
      %s739 = scalar_select %p738, %s737, 0
      %s740 = ssub.s32 %s48, 2
      %p741 = scmp.gt.s32.totalorder %s740, 0
      %s742 = scalar_select %p741, %s740, 0
      %s743 = ssub.s32 %s739, %s742
      %p744 = scmp.eq.s32.totalorder %s743, 0
      %s746 = sadd.s32 %s745, 1
      %s747 = scalar_select %p744, %s745, %s746
      %p750 = pneg %p744
      %p751 = scmp.eq.s32.totalorder %s41, 2
      %p752 = por %p750, %p751
      %p753 = scmp.ne.s32.totalorder %s745, %s748
      %p754 = scmp.eq.s32.totalorder %s41, 0
      %p755 = por %p753, %p754
      %p756 = scmp.ne.s32.totalorder %s745, %s748
      %p757 = scmp.eq.s32.totalorder %s46, 2
      %p758 = por %p756, %p757
      %p759 = scmp.ne.s32.totalorder %s748, %s749
      %p760 = scmp.eq.s32.totalorder %s46, 0
      %p761 = por %p759, %p760
      %p762 = scmp.ne.s32.totalorder %s748, %s749
      %p763 = scmp.eq.s32.totalorder %s47, 2
      %p764 = por %p762, %p763
      %p766 = scmp.ne.s32.totalorder %s749, %s765
      %p767 = scmp.eq.s32.totalorder %s47, 0
      %p768 = por %p766, %p767
      %p769 = scmp.lt.s32.totalorder %s41, 1
      %s770 = scalar_select %p769, %s41, 1
      %p771 = scmp.lt.s32.totalorder %s48, 1
      %s772 = scalar_select %p771, %s48, 1
      %s773 = ssub.s32 %s770, %s772
      %p774 = scmp.eq.s32.totalorder %s773, 0
      %s776 = sadd.s32 %s775, 1
      %s777 = scalar_select %p774, %s775, %s776
      %p780 = pneg %p774
      %p781 = scmp.eq.s32.totalorder %s41, 2
      %p782 = por %p780, %p781
      %p783 = scmp.ne.s32.totalorder %s775, %s778
      %p784 = scmp.eq.s32.totalorder %s41, 0
      %p785 = por %p783, %p784
      %p786 = scmp.ne.s32.totalorder %s775, %s778
      %p787 = scmp.eq.s32.totalorder %s46, 2
      %p788 = por %p786, %p787
      %p789 = scmp.ne.s32.totalorder %s778, %s779
      %p790 = scmp.eq.s32.totalorder %s46, 0
      %p791 = por %p789, %p790
      %p792 = scmp.ne.s32.totalorder %s778, %s779
      %p793 = scmp.eq.s32.totalorder %s47, 2
      %p794 = por %p792, %p793
      %p796 = scmp.ne.s32.totalorder %s779, %s795
      %p797 = scmp.eq.s32.totalorder %s47, 0
      %p798 = por %p796, %p797
      %p799 = scmp.le.s32.totalorder 1, %s41
      %p800 = scmp.lt.s32.totalorder %s41, 4
      %p801 = pnand %p799, %p800
      %p802 = pneg %p801
      // Predicated region
      $region9: #{tpu_custom_call.1} parent=5 // pred_check
        _
      $region10: #{tpu_custom_call.1} parent=5 // pred_check_branch
        %804 = sbr.rel (%p801) target = $region12
      $region11: #{tpu_custom_call.1} parent=5 // pred_region
        %s805 = ssub.s32 %s41, 1
        // Predicated region
        $region13: #{tpu_custom_call.1} parent=11 // pred_check
          %p806 = pneg %p62
        $region14: #{tpu_custom_call.1} parent=11 // pred_check_branch
          %808 = sbr.rel (%p806) target = $region16
        $region15: #{tpu_custom_call.1} parent=11 // pred_region
          %810 = vsyncadd [#allocation4], 0
          %s811 = sshll.u32 %s0, 4
          %s812 = int_to_ptr.hbm [resolvable:$true] %s811
          %s813 = sshll.u32 [#allocation3], 4
          %s814 = int_to_ptr.vmem [resolvable:$true] %s813
          %819 = dma.hbm_to_vmem [thread:$0]  %s812, 256, %s814, [#allocation4], 128, 128, 8
        $region16: #{tpu_custom_call.1} parent=11 // pred_fallthru
          _
        // Predicated region
        $region17: #{tpu_custom_call.1} parent=11 // pred_check
          %p820 = pneg %p83
        $region18: #{tpu_custom_call.1} parent=11 // pred_check_branch
          %822 = sbr.rel (%p820) target = $region20
        $region19: #{tpu_custom_call.1} parent=11 // pred_region
          %824 = vsyncadd [#allocation7], 0
          %s825 = sshll.u32 %s1, 4
          %s826 = int_to_ptr.hbm [resolvable:$true] %s825
          %s827 = sshll.u32 [#allocation6], 4
          %s828 = int_to_ptr.vmem [resolvable:$true] %s827
          %833 = dma.hbm_to_vmem [thread:$0]  %s826, 128, %s828, [#allocation7], 64, 64, 4
        $region20: #{tpu_custom_call.1} parent=11 // pred_fallthru
          _
        // Predicated region
        $region21: #{tpu_custom_call.1} parent=11 // pred_check
          %p834 = pneg %p104
        $region22: #{tpu_custom_call.1} parent=11 // pred_check_branch
          %836 = sbr.rel (%p834) target = $region24
        $region23: #{tpu_custom_call.1} parent=11 // pred_region
          %838 = vsyncadd [#allocation7], 0
          %s840 = sshll.u32 %s2, 4
          %s841 = int_to_ptr.hbm [resolvable:$true] %s840
          %s842 = sshll.u32 [#allocation8], 4
          %s843 = int_to_ptr.vmem [resolvable:$true] %s842
          %845 = dma.hbm_to_vmem [thread:$0]  %s841, 128, %s843, [#allocation7]
        $region24: #{tpu_custom_call.1} parent=11 // pred_fallthru
          _
        // Predicated region
        $region25: #{tpu_custom_call.1} parent=11 // pred_check
          %p846 = pneg %p125
        $region26: #{tpu_custom_call.1} parent=11 // pred_check_branch
          %848 = sbr.rel (%p846) target = $region28
        $region27: #{tpu_custom_call.1} parent=11 // pred_region
          %850 = vsyncadd [#allocation10], 0
          %s851 = sshll.u32 %s3, 4
          %s852 = int_to_ptr.hbm [resolvable:$true] %s851
          %s853 = sshll.u32 [#allocation9], 4
          %s854 = int_to_ptr.vmem [resolvable:$true] %s853
          %859 = dma.hbm_to_vmem [thread:$0]  %s852, 128, %s854, [#allocation10], 16, 16, 1
        $region28: #{tpu_custom_call.1} parent=11 // pred_fallthru
          _
      $region12: #{tpu_custom_call.1} parent=5 // pred_fallthru
        _
      %p860 = scmp.lt.s32.totalorder %s41, 3
      // Predicated region
      $region29: #{tpu_custom_call.1} parent=5 // pred_check
        %p861 = pneg %p860
      $region30: #{tpu_custom_call.1} parent=5 // pred_check_branch
        %863 = sbr.rel (%p861) target = $region32
      $region31: #{tpu_custom_call.1} parent=5 // pred_region
        // Predicated region
        $region33: #{tpu_custom_call.1} parent=31 // pred_check
          %p864 = pneg %p149
        $region34: #{tpu_custom_call.1} parent=31 // pred_check_branch
          %866 = sbr.rel (%p864) target = $region36
        $region35: #{tpu_custom_call.1} parent=31 // pred_region
          %p867 = scmp.lt.s32.totalorder %s41, 1
          %s868 = scalar_select %p867, %s41, 1
          %p869 = scmp.lt.s32.totalorder %s868, 1
          %s870 = scalar_select %p869, %s868, 1
          %s871 = smul.addr %s870, 4
          %s872 = smul.addr %s871, 4
          %s873 = scalar_lea.vmem %s4, %s872
          %p874 = scmp.lt.s32.totalorder %s41, 1
          %s875 = scalar_select %p874, %s41, 1
        $region36: #{tpu_custom_call.1} parent=31 // pred_fallthru
          _
        // Predicated region
        $region37: #{tpu_custom_call.1} parent=31 // pred_check
          %p876 = pneg %p179
        $region38: #{tpu_custom_call.1} parent=31 // pred_check_branch
          %878 = sbr.rel (%p876) target = $region40
        $region39: #{tpu_custom_call.1} parent=31 // pred_region
          %p879 = scmp.lt.s32.totalorder %s41, 1
          %s880 = scalar_select %p879, %s41, 1
          %p881 = scmp.lt.s32.totalorder %s880, 1
          %s882 = scalar_select %p881, %s880, 1
          %s883 = smul.addr %s882, 4
          %s884 = smul.addr %s883, 4
          %s885 = scalar_lea.vmem %s5, %s884
          %p886 = scmp.lt.s32.totalorder %s41, 1
          %s887 = scalar_select %p886, %s41, 1
        $region40: #{tpu_custom_call.1} parent=31 // pred_fallthru
          _
        // Predicated region
        $region41: #{tpu_custom_call.1} parent=31 // pred_check
          %p888 = pneg %p209
        $region42: #{tpu_custom_call.1} parent=31 // pred_check_branch
          %890 = sbr.rel (%p888) target = $region44
        $region43: #{tpu_custom_call.1} parent=31 // pred_region
          %p891 = scmp.lt.s32.totalorder %s41, 1
          %s892 = scalar_select %p891, %s41, 1
          %p893 = scmp.lt.s32.totalorder %s892, 1
          %s894 = scalar_select %p893, %s892, 1
          %s895 = smul.addr %s894, 4
          %s896 = smul.addr %s895, 4
          %s897 = scalar_lea.vmem %s6, %s896
          %p898 = scmp.lt.s32.totalorder %s41, 1
          %s899 = scalar_select %p898, %s41, 1
        $region44: #{tpu_custom_call.1} parent=31 // pred_fallthru
          _
        // Predicated region
        $region45: #{tpu_custom_call.1} parent=31 // pred_check
          %p900 = pneg %p239
        $region46: #{tpu_custom_call.1} parent=31 // pred_check_branch
          %902 = sbr.rel (%p900) target = $region48
        $region47: #{tpu_custom_call.1} parent=31 // pred_region
          %s903 = sand.u32 %s41, 1
          %s904 = scalar_lea.sflag [#allocation4], %s903
          %s905 = sand.u32 %s229, 1
          %s906 = smul.addr %s905, 16
          %s907 = scalar_lea.vmem [#allocation11], %s906
          %p908 = scmp.lt.s32.totalorder %s41, 1
          %s909 = scalar_select %p908, %s41, 1
          %911 = vsyncadd %s904, 0
          %s912 = smul.addr %s909, 4
          %s913 = smul.addr %s912, 4
          %s914 = scalar_lea.hbm %s7, %s913
          %s915 = sshll.u32 %s914, 4
          %s916 = int_to_ptr.hbm [resolvable:$true] %s915
          %s917 = sshll.u32 %s907, 4
          %s918 = int_to_ptr.vmem [resolvable:$true] %s917
          %923 = dma.hbm_to_vmem [thread:$0]  %s916, 256, %s918, %s904, 64, 64, 4
        $region48: #{tpu_custom_call.1} parent=31 // pred_fallthru
          _
        // Predicated region
        $region49: #{tpu_custom_call.1} parent=31 // pred_check
          %p924 = pneg %p269
        $region50: #{tpu_custom_call.1} parent=31 // pred_check_branch
          %926 = sbr.rel (%p924) target = $region52
        $region51: #{tpu_custom_call.1} parent=31 // pred_region
          %s927 = sand.u32 %s41, 1
          %s928 = scalar_lea.sflag [#allocation4], %s927
          %s929 = sand.u32 %s259, 1
          %s930 = smul.addr %s929, 16
          %s931 = scalar_lea.vmem [#allocation12], %s930
          %p932 = scmp.lt.s32.totalorder %s41, 1
          %s933 = scalar_select %p932, %s41, 1
          %935 = vsyncadd %s928, 0
          %s936 = smul.addr %s933, 4
          %s937 = smul.addr %s936, 4
          %s938 = scalar_lea.hbm %s8, %s937
          %s939 = sshll.u32 %s938, 4
          %s940 = int_to_ptr.hbm [resolvable:$true] %s939
          %s941 = sshll.u32 %s931, 4
          %s942 = int_to_ptr.vmem [resolvable:$true] %s941
          %947 = dma.hbm_to_vmem [thread:$0]  %s940, 256, %s942, %s928, 64, 64, 4
        $region52: #{tpu_custom_call.1} parent=31 // pred_fallthru
          _
        // Predicated region
        $region53: #{tpu_custom_call.1} parent=31 // pred_check
          %p948 = pneg %p299
        $region54: #{tpu_custom_call.1} parent=31 // pred_check_branch
          %950 = sbr.rel (%p948) target = $region56
        $region55: #{tpu_custom_call.1} parent=31 // pred_region
          %s951 = sand.u32 %s41, 1
          %s952 = scalar_lea.sflag [#allocation4], %s951
          %s953 = sand.u32 %s289, 1
          %s954 = smul.addr %s953, 16
          %s955 = scalar_lea.vmem [#allocation13], %s954
          %p956 = scmp.lt.s32.totalorder %s41, 1
          %s957 = scalar_select %p956, %s41, 1
          %959 = vsyncadd %s952, 0
          %s960 = smul.addr %s957, 4
          %s961 = smul.addr %s960, 4
          %s962 = scalar_lea.hbm %s9, %s961
          %s963 = sshll.u32 %s962, 4
          %s964 = int_to_ptr.hbm [resolvable:$true] %s963
          %s965 = sshll.u32 %s955, 4
          %s966 = int_to_ptr.vmem [resolvable:$true] %s965
          %971 = dma.hbm_to_vmem [thread:$0]  %s964, 256, %s966, %s952, 64, 64, 4
        $region56: #{tpu_custom_call.1} parent=31 // pred_fallthru
          _
        // Predicated region
        $region57: #{tpu_custom_call.1} parent=31 // pred_check
          %p972 = pneg %p329
        $region58: #{tpu_custom_call.1} parent=31 // pred_check_branch
          %974 = sbr.rel (%p972) target = $region60
        $region59: #{tpu_custom_call.1} parent=31 // pred_region
          %s975 = sand.u32 %s41, 1
          %s976 = scalar_lea.sflag [#allocation4], %s975
          %s977 = sand.u32 %s319, 1
          %s978 = smul.addr %s977, 16
          %s979 = scalar_lea.vmem [#allocation14], %s978
          %p980 = scmp.lt.s32.totalorder %s41, 1
          %s981 = scalar_select %p980, %s41, 1
          %983 = vsyncadd %s976, 0
          %s984 = smul.addr %s981, 4
          %s985 = smul.addr %s984, 4
          %s986 = scalar_lea.hbm %s10, %s985
          %s987 = sshll.u32 %s986, 4
          %s988 = int_to_ptr.hbm [resolvable:$true] %s987
          %s989 = sshll.u32 %s979, 4
          %s990 = int_to_ptr.vmem [resolvable:$true] %s989
          %995 = dma.hbm_to_vmem [thread:$0]  %s988, 256, %s990, %s976, 64, 64, 4
        $region60: #{tpu_custom_call.1} parent=31 // pred_fallthru
          _
        // Predicated region
        $region61: #{tpu_custom_call.1} parent=31 // pred_check
          %p996 = pneg %p359
        $region62: #{tpu_custom_call.1} parent=31 // pred_check_branch
          %998 = sbr.rel (%p996) target = $region64
        $region63: #{tpu_custom_call.1} parent=31 // pred_region
          %s999 = sand.u32 %s41, 1
          %s1000 = scalar_lea.sflag [#allocation4], %s999
          %s1001 = sand.u32 %s349, 1
          %s1002 = smul.addr %s1001, 16
          %s1003 = scalar_lea.vmem [#allocation15], %s1002
          %p1004 = scmp.lt.s32.totalorder %s41, 1
          %s1005 = scalar_select %p1004, %s41, 1
          %1007 = vsyncadd %s1000, 0
          %s1008 = smul.addr %s1005, 4
          %s1009 = smul.addr %s1008, 4
          %s1010 = scalar_lea.hbm %s11, %s1009
          %s1011 = sshll.u32 %s1010, 4
          %s1012 = int_to_ptr.hbm [resolvable:$true] %s1011
          %s1013 = sshll.u32 %s1003, 4
          %s1014 = int_to_ptr.vmem [resolvable:$true] %s1013
          %1019 = dma.hbm_to_vmem [thread:$0]  %s1012, 256, %s1014, %s1000, 64, 64, 4
        $region64: #{tpu_custom_call.1} parent=31 // pred_fallthru
          _
        // Predicated region
        $region65: #{tpu_custom_call.1} parent=31 // pred_check
          %p1020 = pneg %p389
        $region66: #{tpu_custom_call.1} parent=31 // pred_check_branch
          %1022 = sbr.rel (%p1020) target = $region68
        $region67: #{tpu_custom_call.1} parent=31 // pred_region
          %s1023 = sand.u32 %s41, 1
          %s1024 = scalar_lea.sflag [#allocation4], %s1023
          %s1025 = sand.u32 %s379, 1
          %s1026 = smul.addr %s1025, 16
          %s1027 = scalar_lea.vmem [#allocation16], %s1026
          %p1028 = scmp.lt.s32.totalorder %s41, 1
          %s1029 = scalar_select %p1028, %s41, 1
          %1031 = vsyncadd %s1024, 0
          %s1032 = smul.addr %s1029, 4
          %s1033 = smul.addr %s1032, 4
          %s1034 = scalar_lea.hbm %s12, %s1033
          %s1035 = sshll.u32 %s1034, 4
          %s1036 = int_to_ptr.hbm [resolvable:$true] %s1035
          %s1037 = sshll.u32 %s1027, 4
          %s1038 = int_to_ptr.vmem [resolvable:$true] %s1037
          %1043 = dma.hbm_to_vmem [thread:$0]  %s1036, 256, %s1038, %s1024, 64, 64, 4
        $region68: #{tpu_custom_call.1} parent=31 // pred_fallthru
          _
        // Predicated region
        $region69: #{tpu_custom_call.1} parent=31 // pred_check
          %p1044 = pneg %p419
        $region70: #{tpu_custom_call.1} parent=31 // pred_check_branch
          %1046 = sbr.rel (%p1044) target = $region72
        $region71: #{tpu_custom_call.1} parent=31 // pred_region
          %s1047 = sand.u32 %s41, 1
          %s1048 = scalar_lea.sflag [#allocation4], %s1047
          %s1049 = sand.u32 %s409, 1
          %s1050 = scalar_lea.vmem [#allocation17], %s1049
          %p1051 = scmp.lt.s32.totalorder %s41, 1
          %s1052 = scalar_select %p1051, %s41, 1
          %1054 = vsyncadd %s1048, 0
          %s1055 = scalar_lea.hbm %s13, %s1052
          %s1057 = sshll.u32 %s1055, 4
          %s1058 = int_to_ptr.hbm [resolvable:$true] %s1057
          %s1059 = sshll.u32 %s1050, 4
          %s1060 = int_to_ptr.vmem [resolvable:$true] %s1059
          %1062 = dma.hbm_to_vmem [thread:$0]  %s1058, 16, %s1060, %s1048
        $region72: #{tpu_custom_call.1} parent=31 // pred_fallthru
          _
        // Predicated region
        $region73: #{tpu_custom_call.1} parent=31 // pred_check
          %p1063 = pneg %p449
        $region74: #{tpu_custom_call.1} parent=31 // pred_check_branch
          %1065 = sbr.rel (%p1063) target = $region76
        $region75: #{tpu_custom_call.1} parent=31 // pred_region
          %p1066 = scmp.lt.s32.totalorder %s41, 1
          %s1067 = scalar_select %p1066, %s41, 1
          %p1068 = scmp.lt.s32.totalorder %s1067, 1
          %s1069 = scalar_select %p1068, %s1067, 1
          %s1070 = smul.addr %s1069, 8
          %s1071 = smul.addr %s1070, 4
          %s1072 = scalar_lea.vmem %s14, %s1071
          %p1073 = scmp.lt.s32.totalorder %s41, 1
          %s1074 = scalar_select %p1073, %s41, 1
        $region76: #{tpu_custom_call.1} parent=31 // pred_fallthru
          _
        // Predicated region
        $region77: #{tpu_custom_call.1} parent=31 // pred_check
          %p1075 = pneg %p479
        $region78: #{tpu_custom_call.1} parent=31 // pred_check_branch
          %1077 = sbr.rel (%p1075) target = $region80
        $region79: #{tpu_custom_call.1} parent=31 // pred_region
          %s1078 = sand.u32 %s41, 1
          %s1079 = scalar_lea.sflag [#allocation4], %s1078
          %s1080 = sand.u32 %s469, 1
          %s1081 = scalar_lea.vmem [#allocation18], %s1080
          %p1082 = scmp.lt.s32.totalorder %s41, 1
          %s1083 = scalar_select %p1082, %s41, 1
          %1085 = vsyncadd %s1079, 0
          %s1086 = scalar_lea.hbm %s15, %s1083
          %s1088 = sshll.u32 %s1086, 4
          %s1089 = int_to_ptr.hbm [resolvable:$true] %s1088
          %s1090 = sshll.u32 %s1081, 4
          %s1091 = int_to_ptr.vmem [resolvable:$true] %s1090
          %1093 = dma.hbm_to_vmem [thread:$0]  %s1089, 16, %s1091, %s1079
        $region80: #{tpu_custom_call.1} parent=31 // pred_fallthru
          _
        // Predicated region
        $region81: #{tpu_custom_call.1} parent=31 // pred_check
          %p1094 = pneg %p509
        $region82: #{tpu_custom_call.1} parent=31 // pred_check_branch
          %1096 = sbr.rel (%p1094) target = $region84
        $region83: #{tpu_custom_call.1} parent=31 // pred_region
          %s1097 = sand.u32 %s41, 1
          %s1098 = scalar_lea.sflag [#allocation4], %s1097
          %s1099 = sand.u32 %s499, 1
          %s1100 = scalar_lea.vmem [#allocation19], %s1099
          %p1101 = scmp.lt.s32.totalorder %s41, 1
          %s1102 = scalar_select %p1101, %s41, 1
          %1104 = vsyncadd %s1098, 0
          %s1105 = scalar_lea.hbm %s16, %s1102
          %s1107 = sshll.u32 %s1105, 4
          %s1108 = int_to_ptr.hbm [resolvable:$true] %s1107
          %s1109 = sshll.u32 %s1100, 4
          %s1110 = int_to_ptr.vmem [resolvable:$true] %s1109
          %1112 = dma.hbm_to_vmem [thread:$0]  %s1108, 16, %s1110, %s1098
        $region84: #{tpu_custom_call.1} parent=31 // pred_fallthru
          _
        // Predicated region
        $region85: #{tpu_custom_call.1} parent=31 // pred_check
          %p1113 = pneg %p539
        $region86: #{tpu_custom_call.1} parent=31 // pred_check_branch
          %1115 = sbr.rel (%p1113) target = $region88
        $region87: #{tpu_custom_call.1} parent=31 // pred_region
          %s1116 = sand.u32 %s41, 1
          %s1117 = scalar_lea.sflag [#allocation4], %s1116
          %s1118 = sand.u32 %s529, 1
          %s1119 = scalar_lea.vmem [#allocation20], %s1118
          %p1120 = scmp.lt.s32.totalorder %s41, 1
          %s1121 = scalar_select %p1120, %s41, 1
          %1123 = vsyncadd %s1117, 0
          %s1124 = scalar_lea.hbm %s17, %s1121
          %s1126 = sshll.u32 %s1124, 4
          %s1127 = int_to_ptr.hbm [resolvable:$true] %s1126
          %s1128 = sshll.u32 %s1119, 4
          %s1129 = int_to_ptr.vmem [resolvable:$true] %s1128
          %1131 = dma.hbm_to_vmem [thread:$0]  %s1127, 16, %s1129, %s1117
        $region88: #{tpu_custom_call.1} parent=31 // pred_fallthru
          _
        // Predicated region
        $region89: #{tpu_custom_call.1} parent=31 // pred_check
          %p1132 = pneg %p569
        $region90: #{tpu_custom_call.1} parent=31 // pred_check_branch
          %1134 = sbr.rel (%p1132) target = $region92
        $region91: #{tpu_custom_call.1} parent=31 // pred_region
          %s1135 = sand.u32 %s41, 1
          %s1136 = scalar_lea.sflag [#allocation4], %s1135
          %s1137 = sand.u32 %s559, 1
          %s1138 = scalar_lea.vmem [#allocation21], %s1137
          %p1139 = scmp.lt.s32.totalorder %s41, 1
          %s1140 = scalar_select %p1139, %s41, 1
          %1142 = vsyncadd %s1136, 0
          %s1143 = scalar_lea.hbm %s18, %s1140
          %s1145 = sshll.u32 %s1143, 4
          %s1146 = int_to_ptr.hbm [resolvable:$true] %s1145
          %s1147 = sshll.u32 %s1138, 4
          %s1148 = int_to_ptr.vmem [resolvable:$true] %s1147
          %1150 = dma.hbm_to_vmem [thread:$0]  %s1146, 16, %s1148, %s1136
        $region92: #{tpu_custom_call.1} parent=31 // pred_fallthru
          _
        // Predicated region
        $region93: #{tpu_custom_call.1} parent=31 // pred_check
          %p1151 = pneg %p599
        $region94: #{tpu_custom_call.1} parent=31 // pred_check_branch
          %1153 = sbr.rel (%p1151) target = $region96
        $region95: #{tpu_custom_call.1} parent=31 // pred_region
          %s1154 = sand.u32 %s41, 1
          %s1155 = scalar_lea.sflag [#allocation4], %s1154
          %s1156 = sand.u32 %s589, 1
          %s1157 = scalar_lea.vmem [#allocation22], %s1156
          %p1158 = scmp.lt.s32.totalorder %s41, 1
          %s1159 = scalar_select %p1158, %s41, 1
          %1161 = vsyncadd %s1155, 0
          %s1162 = scalar_lea.hbm %s19, %s1159
          %s1164 = sshll.u32 %s1162, 4
          %s1165 = int_to_ptr.hbm [resolvable:$true] %s1164
          %s1166 = sshll.u32 %s1157, 4
          %s1167 = int_to_ptr.vmem [resolvable:$true] %s1166
          %1169 = dma.hbm_to_vmem [thread:$0]  %s1165, 16, %s1167, %s1155
        $region96: #{tpu_custom_call.1} parent=31 // pred_fallthru
          _
        // Predicated region
        $region97: #{tpu_custom_call.1} parent=31 // pred_check
          %p1170 = pneg %p629
        $region98: #{tpu_custom_call.1} parent=31 // pred_check_branch
          %1172 = sbr.rel (%p1170) target = $region100
        $region99: #{tpu_custom_call.1} parent=31 // pred_region
          %p1173 = scmp.lt.s32.totalorder %s41, 1
          %s1174 = scalar_select %p1173, %s41, 1
          %p1175 = scmp.lt.s32.totalorder %s1174, 1
          %s1176 = scalar_select %p1175, %s1174, 1
          %s1177 = scalar_lea.vmem %s20, %s1176
          %p1178 = scmp.lt.s32.totalorder %s41, 1
          %s1179 = scalar_select %p1178, %s41, 1
        $region100: #{tpu_custom_call.1} parent=31 // pred_fallthru
          _
        // Predicated region
        $region101: #{tpu_custom_call.1} parent=31 // pred_check
          %p1180 = pneg %p659
        $region102: #{tpu_custom_call.1} parent=31 // pred_check_branch
          %1182 = sbr.rel (%p1180) target = $region104
        $region103: #{tpu_custom_call.1} parent=31 // pred_region
          %s1183 = sand.u32 %s41, 1
          %s1184 = scalar_lea.sflag [#allocation4], %s1183
          %s1185 = sand.u32 %s649, 1
          %s1186 = scalar_lea.vmem [#allocation23], %s1185
          %p1187 = scmp.lt.s32.totalorder %s41, 1
          %s1188 = scalar_select %p1187, %s41, 1
          %1190 = vsyncadd %s1184, 0
          %s1191 = scalar_lea.hbm %s21, %s1188
          %s1193 = sshll.u32 %s1191, 4
          %s1194 = int_to_ptr.hbm [resolvable:$true] %s1193
          %s1195 = sshll.u32 %s1186, 4
          %s1196 = int_to_ptr.vmem [resolvable:$true] %s1195
          %1198 = dma.hbm_to_vmem [thread:$0]  %s1194, 16, %s1196, %s1184
        $region104: #{tpu_custom_call.1} parent=31 // pred_fallthru
          _
        // Predicated region
        $region105: #{tpu_custom_call.1} parent=31 // pred_check
          %p1199 = pneg %p691
        $region106: #{tpu_custom_call.1} parent=31 // pred_check_branch
          %1201 = sbr.rel (%p1199) target = $region108
        $region107: #{tpu_custom_call.1} parent=31 // pred_region
          %s1202 = ssub.s32 %s41, 2
          %p1203 = scmp.gt.s32.totalorder %s1202, 0
          %s1204 = scalar_select %p1203, %s1202, 0
          %p1205 = scmp.lt.s32.totalorder %s1204, 0
          %s1206 = scalar_select %p1205, %s1204, 0
          %s1207 = smul.addr %s1206, 4
          %s1208 = scalar_lea.vmem %s22, %s1207
          %s1209 = ssub.s32 %s41, 2
          %p1210 = scmp.gt.s32.totalorder %s1209, 0
          %s1211 = scalar_select %p1210, %s1209, 0
        $region108: #{tpu_custom_call.1} parent=31 // pred_fallthru
          _
        // Predicated region
        $region109: #{tpu_custom_call.1} parent=31 // pred_check
          %p1212 = pneg %p723
        $region110: #{tpu_custom_call.1} parent=31 // pred_check_branch
          %1214 = sbr.rel (%p1212) target = $region112
        $region111: #{tpu_custom_call.1} parent=31 // pred_region
          %s1215 = ssub.s32 %s41, 2
          %p1216 = scmp.gt.s32.totalorder %s1215, 0
          %s1217 = scalar_select %p1216, %s1215, 0
          %p1218 = scmp.lt.s32.totalorder %s1217, 0
          %s1219 = scalar_select %p1218, %s1217, 0
          %s1220 = scalar_lea.vmem %s23, %s1219
          %s1221 = ssub.s32 %s41, 2
          %p1222 = scmp.gt.s32.totalorder %s1221, 0
          %s1223 = scalar_select %p1222, %s1221, 0
        $region112: #{tpu_custom_call.1} parent=31 // pred_fallthru
          _
      $region32: #{tpu_custom_call.1} parent=5 // pred_fallthru
        _
      %p1224 = scmp.le.s32.totalorder 1, %s41
      %p1225 = scmp.lt.s32.totalorder %s41, 4
      %p1226 = pnand %p1224, %p1225
      %p1227 = pneg %p1226
      // Predicated region
      $region113: #{tpu_custom_call.1} parent=5 // pred_check
        _
      $region114: #{tpu_custom_call.1} parent=5 // pred_check_branch
        %1229 = sbr.rel (%p1226) target = $region116
      $region115: #{tpu_custom_call.1} parent=5 // pred_region
        %s1230 = ssub.s32 %s41, 1
        // Predicated region
        $region117: #{tpu_custom_call.1} parent=115 // pred_check
          %p1231 = pneg %p62
        $region118: #{tpu_custom_call.1} parent=115 // pred_check_branch
          %1233 = sbr.rel (%p1231) target = $region120
        $region119: #{tpu_custom_call.1} parent=115 // pred_region
          %1235 = dma.done [#allocation4], 256
        $region120: #{tpu_custom_call.1} parent=115 // pred_fallthru
          _
        // Predicated region
        $region121: #{tpu_custom_call.1} parent=115 // pred_check
          %p1236 = pneg %p83
        $region122: #{tpu_custom_call.1} parent=115 // pred_check_branch
          %1238 = sbr.rel (%p1236) target = $region124
        $region123: #{tpu_custom_call.1} parent=115 // pred_region
          %1240 = dma.done [#allocation7], 128
        $region124: #{tpu_custom_call.1} parent=115 // pred_fallthru
          _
        // Predicated region
        $region125: #{tpu_custom_call.1} parent=115 // pred_check
          %p1241 = pneg %p104
        $region126: #{tpu_custom_call.1} parent=115 // pred_check_branch
          %1243 = sbr.rel (%p1241) target = $region128
        $region127: #{tpu_custom_call.1} parent=115 // pred_region
          %1245 = dma.done [#allocation7], 128
        $region128: #{tpu_custom_call.1} parent=115 // pred_fallthru
          _
        // Predicated region
        $region129: #{tpu_custom_call.1} parent=115 // pred_check
          %p1246 = pneg %p125
        $region130: #{tpu_custom_call.1} parent=115 // pred_check_branch
          %1248 = sbr.rel (%p1246) target = $region132
        $region131: #{tpu_custom_call.1} parent=115 // pred_region
          %1250 = dma.done [#allocation10], 128
        $region132: #{tpu_custom_call.1} parent=115 // pred_fallthru
          _
        %s1251 = sand.u32 %s46, 1
        %s1252 = scalar_lea.sflag [#allocation4], %s1251
        %s1253 = sand.u32 %s232, 1
        %s1254 = smul.addr %s1253, 16
        %s1255 = scalar_lea.vmem [#allocation11], %s1254
        // Predicated region
        $region133: #{tpu_custom_call.1} parent=115 // pred_check
          %p1256 = pneg %p245
        $region134: #{tpu_custom_call.1} parent=115 // pred_check_branch
          %1258 = sbr.rel (%p1256) target = $region136
        $region135: #{tpu_custom_call.1} parent=115 // pred_region
          %1260 = dma.done %s1252, 256
        $region136: #{tpu_custom_call.1} parent=115 // pred_fallthru
          _
        %s1261 = sand.u32 %s46, 1
        %s1262 = scalar_lea.sflag [#allocation4], %s1261
        %s1263 = sand.u32 %s262, 1
        %s1264 = smul.addr %s1263, 16
        %s1265 = scalar_lea.vmem [#allocation12], %s1264
        // Predicated region
        $region137: #{tpu_custom_call.1} parent=115 // pred_check
          %p1266 = pneg %p275
        $region138: #{tpu_custom_call.1} parent=115 // pred_check_branch
          %1268 = sbr.rel (%p1266) target = $region140
        $region139: #{tpu_custom_call.1} parent=115 // pred_region
          %1270 = dma.done %s1262, 256
        $region140: #{tpu_custom_call.1} parent=115 // pred_fallthru
          _
        %s1271 = sand.u32 %s46, 1
        %s1272 = scalar_lea.sflag [#allocation4], %s1271
        %s1273 = sand.u32 %s292, 1
        %s1274 = smul.addr %s1273, 16
        %s1275 = scalar_lea.vmem [#allocation13], %s1274
        // Predicated region
        $region141: #{tpu_custom_call.1} parent=115 // pred_check
          %p1276 = pneg %p305
        $region142: #{tpu_custom_call.1} parent=115 // pred_check_branch
          %1278 = sbr.rel (%p1276) target = $region144
        $region143: #{tpu_custom_call.1} parent=115 // pred_region
          %1280 = dma.done %s1272, 256
        $region144: #{tpu_custom_call.1} parent=115 // pred_fallthru
          _
        %s1281 = sand.u32 %s46, 1
        %s1282 = scalar_lea.sflag [#allocation4], %s1281
        %s1283 = sand.u32 %s322, 1
        %s1284 = smul.addr %s1283, 16
        %s1285 = scalar_lea.vmem [#allocation14], %s1284
        // Predicated region
        $region145: #{tpu_custom_call.1} parent=115 // pred_check
          %p1286 = pneg %p335
        $region146: #{tpu_custom_call.1} parent=115 // pred_check_branch
          %1288 = sbr.rel (%p1286) target = $region148
        $region147: #{tpu_custom_call.1} parent=115 // pred_region
          %1290 = dma.done %s1282, 256
        $region148: #{tpu_custom_call.1} parent=115 // pred_fallthru
          _
        %s1291 = sand.u32 %s46, 1
        %s1292 = scalar_lea.sflag [#allocation4], %s1291
        %s1293 = sand.u32 %s352, 1
        %s1294 = smul.addr %s1293, 16
        %s1295 = scalar_lea.vmem [#allocation15], %s1294
        // Predicated region
        $region149: #{tpu_custom_call.1} parent=115 // pred_check
          %p1296 = pneg %p365
        $region150: #{tpu_custom_call.1} parent=115 // pred_check_branch
          %1298 = sbr.rel (%p1296) target = $region152
        $region151: #{tpu_custom_call.1} parent=115 // pred_region
          %1300 = dma.done %s1292, 256
        $region152: #{tpu_custom_call.1} parent=115 // pred_fallthru
          _
        %s1301 = sand.u32 %s46, 1
        %s1302 = scalar_lea.sflag [#allocation4], %s1301
        %s1303 = sand.u32 %s382, 1
        %s1304 = smul.addr %s1303, 16
        %s1305 = scalar_lea.vmem [#allocation16], %s1304
        // Predicated region
        $region153: #{tpu_custom_call.1} parent=115 // pred_check
          %p1306 = pneg %p395
        $region154: #{tpu_custom_call.1} parent=115 // pred_check_branch
          %1308 = sbr.rel (%p1306) target = $region156
        $region155: #{tpu_custom_call.1} parent=115 // pred_region
          %1310 = dma.done %s1302, 256
        $region156: #{tpu_custom_call.1} parent=115 // pred_fallthru
          _
        %s1311 = sand.u32 %s46, 1
        %s1312 = scalar_lea.sflag [#allocation4], %s1311
        %s1313 = sand.u32 %s412, 1
        %s1314 = scalar_lea.vmem [#allocation17], %s1313
        // Predicated region
        $region157: #{tpu_custom_call.1} parent=115 // pred_check
          %p1315 = pneg %p425
        $region158: #{tpu_custom_call.1} parent=115 // pred_check_branch
          %1317 = sbr.rel (%p1315) target = $region160
        $region159: #{tpu_custom_call.1} parent=115 // pred_region
          %1319 = dma.done %s1312, 16
        $region160: #{tpu_custom_call.1} parent=115 // pred_fallthru
          _
        %s1320 = sand.u32 %s46, 1
        %s1321 = scalar_lea.sflag [#allocation4], %s1320
        %s1322 = sand.u32 %s472, 1
        %s1323 = scalar_lea.vmem [#allocation18], %s1322
        // Predicated region
        $region161: #{tpu_custom_call.1} parent=115 // pred_check
          %p1324 = pneg %p485
        $region162: #{tpu_custom_call.1} parent=115 // pred_check_branch
          %1326 = sbr.rel (%p1324) target = $region164
        $region163: #{tpu_custom_call.1} parent=115 // pred_region
          %1328 = dma.done %s1321, 16
        $region164: #{tpu_custom_call.1} parent=115 // pred_fallthru
          _
        %s1329 = sand.u32 %s46, 1
        %s1330 = scalar_lea.sflag [#allocation4], %s1329
        %s1331 = sand.u32 %s502, 1
        %s1332 = scalar_lea.vmem [#allocation19], %s1331
        // Predicated region
        $region165: #{tpu_custom_call.1} parent=115 // pred_check
          %p1333 = pneg %p515
        $region166: #{tpu_custom_call.1} parent=115 // pred_check_branch
          %1335 = sbr.rel (%p1333) target = $region168
        $region167: #{tpu_custom_call.1} parent=115 // pred_region
          %1337 = dma.done %s1330, 16
        $region168: #{tpu_custom_call.1} parent=115 // pred_fallthru
          _
        %s1338 = sand.u32 %s46, 1
        %s1339 = scalar_lea.sflag [#allocation4], %s1338
        %s1340 = sand.u32 %s532, 1
        %s1341 = scalar_lea.vmem [#allocation20], %s1340
        // Predicated region
        $region169: #{tpu_custom_call.1} parent=115 // pred_check
          %p1342 = pneg %p545
        $region170: #{tpu_custom_call.1} parent=115 // pred_check_branch
          %1344 = sbr.rel (%p1342) target = $region172
        $region171: #{tpu_custom_call.1} parent=115 // pred_region
          %1346 = dma.done %s1339, 16
        $region172: #{tpu_custom_call.1} parent=115 // pred_fallthru
          _
        %s1347 = sand.u32 %s46, 1
        %s1348 = scalar_lea.sflag [#allocation4], %s1347
        %s1349 = sand.u32 %s562, 1
        %s1350 = scalar_lea.vmem [#allocation21], %s1349
        // Predicated region
        $region173: #{tpu_custom_call.1} parent=115 // pred_check
          %p1351 = pneg %p575
        $region174: #{tpu_custom_call.1} parent=115 // pred_check_branch
          %1353 = sbr.rel (%p1351) target = $region176
        $region175: #{tpu_custom_call.1} parent=115 // pred_region
          %1355 = dma.done %s1348, 16
        $region176: #{tpu_custom_call.1} parent=115 // pred_fallthru
          _
        %s1356 = sand.u32 %s46, 1
        %s1357 = scalar_lea.sflag [#allocation4], %s1356
        %s1358 = sand.u32 %s592, 1
        %s1359 = scalar_lea.vmem [#allocation22], %s1358
        // Predicated region
        $region177: #{tpu_custom_call.1} parent=115 // pred_check
          %p1360 = pneg %p605
        $region178: #{tpu_custom_call.1} parent=115 // pred_check_branch
          %1362 = sbr.rel (%p1360) target = $region180
        $region179: #{tpu_custom_call.1} parent=115 // pred_region
          %1364 = dma.done %s1357, 16
        $region180: #{tpu_custom_call.1} parent=115 // pred_fallthru
          _
        %s1365 = sand.u32 %s46, 1
        %s1366 = scalar_lea.sflag [#allocation4], %s1365
        %s1367 = sand.u32 %s652, 1
        %s1368 = scalar_lea.vmem [#allocation23], %s1367
        // Predicated region
        $region181: #{tpu_custom_call.1} parent=115 // pred_check
          %p1369 = pneg %p665
        $region182: #{tpu_custom_call.1} parent=115 // pred_check_branch
          %1371 = sbr.rel (%p1369) target = $region184
        $region183: #{tpu_custom_call.1} parent=115 // pred_region
          %1373 = dma.done %s1366, 16
        $region184: #{tpu_custom_call.1} parent=115 // pred_fallthru
          _
        %p1374 = pneg %p62
        %p1375 = pneg %p59
        %p1376 = pneg %p83
        %p1377 = pneg %p80
        %p1378 = pneg %p104
        %p1379 = pneg %p101
        %p1380 = pneg %p125
        %p1381 = pneg %p122
        %p1382 = scmp.lt.s32.totalorder %s46, 1
        %s1383 = scalar_select %p1382, %s46, 1
        %p1384 = scmp.lt.s32.totalorder %s1383, 1
        %s1385 = scalar_select %p1384, %s1383, 1
        %s1386 = smul.addr %s1385, 4
        %s1387 = smul.addr %s1386, 4
        %s1388 = scalar_lea.vmem %s4, %s1387
        %p1389 = pneg %p155
        %p1390 = pneg %p152
        %p1391 = scmp.lt.s32.totalorder %s46, 1
        %s1392 = scalar_select %p1391, %s46, 1
        %p1393 = scmp.lt.s32.totalorder %s1392, 1
        %s1394 = scalar_select %p1393, %s1392, 1
        %s1395 = smul.addr %s1394, 4
        %s1396 = smul.addr %s1395, 4
        %s1397 = scalar_lea.vmem %s5, %s1396
        %p1398 = pneg %p185
        %p1399 = pneg %p182
        %p1400 = scmp.lt.s32.totalorder %s46, 1
        %s1401 = scalar_select %p1400, %s46, 1
        %p1402 = scmp.lt.s32.totalorder %s1401, 1
        %s1403 = scalar_select %p1402, %s1401, 1
        %s1404 = smul.addr %s1403, 4
        %s1405 = smul.addr %s1404, 4
        %s1406 = scalar_lea.vmem %s6, %s1405
        %p1407 = pneg %p215
        %p1408 = pneg %p212
        %s1409 = sand.u32 %s46, 1
        %s1410 = scalar_lea.sflag [#allocation4], %s1409
        %s1411 = sand.u32 %s232, 1
        %s1412 = smul.addr %s1411, 16
        %s1413 = scalar_lea.vmem [#allocation11], %s1412
        %p1414 = pneg %p245
        %p1415 = pneg %p242
        %s1416 = sand.u32 %s46, 1
        %s1417 = scalar_lea.sflag [#allocation4], %s1416
        %s1418 = sand.u32 %s262, 1
        %s1419 = smul.addr %s1418, 16
        %s1420 = scalar_lea.vmem [#allocation12], %s1419
        %p1421 = pneg %p275
        %p1422 = pneg %p272
        %s1423 = sand.u32 %s46, 1
        %s1424 = scalar_lea.sflag [#allocation4], %s1423
        %s1425 = sand.u32 %s292, 1
        %s1426 = smul.addr %s1425, 16
        %s1427 = scalar_lea.vmem [#allocation13], %s1426
        %p1428 = pneg %p305
        %p1429 = pneg %p302
        %s1430 = sand.u32 %s46, 1
        %s1431 = scalar_lea.sflag [#allocation4], %s1430
        %s1432 = sand.u32 %s322, 1
        %s1433 = smul.addr %s1432, 16
        %s1434 = scalar_lea.vmem [#allocation14], %s1433
        %p1435 = pneg %p335
        %p1436 = pneg %p332
        %s1437 = sand.u32 %s46, 1
        %s1438 = scalar_lea.sflag [#allocation4], %s1437
        %s1439 = sand.u32 %s352, 1
        %s1440 = smul.addr %s1439, 16
        %s1441 = scalar_lea.vmem [#allocation15], %s1440
        %p1442 = pneg %p365
        %p1443 = pneg %p362
        %s1444 = sand.u32 %s46, 1
        %s1445 = scalar_lea.sflag [#allocation4], %s1444
        %s1446 = sand.u32 %s382, 1
        %s1447 = smul.addr %s1446, 16
        %s1448 = scalar_lea.vmem [#allocation16], %s1447
        %p1449 = pneg %p395
        %p1450 = pneg %p392
        %s1451 = sand.u32 %s46, 1
        %s1452 = scalar_lea.sflag [#allocation4], %s1451
        %s1453 = sand.u32 %s412, 1
        %s1454 = scalar_lea.vmem [#allocation17], %s1453
        %p1455 = pneg %p425
        %p1456 = pneg %p422
        %p1457 = scmp.lt.s32.totalorder %s46, 1
        %s1458 = scalar_select %p1457, %s46, 1
        %p1459 = scmp.lt.s32.totalorder %s1458, 1
        %s1460 = scalar_select %p1459, %s1458, 1
        %s1461 = smul.addr %s1460, 8
        %s1462 = smul.addr %s1461, 4
        %s1463 = scalar_lea.vmem %s14, %s1462
        %p1464 = pneg %p455
        %p1465 = pneg %p452
        %s1466 = sand.u32 %s46, 1
        %s1467 = scalar_lea.sflag [#allocation4], %s1466
        %s1468 = sand.u32 %s472, 1
        %s1469 = scalar_lea.vmem [#allocation18], %s1468
        %p1470 = pneg %p485
        %p1471 = pneg %p482
        %s1472 = sand.u32 %s46, 1
        %s1473 = scalar_lea.sflag [#allocation4], %s1472
        %s1474 = sand.u32 %s502, 1
        %s1475 = scalar_lea.vmem [#allocation19], %s1474
        %p1476 = pneg %p515
        %p1477 = pneg %p512
        %s1478 = sand.u32 %s46, 1
        %s1479 = scalar_lea.sflag [#allocation4], %s1478
        %s1480 = sand.u32 %s532, 1
        %s1481 = scalar_lea.vmem [#allocation20], %s1480
        %p1482 = pneg %p545
        %p1483 = pneg %p542
        %s1484 = sand.u32 %s46, 1
        %s1485 = scalar_lea.sflag [#allocation4], %s1484
        %s1486 = sand.u32 %s562, 1
        %s1487 = scalar_lea.vmem [#allocation21], %s1486
        %p1488 = pneg %p575
        %p1489 = pneg %p572
        %s1490 = sand.u32 %s46, 1
        %s1491 = scalar_lea.sflag [#allocation4], %s1490
        %s1492 = sand.u32 %s592, 1
        %s1493 = scalar_lea.vmem [#allocation22], %s1492
        %p1494 = pneg %p605
        %p1495 = pneg %p602
        %p1496 = scmp.lt.s32.totalorder %s46, 1
        %s1497 = scalar_select %p1496, %s46, 1
        %p1498 = scmp.lt.s32.totalorder %s1497, 1
        %s1499 = scalar_select %p1498, %s1497, 1
        %s1500 = scalar_lea.vmem %s20, %s1499
        %p1501 = pneg %p635
        %p1502 = pneg %p632
        %s1503 = sand.u32 %s46, 1
        %s1504 = scalar_lea.sflag [#allocation4], %s1503
        %s1505 = sand.u32 %s652, 1
        %s1506 = scalar_lea.vmem [#allocation23], %s1505
        %p1507 = pneg %p665
        %p1508 = pneg %p662
        %s1509 = ssub.s32 %s46, 2
        %p1510 = scmp.gt.s32.totalorder %s1509, 0
        %s1511 = scalar_select %p1510, %s1509, 0
        %p1512 = scmp.lt.s32.totalorder %s1511, 0
        %s1513 = scalar_select %p1512, %s1511, 0
        %s1514 = smul.addr %s1513, 4
        %s1515 = scalar_lea.vmem %s22, %s1514
        %p1516 = pneg %p697
        %p1517 = pneg %p694
        %s1518 = ssub.s32 %s46, 2
        %p1519 = scmp.gt.s32.totalorder %s1518, 0
        %s1520 = scalar_select %p1519, %s1518, 0
        %p1521 = scmp.lt.s32.totalorder %s1520, 0
        %s1522 = scalar_select %p1521, %s1520, 0
        %s1523 = scalar_lea.vmem %s23, %s1522
        %p1524 = pneg %p729
        %p1525 = pneg %p726
        %p1526 = pneg %p761
        %p1527 = pneg %p758
        %s1528 = sand.u32 %s748, 1
        %s1529 = scalar_lea.sflag [#allocation5], %s1528
        %s1530 = sand.u32 %s748, 1
        %s1531 = smul.addr %s1530, 16
        %s1532 = scalar_lea.vmem [#allocation24], %s1531
        %p1533 = pneg %p791
        %p1534 = pneg %p788
        %s1535 = sand.u32 %s778, 1
        %s1536 = scalar_lea.sflag [#allocation26], %s1535
        %s1537 = sand.u32 %s778, 1
        %s1538 = smul.addr %s1537, 8
        %s1539 = scalar_lea.vmem [#allocation25], %s1538
        %p1540 = scmp.lt.s32.totalorder %s46, 1
        %s1541 = scalar_select %p1540, %s46, 1
        %p1542 = scmp.lt.s32.totalorder %s1541, 1
        %s1543 = scalar_select %p1542, %s1541, 1
        %s1544 = smul.addr %s1543, 4
        %s1545 = smul.addr %s1544, 4
        %s1546 = scalar_lea.vmem %s4, %s1545
        %p1547 = scmp.lt.s32.totalorder %s46, 1
        %s1548 = scalar_select %p1547, %s46, 1
        %p1549 = scmp.lt.s32.totalorder %s46, 1
        %s1550 = scalar_select %p1549, %s46, 1
        %p1551 = scmp.lt.s32.totalorder %s1550, 1
        %s1552 = scalar_select %p1551, %s1550, 1
        %s1553 = smul.addr %s1552, 4
        %s1554 = smul.addr %s1553, 4
        %s1555 = scalar_lea.vmem %s5, %s1554
        %p1556 = scmp.lt.s32.totalorder %s46, 1
        %s1557 = scalar_select %p1556, %s46, 1
        %p1558 = scmp.lt.s32.totalorder %s46, 1
        %s1559 = scalar_select %p1558, %s46, 1
        %p1560 = scmp.lt.s32.totalorder %s1559, 1
        %s1561 = scalar_select %p1560, %s1559, 1
        %s1562 = smul.addr %s1561, 4
        %s1563 = smul.addr %s1562, 4
        %s1564 = scalar_lea.vmem %s6, %s1563
        %p1565 = scmp.lt.s32.totalorder %s46, 1
        %s1566 = scalar_select %p1565, %s46, 1
        %p1567 = scmp.lt.s32.totalorder %s46, 1
        %s1568 = scalar_select %p1567, %s46, 1
        %p1569 = scmp.lt.s32.totalorder %s46, 1
        %s1570 = scalar_select %p1569, %s46, 1
        %p1571 = scmp.lt.s32.totalorder %s46, 1
        %s1572 = scalar_select %p1571, %s46, 1
        %p1573 = scmp.lt.s32.totalorder %s46, 1
        %s1574 = scalar_select %p1573, %s46, 1
        %p1575 = scmp.lt.s32.totalorder %s46, 1
        %s1576 = scalar_select %p1575, %s46, 1
        %p1577 = scmp.lt.s32.totalorder %s46, 1
        %s1578 = scalar_select %p1577, %s46, 1
        %p1579 = scmp.lt.s32.totalorder %s46, 1
        %s1580 = scalar_select %p1579, %s46, 1
        %p1581 = scmp.lt.s32.totalorder %s46, 1
        %s1582 = scalar_select %p1581, %s46, 1
        %p1583 = scmp.lt.s32.totalorder %s1582, 1
        %s1584 = scalar_select %p1583, %s1582, 1
        %s1585 = smul.addr %s1584, 8
        %s1586 = smul.addr %s1585, 4
        %s1587 = scalar_lea.vmem %s14, %s1586
        %p1588 = scmp.lt.s32.totalorder %s46, 1
        %s1589 = scalar_select %p1588, %s46, 1
        %p1590 = scmp.lt.s32.totalorder %s46, 1
        %s1591 = scalar_select %p1590, %s46, 1
        %p1592 = scmp.lt.s32.totalorder %s46, 1
        %s1593 = scalar_select %p1592, %s46, 1
        %p1594 = scmp.lt.s32.totalorder %s46, 1
        %s1595 = scalar_select %p1594, %s46, 1
        %p1596 = scmp.lt.s32.totalorder %s46, 1
        %s1597 = scalar_select %p1596, %s46, 1
        %p1598 = scmp.lt.s32.totalorder %s46, 1
        %s1599 = scalar_select %p1598, %s46, 1
        %p1600 = scmp.lt.s32.totalorder %s46, 1
        %s1601 = scalar_select %p1600, %s46, 1
        %p1602 = scmp.lt.s32.totalorder %s1601, 1
        %s1603 = scalar_select %p1602, %s1601, 1
        %s1604 = scalar_lea.vmem %s20, %s1603
        %p1605 = scmp.lt.s32.totalorder %s46, 1
        %s1606 = scalar_select %p1605, %s46, 1
        %p1607 = scmp.lt.s32.totalorder %s46, 1
        %s1608 = scalar_select %p1607, %s46, 1
        %s1609 = ssub.s32 %s46, 2
        %p1610 = scmp.gt.s32.totalorder %s1609, 0
        %s1611 = scalar_select %p1610, %s1609, 0
        %p1612 = scmp.lt.s32.totalorder %s1611, 0
        %s1613 = scalar_select %p1612, %s1611, 0
        %s1614 = smul.addr %s1613, 4
        %s1615 = scalar_lea.vmem %s22, %s1614
        %s1616 = ssub.s32 %s46, 2
        %p1617 = scmp.gt.s32.totalorder %s1616, 0
        %s1618 = scalar_select %p1617, %s1616, 0
        %s1619 = ssub.s32 %s46, 2
        %p1620 = scmp.gt.s32.totalorder %s1619, 0
        %s1621 = scalar_select %p1620, %s1619, 0
        %p1622 = scmp.lt.s32.totalorder %s1621, 0
        %s1623 = scalar_select %p1622, %s1621, 0
        %s1624 = scalar_lea.vmem %s23, %s1623
        %s1625 = ssub.s32 %s46, 2
        %p1626 = scmp.gt.s32.totalorder %s1625, 0
        %s1627 = scalar_select %p1626, %s1625, 0
        %s1628 = ssub.s32 %s46, 2
        %p1629 = scmp.gt.s32.totalorder %s1628, 0
        %s1630 = scalar_select %p1629, %s1628, 0
        %p1631 = scmp.lt.s32.totalorder %s46, 1
        %s1632 = scalar_select %p1631, %s46, 1
        %p1634 = scmp.eq.s32.totalorder %s46, 0
        // Predicated region
        $region185: #{tpu_custom_call.1} parent=115 // pred_check
          %p1635 = pneg %p1634
        $region186: #{tpu_custom_call.1} parent=115 // pred_check_branch
          %1637 = sbr.rel (%p1635) target = $region188
        $region187: #{tpu_custom_call.1} parent=115 // pred_region
          %v1638 = vld [vmem:[#allocation3] sm:$0xff]
          %v1639 = vld [vmem:[#allocation3 + $0x8] sm:$0xff]
          %vm1640 = vcmask 261120
          %1641 = vst.msk [vmem:[#allocation2] sm:$0xff] %vm1640, %v1638
          %1642 = vst.msk [vmem:[#allocation2 + $0x8] sm:$0xff] %vm1640, %v1639
        $region188: #{tpu_custom_call.1} parent=115 // pred_fallthru
          _
        %p1643 = scmp.lt.s32.totalorder %s46, 2
        // Predicated region
        $region189: #{tpu_custom_call.1} parent=115 // pred_check
          %p1644 = pneg %p1643
        $region190: #{tpu_custom_call.1} parent=115 // pred_check_branch
          %1646 = sbr.rel (%p1644) target = $region192
        $region191: #{tpu_custom_call.1} parent=115 // pred_region
          %v1647 = vld [vmem:[#allocation2] sm:$0xff]
          %v1648 = vld [vmem:[#allocation2 + $0x8] sm:$0xff]
          %v1649 = vpack.c.bf16 %v1647, %v1647
          %v1650 = vpack.c.bf16 %v1648, %v1648
          %vm1651 = vcmask 257024
          %1652 = vst.msk [vmem:[%s1539] sm:$0xf] %vm1651, %v1649
          %1653 = vst.msk [vmem:[%s1539 + $0x4] sm:$0xf] %vm1651, %v1650
          %v1654 = vld [vmem:[%s1546] sm:$0xf]
          %v1655 = vld [vmem:[%s1546 + $0x4] sm:$0xf]
          %v1656 = vld [vmem:[%s1546 + $0x8] sm:$0xf]
          %v1657 = vld [vmem:[%s1546 + $0xc] sm:$0xf]
          %v1658 = vld [vmem:[%s1555] sm:$0xf]
          %v1659 = vld [vmem:[%s1555 + $0x4] sm:$0xf]
          %v1660 = vld [vmem:[%s1555 + $0x8] sm:$0xf]
          %v1661 = vld [vmem:[%s1555 + $0xc] sm:$0xf]
          %v1662 = vld [vmem:[%s1564] sm:$0xf]
          %v1663 = vld [vmem:[%s1564 + $0x4] sm:$0xf]
          %v1664 = vld [vmem:[%s1564 + $0x8] sm:$0xf]
          %v1665 = vld [vmem:[%s1564 + $0xc] sm:$0xf]
          %v1666 = vld [vmem:[%s1255] sm:$0xf]
          %v1667 = vld [vmem:[%s1255 + $0x4] sm:$0xf]
          %v1668 = vld [vmem:[%s1255 + $0x8] sm:$0xf]
          %v1669 = vld [vmem:[%s1255 + $0xc] sm:$0xf]
          %v1670 = vld [vmem:[#allocation8] sm:$0xff]
          %v1671 = vpack.c.bf16 %v1648, %v1647
          %v1676 = vunpack.c.l.b16 %v1654
          %v1677 = vunpack.c.l.b16 %v1655
          %v1678 = vunpack.c.l.b16 %v1656
          %v1679 = vunpack.c.l.b16 %v1657
          %v1680 = vpack.c.b16 %v1677, %v1676
          %v1681 = vpack.c.b16 %v1679, %v1678
          %vm1684 = vcmask 261120
          %v1686 = vsel %vm1684, %v1671, 0
          %1688 = vmatpush.bf16.msra.mxu0 0
          %1689 = vmatpush.bf16.msra.mxu0 0
          %1690 = vmatpush.bf16.msra.mxu0 0
          %1691 = vmatpush.bf16.msra.mxu0 0
          %1692 = vmatpush.bf16.msra.mxu0 0
          %1693 = vmatpush.bf16.msra.mxu0 0
          %1694 = vmatpush.bf16.msra.mxu0 %v1681
          %1695 = vmatpush.bf16.msra.mxu0 %v1680
          %1696 = vmatmul.bf16.gmra.mxu0 %v1686
          %v1697 = vpop.f32.mrf.mxu0
          %v1698 = vadd.f32 0.0, %v1697
          %v1699 = vpop.f32.mrf.mxu0
          %v1700 = vadd.f32 0.0, %v1699
          %1701 = vdwg.mxu0
          %1704 = vrot.lane.b32.xlu0 %v1698, 120
          %v1705 = vpop.permute.xlu0 %1704
          %1706 = vrot.lane.b32.xlu0 %v1700, 120
          %v1707 = vpop.permute.xlu0 %1706
          %1710 = vrot.lane.b32.xlu0 %v1698, 112
          %v1711 = vpop.permute.xlu0 %1710
          %1712 = vrot.lane.b32.xlu0 %v1700, 112
          %v1713 = vpop.permute.xlu0 %1712
          %1716 = vrot.lane.b32.xlu0 %v1698, 104
          %v1717 = vpop.permute.xlu0 %1716
          %1718 = vrot.lane.b32.xlu0 %v1700, 104
          %v1719 = vpop.permute.xlu0 %1718
          %v1722 = vrot.slane %v1711, 4
          %vm1723 = vcmask 1047556
          %v1724 = vsel %vm1723, %v1722, %v1698
          %v1725 = vrot.slane %v1698, 4
          %v1726 = vsel %vm1723, %v1711, %v1725
          %v1728 = vunpack.c.l.s4 1983009808
          %v1729 = vunpack.c.0.s8 %v1728
          %v1730 = vperm.slane %v1724, %v1729
          %v1732 = vunpack.c.l.s4 1983009808
          %v1733 = vunpack.c.0.s8 %v1732
          %v1734 = vperm.slane %v1726, %v1733
          %v1735 = vrot.slane %v1717, 4
          %v1736 = vsel %vm1723, %v1735, %v1705
          %v1737 = vrot.slane %v1705, 4
          %v1738 = vsel %vm1723, %v1717, %v1737
          %v1740 = vunpack.c.l.s4 1983009808
          %v1741 = vunpack.c.0.s8 %v1740
          %v1742 = vperm.slane %v1736, %v1741
          %v1744 = vunpack.c.l.s4 1983009808
          %v1745 = vunpack.c.0.s8 %v1744
          %v1746 = vperm.slane %v1738, %v1745
          %v1747 = vrot.slane %v1742, 4
          %v1748 = vsel %vm1723, %v1747, %v1730
          %v1749 = vrot.slane %v1730, 4
          %v1750 = vsel %vm1723, %v1742, %v1749
          %v1752 = vunpack.c.l.s4 1934713408
          %v1753 = vunpack.c.0.s8 %v1752
          %v1754 = vperm.slane %v1748, %v1753
          %v1756 = vunpack.c.l.s4 1934713408
          %v1757 = vunpack.c.0.s8 %v1756
          %v1758 = vperm.slane %v1750, %v1757
          %v1759 = vrot.slane %v1746, 4
          %v1760 = vsel %vm1723, %v1759, %v1734
          %v1761 = vrot.slane %v1734, 4
          %v1762 = vsel %vm1723, %v1746, %v1761
          %v1764 = vunpack.c.l.s4 1934713408
          %v1765 = vunpack.c.0.s8 %v1764
          %v1766 = vperm.slane %v1760, %v1765
          %v1768 = vunpack.c.l.s4 1934713408
          %v1769 = vunpack.c.0.s8 %v1768
          %v1770 = vperm.slane %v1762, %v1769
          %v1771 = vrot.slane %v1754, 4
          %v1772 = vsel %vm1723, 0.0, %v1771
          %v1773 = vrot.slane %v1758, 4
          %v1774 = vsel %vm1723, 0.0, %v1773
          %v1775 = vrot.slane %v1766, 4
          %v1776 = vsel %vm1723, 0.0, %v1775
          %v1777 = vrot.slane %v1770, 4
          %v1778 = vsel %vm1723, 0.0, %v1777
          %v1779 = vrot.slane %v1713, 4
          %v1780 = vsel %vm1723, %v1779, %v1700
          %v1781 = vrot.slane %v1700, 4
          %v1782 = vsel %vm1723, %v1713, %v1781
          %v1784 = vunpack.c.l.s4 1983009808
          %v1785 = vunpack.c.0.s8 %v1784
          %v1786 = vperm.slane %v1780, %v1785
          %v1788 = vunpack.c.l.s4 1983009808
          %v1789 = vunpack.c.0.s8 %v1788
          %v1790 = vperm.slane %v1782, %v1789
          %v1791 = vrot.slane %v1719, 4
          %v1792 = vsel %vm1723, %v1791, %v1707
          %v1793 = vrot.slane %v1707, 4
          %v1794 = vsel %vm1723, %v1719, %v1793
          %v1796 = vunpack.c.l.s4 1983009808
          %v1797 = vunpack.c.0.s8 %v1796
          %v1798 = vperm.slane %v1792, %v1797
          %v1800 = vunpack.c.l.s4 1983009808
          %v1801 = vunpack.c.0.s8 %v1800
          %v1802 = vperm.slane %v1794, %v1801
          %v1803 = vrot.slane %v1798, 4
          %v1804 = vsel %vm1723, %v1803, %v1786
          %v1805 = vrot.slane %v1786, 4
          %v1806 = vsel %vm1723, %v1798, %v1805
          %v1808 = vunpack.c.l.s4 1934713408
          %v1809 = vunpack.c.0.s8 %v1808
          %v1810 = vperm.slane %v1804, %v1809
          %v1812 = vunpack.c.l.s4 1934713408
          %v1813 = vunpack.c.0.s8 %v1812
          %v1814 = vperm.slane %v1806, %v1813
          %v1815 = vrot.slane %v1802, 4
          %v1816 = vsel %vm1723, %v1815, %v1790
          %v1817 = vrot.slane %v1790, 4
          %v1818 = vsel %vm1723, %v1802, %v1817
          %v1820 = vunpack.c.l.s4 1934713408
          %v1821 = vunpack.c.0.s8 %v1820
          %v1822 = vperm.slane %v1816, %v1821
          %v1824 = vunpack.c.l.s4 1934713408
          %v1825 = vunpack.c.0.s8 %v1824
          %v1826 = vperm.slane %v1818, %v1825
          %v1827 = vrot.slane %v1810, 4
          %v1828 = vsel %vm1723, 0.0, %v1827
          %v1829 = vrot.slane %v1814, 4
          %v1830 = vsel %vm1723, 0.0, %v1829
          %v1831 = vrot.slane %v1822, 4
          %v1832 = vsel %vm1723, 0.0, %v1831
          %v1833 = vrot.slane %v1826, 4
          %v1834 = vsel %vm1723, 0.0, %v1833
          %v1835 = vsel %vm1723, %v1773, %v1754
          %v1837 = vunpack.c.l.s4 1983009808
          %v1838 = vunpack.c.0.s8 %v1837
          %v1839 = vperm.slane %v1835, %v1838
          %v1840 = vrot.slane %v1774, 4
          %v1841 = vsel %vm1723, %v1840, %v1772
          %v1843 = vunpack.c.l.s4 1983009808
          %v1844 = vunpack.c.0.s8 %v1843
          %v1845 = vperm.slane %v1841, %v1844
          %v1846 = vsel %vm1723, %v1777, %v1766
          %v1848 = vunpack.c.l.s4 1983009808
          %v1849 = vunpack.c.0.s8 %v1848
          %v1850 = vperm.slane %v1846, %v1849
          %v1851 = vrot.slane %v1778, 4
          %v1852 = vsel %vm1723, %v1851, %v1776
          %v1854 = vunpack.c.l.s4 1983009808
          %v1855 = vunpack.c.0.s8 %v1854
          %v1856 = vperm.slane %v1852, %v1855
          %v1857 = vrot.slane %v1845, 4
          %v1858 = vsel %vm1723, %v1857, %v1839
          %v1859 = vrot.slane %v1839, 4
          %v1860 = vsel %vm1723, %v1845, %v1859
          %v1862 = vunpack.c.l.s4 1934713408
          %v1863 = vunpack.c.0.s8 %v1862
          %v1864 = vperm.slane %v1858, %v1863
          %v1866 = vunpack.c.l.s4 1934713408
          %v1867 = vunpack.c.0.s8 %v1866
          %v1868 = vperm.slane %v1860, %v1867
          %v1869 = vrot.slane %v1856, 4
          %v1870 = vsel %vm1723, %v1869, %v1850
          %v1871 = vrot.slane %v1850, 4
          %v1872 = vsel %vm1723, %v1856, %v1871
          %v1874 = vunpack.c.l.s4 1934713408
          %v1875 = vunpack.c.0.s8 %v1874
          %v1876 = vperm.slane %v1870, %v1875
          %v1878 = vunpack.c.l.s4 1934713408
          %v1879 = vunpack.c.0.s8 %v1878
          %v1880 = vperm.slane %v1872, %v1879
          %v1881 = vrot.slane %v1876, 4
          %v1882 = vsel %vm1723, %v1881, %v1864
          %v1883 = vrot.slane %v1864, 4
          %v1884 = vsel %vm1723, %v1876, %v1883
          %v1885 = vrot.slane %v1880, 4
          %v1886 = vsel %vm1723, %v1885, %v1868
          %v1887 = vrot.slane %v1868, 4
          %v1888 = vsel %vm1723, %v1880, %v1887
          %v1889 = vsel %vm1723, %v1829, %v1810
          %v1891 = vunpack.c.l.s4 1983009808
          %v1892 = vunpack.c.0.s8 %v1891
          %v1893 = vperm.slane %v1889, %v1892
          %v1894 = vrot.slane %v1830, 4
          %v1895 = vsel %vm1723, %v1894, %v1828
          %v1897 = vunpack.c.l.s4 1983009808
          %v1898 = vunpack.c.0.s8 %v1897
          %v1899 = vperm.slane %v1895, %v1898
          %v1900 = vsel %vm1723, %v1833, %v1822
          %v1902 = vunpack.c.l.s4 1983009808
          %v1903 = vunpack.c.0.s8 %v1902
          %v1904 = vperm.slane %v1900, %v1903
          %v1905 = vrot.slane %v1834, 4
          %v1906 = vsel %vm1723, %v1905, %v1832
          %v1908 = vunpack.c.l.s4 1983009808
          %v1909 = vunpack.c.0.s8 %v1908
          %v1910 = vperm.slane %v1906, %v1909
          %v1911 = vrot.slane %v1899, 4
          %v1912 = vsel %vm1723, %v1911, %v1893
          %v1913 = vrot.slane %v1893, 4
          %v1914 = vsel %vm1723, %v1899, %v1913
          %v1916 = vunpack.c.l.s4 1934713408
          %v1917 = vunpack.c.0.s8 %v1916
          %v1918 = vperm.slane %v1912, %v1917
          %v1920 = vunpack.c.l.s4 1934713408
          %v1921 = vunpack.c.0.s8 %v1920
          %v1922 = vperm.slane %v1914, %v1921
          %v1923 = vrot.slane %v1910, 4
          %v1924 = vsel %vm1723, %v1923, %v1904
          %v1925 = vrot.slane %v1904, 4
          %v1926 = vsel %vm1723, %v1910, %v1925
          %v1928 = vunpack.c.l.s4 1934713408
          %v1929 = vunpack.c.0.s8 %v1928
          %v1930 = vperm.slane %v1924, %v1929
          %v1932 = vunpack.c.l.s4 1934713408
          %v1933 = vunpack.c.0.s8 %v1932
          %v1934 = vperm.slane %v1926, %v1933
          %v1935 = vrot.slane %v1930, 4
          %v1936 = vsel %vm1723, %v1935, %v1918
          %v1937 = vrot.slane %v1918, 4
          %v1938 = vsel %vm1723, %v1930, %v1937
          %v1939 = vrot.slane %v1934, 4
          %v1940 = vsel %vm1723, %v1939, %v1922
          %v1941 = vrot.slane %v1922, 4
          %v1942 = vsel %vm1723, %v1934, %v1941
          %v1947 = vunpack.c.l.b16 %v1658
          %v1948 = vunpack.c.l.b16 %v1659
          %v1949 = vunpack.c.l.b16 %v1660
          %v1950 = vunpack.c.l.b16 %v1661
          %v1951 = vpack.c.b16 %v1948, %v1947
          %v1952 = vpack.c.b16 %v1950, %v1949
          %1955 = vmatpush.bf16.msra.mxu0 0
          %1956 = vmatpush.bf16.msra.mxu0 0
          %1957 = vmatpush.bf16.msra.mxu0 0
          %1958 = vmatpush.bf16.msra.mxu0 0
          %1959 = vmatpush.bf16.msra.mxu0 0
          %1960 = vmatpush.bf16.msra.mxu0 0
          %1961 = vmatpush.bf16.msra.mxu0 %v1952
          %1962 = vmatpush.bf16.msra.mxu0 %v1951
          %1963 = vmatmul.bf16.gmra.mxu0 %v1686
          %v1964 = vpop.f32.mrf.mxu0
          %v1965 = vadd.f32 0.0, %v1964
          %v1966 = vpop.f32.mrf.mxu0
          %v1967 = vadd.f32 0.0, %v1966
          %1968 = vdwg.mxu0
          %1971 = vrot.lane.b32.xlu0 %v1965, 120
          %v1972 = vpop.permute.xlu0 %1971
          %1973 = vrot.lane.b32.xlu0 %v1967, 120
          %v1974 = vpop.permute.xlu0 %1973
          %1977 = vrot.lane.b32.xlu0 %v1965, 112
          %v1978 = vpop.permute.xlu0 %1977
          %1979 = vrot.lane.b32.xlu0 %v1967, 112
          %v1980 = vpop.permute.xlu0 %1979
          %1983 = vrot.lane.b32.xlu0 %v1965, 104
          %v1984 = vpop.permute.xlu0 %1983
          %1985 = vrot.lane.b32.xlu0 %v1967, 104
          %v1986 = vpop.permute.xlu0 %1985
          %v1989 = vrot.slane %v1978, 4
          %v1990 = vsel %vm1723, %v1989, %v1965
          %v1991 = vrot.slane %v1965, 4
          %v1992 = vsel %vm1723, %v1978, %v1991
          %v1994 = vunpack.c.l.s4 1983009808
          %v1995 = vunpack.c.0.s8 %v1994
          %v1996 = vperm.slane %v1990, %v1995
          %v1998 = vunpack.c.l.s4 1983009808
          %v1999 = vunpack.c.0.s8 %v1998
          %v2000 = vperm.slane %v1992, %v1999
          %v2001 = vrot.slane %v1984, 4
          %v2002 = vsel %vm1723, %v2001, %v1972
          %v2003 = vrot.slane %v1972, 4
          %v2004 = vsel %vm1723, %v1984, %v2003
          %v2006 = vunpack.c.l.s4 1983009808
          %v2007 = vunpack.c.0.s8 %v2006
          %v2008 = vperm.slane %v2002, %v2007
          %v2010 = vunpack.c.l.s4 1983009808
          %v2011 = vunpack.c.0.s8 %v2010
          %v2012 = vperm.slane %v2004, %v2011
          %v2013 = vrot.slane %v2008, 4
          %v2014 = vsel %vm1723, %v2013, %v1996
          %v2015 = vrot.slane %v1996, 4
          %v2016 = vsel %vm1723, %v2008, %v2015
          %v2018 = vunpack.c.l.s4 1934713408
          %v2019 = vunpack.c.0.s8 %v2018
          %v2020 = vperm.slane %v2014, %v2019
          %v2022 = vunpack.c.l.s4 1934713408
          %v2023 = vunpack.c.0.s8 %v2022
          %v2024 = vperm.slane %v2016, %v2023
          %v2025 = vrot.slane %v2012, 4
          %v2026 = vsel %vm1723, %v2025, %v2000
          %v2027 = vrot.slane %v2000, 4
          %v2028 = vsel %vm1723, %v2012, %v2027
          %v2030 = vunpack.c.l.s4 1934713408
          %v2031 = vunpack.c.0.s8 %v2030
          %v2032 = vperm.slane %v2026, %v2031
          %v2034 = vunpack.c.l.s4 1934713408
          %v2035 = vunpack.c.0.s8 %v2034
          %v2036 = vperm.slane %v2028, %v2035
          %v2037 = vrot.slane %v2020, 4
          %v2038 = vsel %vm1723, 0.0, %v2037
          %v2039 = vrot.slane %v2024, 4
          %v2040 = vsel %vm1723, 0.0, %v2039
          %v2041 = vrot.slane %v2032, 4
          %v2042 = vsel %vm1723, 0.0, %v2041
          %v2043 = vrot.slane %v2036, 4
          %v2044 = vsel %vm1723, 0.0, %v2043
          %v2045 = vrot.slane %v1980, 4
          %v2046 = vsel %vm1723, %v2045, %v1967
          %v2047 = vrot.slane %v1967, 4
          %v2048 = vsel %vm1723, %v1980, %v2047
          %v2050 = vunpack.c.l.s4 1983009808
          %v2051 = vunpack.c.0.s8 %v2050
          %v2052 = vperm.slane %v2046, %v2051
          %v2054 = vunpack.c.l.s4 1983009808
          %v2055 = vunpack.c.0.s8 %v2054
          %v2056 = vperm.slane %v2048, %v2055
          %v2057 = vrot.slane %v1986, 4
          %v2058 = vsel %vm1723, %v2057, %v1974
          %v2059 = vrot.slane %v1974, 4
          %v2060 = vsel %vm1723, %v1986, %v2059
          %v2062 = vunpack.c.l.s4 1983009808
          %v2063 = vunpack.c.0.s8 %v2062
          %v2064 = vperm.slane %v2058, %v2063
          %v2066 = vunpack.c.l.s4 1983009808
          %v2067 = vunpack.c.0.s8 %v2066
          %v2068 = vperm.slane %v2060, %v2067
          %v2069 = vrot.slane %v2064, 4
          %v2070 = vsel %vm1723, %v2069, %v2052
          %v2071 = vrot.slane %v2052, 4
          %v2072 = vsel %vm1723, %v2064, %v2071
          %v2074 = vunpack.c.l.s4 1934713408
          %v2075 = vunpack.c.0.s8 %v2074
          %v2076 = vperm.slane %v2070, %v2075
          %v2078 = vunpack.c.l.s4 1934713408
          %v2079 = vunpack.c.0.s8 %v2078
          %v2080 = vperm.slane %v2072, %v2079
          %v2081 = vrot.slane %v2068, 4
          %v2082 = vsel %vm1723, %v2081, %v2056
          %v2083 = vrot.slane %v2056, 4
          %v2084 = vsel %vm1723, %v2068, %v2083
          %v2086 = vunpack.c.l.s4 1934713408
          %v2087 = vunpack.c.0.s8 %v2086
          %v2088 = vperm.slane %v2082, %v2087
          %v2090 = vunpack.c.l.s4 1934713408
          %v2091 = vunpack.c.0.s8 %v2090
          %v2092 = vperm.slane %v2084, %v2091
          %v2093 = vrot.slane %v2076, 4
          %v2094 = vsel %vm1723, 0.0, %v2093
          %v2095 = vrot.slane %v2080, 4
          %v2096 = vsel %vm1723, 0.0, %v2095
          %v2097 = vrot.slane %v2088, 4
          %v2098 = vsel %vm1723, 0.0, %v2097
          %v2099 = vrot.slane %v2092, 4
          %v2100 = vsel %vm1723, 0.0, %v2099
          %v2101 = vsel %vm1723, %v2039, %v2020
          %v2103 = vunpack.c.l.s4 1983009808
          %v2104 = vunpack.c.0.s8 %v2103
          %v2105 = vperm.slane %v2101, %v2104
          %v2106 = vrot.slane %v2040, 4
          %v2107 = vsel %vm1723, %v2106, %v2038
          %v2109 = vunpack.c.l.s4 1983009808
          %v2110 = vunpack.c.0.s8 %v2109
          %v2111 = vperm.slane %v2107, %v2110
          %v2112 = vsel %vm1723, %v2043, %v2032
          %v2114 = vunpack.c.l.s4 1983009808
          %v2115 = vunpack.c.0.s8 %v2114
          %v2116 = vperm.slane %v2112, %v2115
          %v2117 = vrot.slane %v2044, 4
          %v2118 = vsel %vm1723, %v2117, %v2042
          %v2120 = vunpack.c.l.s4 1983009808
          %v2121 = vunpack.c.0.s8 %v2120
          %v2122 = vperm.slane %v2118, %v2121
          %v2123 = vrot.slane %v2111, 4
          %v2124 = vsel %vm1723, %v2123, %v2105
          %v2125 = vrot.slane %v2105, 4
          %v2126 = vsel %vm1723, %v2111, %v2125
          %v2128 = vunpack.c.l.s4 1934713408
          %v2129 = vunpack.c.0.s8 %v2128
          %v2130 = vperm.slane %v2124, %v2129
          %v2132 = vunpack.c.l.s4 1934713408
          %v2133 = vunpack.c.0.s8 %v2132
          %v2134 = vperm.slane %v2126, %v2133
          %v2135 = vrot.slane %v2122, 4
          %v2136 = vsel %vm1723, %v2135, %v2116
          %v2137 = vrot.slane %v2116, 4
          %v2138 = vsel %vm1723, %v2122, %v2137
          %v2140 = vunpack.c.l.s4 1934713408
          %v2141 = vunpack.c.0.s8 %v2140
          %v2142 = vperm.slane %v2136, %v2141
          %v2144 = vunpack.c.l.s4 1934713408
          %v2145 = vunpack.c.0.s8 %v2144
          %v2146 = vperm.slane %v2138, %v2145
          %v2147 = vrot.slane %v2142, 4
          %v2148 = vsel %vm1723, %v2147, %v2130
          %v2149 = vrot.slane %v2130, 4
          %v2150 = vsel %vm1723, %v2142, %v2149
          %v2151 = vrot.slane %v2146, 4
          %v2152 = vsel %vm1723, %v2151, %v2134
          %v2153 = vrot.slane %v2134, 4
          %v2154 = vsel %vm1723, %v2146, %v2153
          %v2155 = vsel %vm1723, %v2095, %v2076
          %v2157 = vunpack.c.l.s4 1983009808
          %v2158 = vunpack.c.0.s8 %v2157
          %v2159 = vperm.slane %v2155, %v2158
          %v2160 = vrot.slane %v2096, 4
          %v2161 = vsel %vm1723, %v2160, %v2094
          %v2163 = vunpack.c.l.s4 1983009808
          %v2164 = vunpack.c.0.s8 %v2163
          %v2165 = vperm.slane %v2161, %v2164
          %v2166 = vsel %vm1723, %v2099, %v2088
          %v2168 = vunpack.c.l.s4 1983009808
          %v2169 = vunpack.c.0.s8 %v2168
          %v2170 = vperm.slane %v2166, %v2169
          %v2171 = vrot.slane %v2100, 4
          %v2172 = vsel %vm1723, %v2171, %v2098
          %v2174 = vunpack.c.l.s4 1983009808
          %v2175 = vunpack.c.0.s8 %v2174
          %v2176 = vperm.slane %v2172, %v2175
          %v2177 = vrot.slane %v2165, 4
          %v2178 = vsel %vm1723, %v2177, %v2159
          %v2179 = vrot.slane %v2159, 4
          %v2180 = vsel %vm1723, %v2165, %v2179
          %v2182 = vunpack.c.l.s4 1934713408
          %v2183 = vunpack.c.0.s8 %v2182
          %v2184 = vperm.slane %v2178, %v2183
          %v2186 = vunpack.c.l.s4 1934713408
          %v2187 = vunpack.c.0.s8 %v2186
          %v2188 = vperm.slane %v2180, %v2187
          %v2189 = vrot.slane %v2176, 4
          %v2190 = vsel %vm1723, %v2189, %v2170
          %v2191 = vrot.slane %v2170, 4
          %v2192 = vsel %vm1723, %v2176, %v2191
          %v2194 = vunpack.c.l.s4 1934713408
          %v2195 = vunpack.c.0.s8 %v2194
          %v2196 = vperm.slane %v2190, %v2195
          %v2198 = vunpack.c.l.s4 1934713408
          %v2199 = vunpack.c.0.s8 %v2198
          %v2200 = vperm.slane %v2192, %v2199
          %v2201 = vrot.slane %v2196, 4
          %v2202 = vsel %vm1723, %v2201, %v2184
          %v2203 = vrot.slane %v2184, 4
          %v2204 = vsel %vm1723, %v2196, %v2203
          %v2205 = vrot.slane %v2200, 4
          %v2206 = vsel %vm1723, %v2205, %v2188
          %v2207 = vrot.slane %v2188, 4
          %v2208 = vsel %vm1723, %v2200, %v2207
          %v2213 = vunpack.c.l.b16 %v1662
          %v2214 = vunpack.c.l.b16 %v1663
          %v2215 = vunpack.c.l.b16 %v1664
          %v2216 = vunpack.c.l.b16 %v1665
          %v2217 = vpack.c.b16 %v2214, %v2213
          %v2218 = vpack.c.b16 %v2216, %v2215
          %2221 = vmatpush.bf16.msra.mxu0 0
          %2222 = vmatpush.bf16.msra.mxu0 0
          %2223 = vmatpush.bf16.msra.mxu0 0
          %2224 = vmatpush.bf16.msra.mxu0 0
          %2225 = vmatpush.bf16.msra.mxu0 0
          %2226 = vmatpush.bf16.msra.mxu0 0
          %2227 = vmatpush.bf16.msra.mxu0 %v2218
          %2228 = vmatpush.bf16.msra.mxu0 %v2217
          %2229 = vmatmul.bf16.gmra.mxu0 %v1686
          %v2230 = vpop.f32.mrf.mxu0
          %v2231 = vadd.f32 0.0, %v2230
          %v2232 = vpop.f32.mrf.mxu0
          %v2233 = vadd.f32 0.0, %v2232
          %2234 = vdwg.mxu0
          %2237 = vrot.lane.b32.xlu0 %v2231, 120
          %v2238 = vpop.permute.xlu0 %2237
          %2239 = vrot.lane.b32.xlu0 %v2233, 120
          %v2240 = vpop.permute.xlu0 %2239
          %2243 = vrot.lane.b32.xlu0 %v2231, 112
          %v2244 = vpop.permute.xlu0 %2243
          %2245 = vrot.lane.b32.xlu0 %v2233, 112
          %v2246 = vpop.permute.xlu0 %2245
          %2249 = vrot.lane.b32.xlu0 %v2231, 104
          %v2250 = vpop.permute.xlu0 %2249
          %2251 = vrot.lane.b32.xlu0 %v2233, 104
          %v2252 = vpop.permute.xlu0 %2251
          %v2255 = vrot.slane %v2244, 4
          %v2256 = vsel %vm1723, %v2255, %v2231
          %v2257 = vrot.slane %v2231, 4
          %v2258 = vsel %vm1723, %v2244, %v2257
          %v2260 = vunpack.c.l.s4 1983009808
          %v2261 = vunpack.c.0.s8 %v2260
          %v2262 = vperm.slane %v2256, %v2261
          %v2264 = vunpack.c.l.s4 1983009808
          %v2265 = vunpack.c.0.s8 %v2264
          %v2266 = vperm.slane %v2258, %v2265
          %v2267 = vrot.slane %v2250, 4
          %v2268 = vsel %vm1723, %v2267, %v2238
          %v2269 = vrot.slane %v2238, 4
          %v2270 = vsel %vm1723, %v2250, %v2269
          %v2272 = vunpack.c.l.s4 1983009808
          %v2273 = vunpack.c.0.s8 %v2272
          %v2274 = vperm.slane %v2268, %v2273
          %v2276 = vunpack.c.l.s4 1983009808
          %v2277 = vunpack.c.0.s8 %v2276
          %v2278 = vperm.slane %v2270, %v2277
          %v2279 = vrot.slane %v2274, 4
          %v2280 = vsel %vm1723, %v2279, %v2262
          %v2281 = vrot.slane %v2262, 4
          %v2282 = vsel %vm1723, %v2274, %v2281
          %v2284 = vunpack.c.l.s4 1934713408
          %v2285 = vunpack.c.0.s8 %v2284
          %v2286 = vperm.slane %v2280, %v2285
          %v2288 = vunpack.c.l.s4 1934713408
          %v2289 = vunpack.c.0.s8 %v2288
          %v2290 = vperm.slane %v2282, %v2289
          %v2291 = vrot.slane %v2278, 4
          %v2292 = vsel %vm1723, %v2291, %v2266
          %v2293 = vrot.slane %v2266, 4
          %v2294 = vsel %vm1723, %v2278, %v2293
          %v2296 = vunpack.c.l.s4 1934713408
          %v2297 = vunpack.c.0.s8 %v2296
          %v2298 = vperm.slane %v2292, %v2297
          %v2300 = vunpack.c.l.s4 1934713408
          %v2301 = vunpack.c.0.s8 %v2300
          %v2302 = vperm.slane %v2294, %v2301
          %v2303 = vrot.slane %v2286, 4
          %v2304 = vsel %vm1723, 0.0, %v2303
          %v2305 = vrot.slane %v2290, 4
          %v2306 = vsel %vm1723, 0.0, %v2305
          %v2307 = vrot.slane %v2298, 4
          %v2308 = vsel %vm1723, 0.0, %v2307
          %v2309 = vrot.slane %v2302, 4
          %v2310 = vsel %vm1723, 0.0, %v2309
          %v2311 = vrot.slane %v2246, 4
          %v2312 = vsel %vm1723, %v2311, %v2233
          %v2313 = vrot.slane %v2233, 4
          %v2314 = vsel %vm1723, %v2246, %v2313
          %v2316 = vunpack.c.l.s4 1983009808
          %v2317 = vunpack.c.0.s8 %v2316
          %v2318 = vperm.slane %v2312, %v2317
          %v2320 = vunpack.c.l.s4 1983009808
          %v2321 = vunpack.c.0.s8 %v2320
          %v2322 = vperm.slane %v2314, %v2321
          %v2323 = vrot.slane %v2252, 4
          %v2324 = vsel %vm1723, %v2323, %v2240
          %v2325 = vrot.slane %v2240, 4
          %v2326 = vsel %vm1723, %v2252, %v2325
          %v2328 = vunpack.c.l.s4 1983009808
          %v2329 = vunpack.c.0.s8 %v2328
          %v2330 = vperm.slane %v2324, %v2329
          %v2332 = vunpack.c.l.s4 1983009808
          %v2333 = vunpack.c.0.s8 %v2332
          %v2334 = vperm.slane %v2326, %v2333
          %v2335 = vrot.slane %v2330, 4
          %v2336 = vsel %vm1723, %v2335, %v2318
          %v2337 = vrot.slane %v2318, 4
          %v2338 = vsel %vm1723, %v2330, %v2337
          %v2340 = vunpack.c.l.s4 1934713408
          %v2341 = vunpack.c.0.s8 %v2340
          %v2342 = vperm.slane %v2336, %v2341
          %v2344 = vunpack.c.l.s4 1934713408
          %v2345 = vunpack.c.0.s8 %v2344
          %v2346 = vperm.slane %v2338, %v2345
          %v2347 = vrot.slane %v2334, 4
          %v2348 = vsel %vm1723, %v2347, %v2322
          %v2349 = vrot.slane %v2322, 4
          %v2350 = vsel %vm1723, %v2334, %v2349
          %v2352 = vunpack.c.l.s4 1934713408
          %v2353 = vunpack.c.0.s8 %v2352
          %v2354 = vperm.slane %v2348, %v2353
          %v2356 = vunpack.c.l.s4 1934713408
          %v2357 = vunpack.c.0.s8 %v2356
          %v2358 = vperm.slane %v2350, %v2357
          %v2359 = vrot.slane %v2342, 4
          %v2360 = vsel %vm1723, 0.0, %v2359
          %v2361 = vrot.slane %v2346, 4
          %v2362 = vsel %vm1723, 0.0, %v2361
          %v2363 = vrot.slane %v2354, 4
          %v2364 = vsel %vm1723, 0.0, %v2363
          %v2365 = vrot.slane %v2358, 4
          %v2366 = vsel %vm1723, 0.0, %v2365
          %v2367 = vsel %vm1723, %v2305, %v2286
          %v2369 = vunpack.c.l.s4 1983009808
          %v2370 = vunpack.c.0.s8 %v2369
          %v2371 = vperm.slane %v2367, %v2370
          %v2372 = vrot.slane %v2306, 4
          %v2373 = vsel %vm1723, %v2372, %v2304
          %v2375 = vunpack.c.l.s4 1983009808
          %v2376 = vunpack.c.0.s8 %v2375
          %v2377 = vperm.slane %v2373, %v2376
          %v2378 = vsel %vm1723, %v2309, %v2298
          %v2380 = vunpack.c.l.s4 1983009808
          %v2381 = vunpack.c.0.s8 %v2380
          %v2382 = vperm.slane %v2378, %v2381
          %v2383 = vrot.slane %v2310, 4
          %v2384 = vsel %vm1723, %v2383, %v2308
          %v2386 = vunpack.c.l.s4 1983009808
          %v2387 = vunpack.c.0.s8 %v2386
          %v2388 = vperm.slane %v2384, %v2387
          %v2389 = vrot.slane %v2377, 4
          %v2390 = vsel %vm1723, %v2389, %v2371
          %v2391 = vrot.slane %v2371, 4
          %v2392 = vsel %vm1723, %v2377, %v2391
          %v2394 = vunpack.c.l.s4 1934713408
          %v2395 = vunpack.c.0.s8 %v2394
          %v2396 = vperm.slane %v2390, %v2395
          %v2398 = vunpack.c.l.s4 1934713408
          %v2399 = vunpack.c.0.s8 %v2398
          %v2400 = vperm.slane %v2392, %v2399
          %v2401 = vrot.slane %v2388, 4
          %v2402 = vsel %vm1723, %v2401, %v2382
          %v2403 = vrot.slane %v2382, 4
          %v2404 = vsel %vm1723, %v2388, %v2403
          %v2406 = vunpack.c.l.s4 1934713408
          %v2407 = vunpack.c.0.s8 %v2406
          %v2408 = vperm.slane %v2402, %v2407
          %v2410 = vunpack.c.l.s4 1934713408
          %v2411 = vunpack.c.0.s8 %v2410
          %v2412 = vperm.slane %v2404, %v2411
          %v2413 = vrot.slane %v2408, 4
          %v2414 = vsel %vm1723, %v2413, %v2396
          %v2415 = vrot.slane %v2396, 4
          %v2416 = vsel %vm1723, %v2408, %v2415
          %v2417 = vrot.slane %v2412, 4
          %v2418 = vsel %vm1723, %v2417, %v2400
          %v2419 = vrot.slane %v2400, 4
          %v2420 = vsel %vm1723, %v2412, %v2419
          %v2421 = vsel %vm1723, %v2361, %v2342
          %v2423 = vunpack.c.l.s4 1983009808
          %v2424 = vunpack.c.0.s8 %v2423
          %v2425 = vperm.slane %v2421, %v2424
          %v2426 = vrot.slane %v2362, 4
          %v2427 = vsel %vm1723, %v2426, %v2360
          %v2429 = vunpack.c.l.s4 1983009808
          %v2430 = vunpack.c.0.s8 %v2429
          %v2431 = vperm.slane %v2427, %v2430
          %v2432 = vsel %vm1723, %v2365, %v2354
          %v2434 = vunpack.c.l.s4 1983009808
          %v2435 = vunpack.c.0.s8 %v2434
          %v2436 = vperm.slane %v2432, %v2435
          %v2437 = vrot.slane %v2366, 4
          %v2438 = vsel %vm1723, %v2437, %v2364
          %v2440 = vunpack.c.l.s4 1983009808
          %v2441 = vunpack.c.0.s8 %v2440
          %v2442 = vperm.slane %v2438, %v2441
          %v2443 = vrot.slane %v2431, 4
          %v2444 = vsel %vm1723, %v2443, %v2425
          %v2445 = vrot.slane %v2425, 4
          %v2446 = vsel %vm1723, %v2431, %v2445
          %v2448 = vunpack.c.l.s4 1934713408
          %v2449 = vunpack.c.0.s8 %v2448
          %v2450 = vperm.slane %v2444, %v2449
          %v2452 = vunpack.c.l.s4 1934713408
          %v2453 = vunpack.c.0.s8 %v2452
          %v2454 = vperm.slane %v2446, %v2453
          %v2455 = vrot.slane %v2442, 4
          %v2456 = vsel %vm1723, %v2455, %v2436
          %v2457 = vrot.slane %v2436, 4
          %v2458 = vsel %vm1723, %v2442, %v2457
          %v2460 = vunpack.c.l.s4 1934713408
          %v2461 = vunpack.c.0.s8 %v2460
          %v2462 = vperm.slane %v2456, %v2461
          %v2464 = vunpack.c.l.s4 1934713408
          %v2465 = vunpack.c.0.s8 %v2464
          %v2466 = vperm.slane %v2458, %v2465
          %v2467 = vrot.slane %v2462, 4
          %v2468 = vsel %vm1723, %v2467, %v2450
          %v2469 = vrot.slane %v2450, 4
          %v2470 = vsel %vm1723, %v2462, %v2469
          %v2471 = vrot.slane %v2466, 4
          %v2472 = vsel %vm1723, %v2471, %v2454
          %v2473 = vrot.slane %v2454, 4
          %v2474 = vsel %vm1723, %v2466, %v2473
          %v2475 = vpack.c.bf16 %v1882, %v1882
          %v2476 = vpack.c.bf16 %v1884, %v1884
          %v2477 = vpack.c.bf16 %v1886, %v1886
          %v2478 = vpack.c.bf16 %v1888, %v1888
          %v2479 = vpack.c.bf16 %v1936, %v1936
          %v2480 = vpack.c.bf16 %v1938, %v1938
          %v2481 = vpack.c.bf16 %v1940, %v1940
          %v2482 = vpack.c.bf16 %v1942, %v1942
          %v2483 = vpack.c.bf16 %v2148, %v2148
          %v2484 = vpack.c.bf16 %v2150, %v2150
          %v2485 = vpack.c.bf16 %v2152, %v2152
          %v2486 = vpack.c.bf16 %v2154, %v2154
          %v2487 = vpack.c.bf16 %v2202, %v2202
          %v2488 = vpack.c.bf16 %v2204, %v2204
          %v2489 = vpack.c.bf16 %v2206, %v2206
          %v2490 = vpack.c.bf16 %v2208, %v2208
          %vm2491 = vcmask 64512
          %v2493 = vsel %vm2491, %v2475, 0
          %v2496 = vsel %vm2491, %v2483, 0
          %2498 = vmatpush.bf16.xpose.msra.mxu0 0
          %2499 = vmatpush.bf16.xpose.msra.mxu0 0
          %2500 = vmatpush.bf16.xpose.msra.mxu0 0
          %2501 = vmatpush.bf16.xpose.msra.mxu0 0
          %2502 = vmatpush.bf16.xpose.msra.mxu0 0
          %2503 = vmatpush.bf16.xpose.msra.mxu0 0
          %2504 = vmatpush.bf16.xpose.msra.mxu0 0
          %2505 = vmatpush.bf16.xpose.msra.mxu0 %v2496
          %2506 = vmatmul.bf16.gmra.mxu0 %v2493
          %v2507 = vpop.f32.mrf.mxu0
          %v2508 = vadd.f32 0.0, %v2507
          %v2509 = vpop.f32.mrf.mxu0
          %2510 = vdwg.mxu0
          %v2512 = vsel %vm2491, %v2476, 0
          %v2515 = vsel %vm2491, %v2484, 0
          %2517 = vmatpush.bf16.xpose.msra.mxu0 0
          %2518 = vmatpush.bf16.xpose.msra.mxu0 0
          %2519 = vmatpush.bf16.xpose.msra.mxu0 0
          %2520 = vmatpush.bf16.xpose.msra.mxu0 0
          %2521 = vmatpush.bf16.xpose.msra.mxu0 0
          %2522 = vmatpush.bf16.xpose.msra.mxu0 0
          %2523 = vmatpush.bf16.xpose.msra.mxu0 0
          %2524 = vmatpush.bf16.xpose.msra.mxu0 %v2515
          %2525 = vmatmul.bf16.gmra.mxu0 %v2512
          %v2526 = vpop.f32.mrf.mxu0
          %v2527 = vadd.f32 0.0, %v2526
          %v2528 = vpop.f32.mrf.mxu0
          %2529 = vdwg.mxu0
          %v2531 = vsel %vm2491, %v2477, 0
          %v2534 = vsel %vm2491, %v2485, 0
          %2536 = vmatpush.bf16.xpose.msra.mxu0 0
          %2537 = vmatpush.bf16.xpose.msra.mxu0 0
          %2538 = vmatpush.bf16.xpose.msra.mxu0 0
          %2539 = vmatpush.bf16.xpose.msra.mxu0 0
          %2540 = vmatpush.bf16.xpose.msra.mxu0 0
          %2541 = vmatpush.bf16.xpose.msra.mxu0 0
          %2542 = vmatpush.bf16.xpose.msra.mxu0 0
          %2543 = vmatpush.bf16.xpose.msra.mxu0 %v2534
          %2544 = vmatmul.bf16.gmra.mxu0 %v2531
          %v2545 = vpop.f32.mrf.mxu0
          %v2546 = vadd.f32 0.0, %v2545
          %v2547 = vpop.f32.mrf.mxu0
          %2548 = vdwg.mxu0
          %v2550 = vsel %vm2491, %v2478, 0
          %v2553 = vsel %vm2491, %v2486, 0
          %2555 = vmatpush.bf16.xpose.msra.mxu0 0
          %2556 = vmatpush.bf16.xpose.msra.mxu0 0
          %2557 = vmatpush.bf16.xpose.msra.mxu0 0
          %2558 = vmatpush.bf16.xpose.msra.mxu0 0
          %2559 = vmatpush.bf16.xpose.msra.mxu0 0
          %2560 = vmatpush.bf16.xpose.msra.mxu0 0
          %2561 = vmatpush.bf16.xpose.msra.mxu0 0
          %2562 = vmatpush.bf16.xpose.msra.mxu0 %v2553
          %2563 = vmatmul.bf16.gmra.mxu0 %v2550
          %v2564 = vpop.f32.mrf.mxu0
          %v2565 = vadd.f32 0.0, %v2564
          %v2566 = vpop.f32.mrf.mxu0
          %2567 = vdwg.mxu0
          %v2569 = vsel %vm2491, %v2479, 0
          %v2572 = vsel %vm2491, %v2487, 0
          %2574 = vmatpush.bf16.xpose.msra.mxu0 0
          %2575 = vmatpush.bf16.xpose.msra.mxu0 0
          %2576 = vmatpush.bf16.xpose.msra.mxu0 0
          %2577 = vmatpush.bf16.xpose.msra.mxu0 0
          %2578 = vmatpush.bf16.xpose.msra.mxu0 0
          %2579 = vmatpush.bf16.xpose.msra.mxu0 0
          %2580 = vmatpush.bf16.xpose.msra.mxu0 0
          %2581 = vmatpush.bf16.xpose.msra.mxu0 %v2572
          %2582 = vmatmul.bf16.gmra.mxu0 %v2569
          %v2583 = vpop.f32.mrf.mxu0
          %v2584 = vadd.f32 0.0, %v2583
          %v2585 = vpop.f32.mrf.mxu0
          %2586 = vdwg.mxu0
          %v2588 = vsel %vm2491, %v2480, 0
          %v2591 = vsel %vm2491, %v2488, 0
          %2593 = vmatpush.bf16.xpose.msra.mxu0 0
          %2594 = vmatpush.bf16.xpose.msra.mxu0 0
          %2595 = vmatpush.bf16.xpose.msra.mxu0 0
          %2596 = vmatpush.bf16.xpose.msra.mxu0 0
          %2597 = vmatpush.bf16.xpose.msra.mxu0 0
          %2598 = vmatpush.bf16.xpose.msra.mxu0 0
          %2599 = vmatpush.bf16.xpose.msra.mxu0 0
          %2600 = vmatpush.bf16.xpose.msra.mxu0 %v2591
          %2601 = vmatmul.bf16.gmra.mxu0 %v2588
          %v2602 = vpop.f32.mrf.mxu0
          %v2603 = vadd.f32 0.0, %v2602
          %v2604 = vpop.f32.mrf.mxu0
          %2605 = vdwg.mxu0
          %v2607 = vsel %vm2491, %v2481, 0
          %v2610 = vsel %vm2491, %v2489, 0
          %2612 = vmatpush.bf16.xpose.msra.mxu0 0
          %2613 = vmatpush.bf16.xpose.msra.mxu0 0
          %2614 = vmatpush.bf16.xpose.msra.mxu0 0
          %2615 = vmatpush.bf16.xpose.msra.mxu0 0
          %2616 = vmatpush.bf16.xpose.msra.mxu0 0
          %2617 = vmatpush.bf16.xpose.msra.mxu0 0
          %2618 = vmatpush.bf16.xpose.msra.mxu0 0
          %2619 = vmatpush.bf16.xpose.msra.mxu0 %v2610
          %2620 = vmatmul.bf16.gmra.mxu0 %v2607
          %v2621 = vpop.f32.mrf.mxu0
          %v2622 = vadd.f32 0.0, %v2621
          %v2623 = vpop.f32.mrf.mxu0
          %2624 = vdwg.mxu0
          %v2626 = vsel %vm2491, %v2482, 0
          %v2629 = vsel %vm2491, %v2490, 0
          %2631 = vmatpush.bf16.xpose.msra.mxu0 0
          %2632 = vmatpush.bf16.xpose.msra.mxu0 0
          %2633 = vmatpush.bf16.xpose.msra.mxu0 0
          %2634 = vmatpush.bf16.xpose.msra.mxu0 0
          %2635 = vmatpush.bf16.xpose.msra.mxu0 0
          %2636 = vmatpush.bf16.xpose.msra.mxu0 0
          %2637 = vmatpush.bf16.xpose.msra.mxu0 0
          %2638 = vmatpush.bf16.xpose.msra.mxu0 %v2629
          %2639 = vmatmul.bf16.gmra.mxu0 %v2626
          %v2640 = vpop.f32.mrf.mxu0
          %v2641 = vadd.f32 0.0, %v2640
          %v2642 = vpop.f32.mrf.mxu0
          %2643 = vdwg.mxu0
          %v2644 = vmul.f32 %v2508, 0.35355338
          %v2645 = vmul.f32 %v2527, 0.35355338
          %v2646 = vmul.f32 %v2546, 0.35355338
          %v2647 = vmul.f32 %v2565, 0.35355338
          %v2648 = vmul.f32 %v2584, 0.35355338
          %v2649 = vmul.f32 %v2603, 0.35355338
          %v2650 = vmul.f32 %v2622, 0.35355338
          %v2651 = vmul.f32 %v2641, 0.35355338
          %v2652 = vadd.f32 %v2644, %v1670
          %v2653 = vadd.f32 %v2645, %v1670
          %v2654 = vadd.f32 %v2646, %v1670
          %v2655 = vadd.f32 %v2647, %v1670
          %v2656 = vadd.f32 %v2648, %v1670
          %v2657 = vadd.f32 %v2649, %v1670
          %v2658 = vadd.f32 %v2650, %v1670
          %v2659 = vadd.f32 %v2651, %v1670
          %v2660 = vsel %vm2491, %v2652, -inf
          %2661 = vmax.xlane.f32.xlu0 %v2660
          %v2662 = vpop.xlane.xlu0 %2661
          %v2663 = vsel %vm2491, %v2653, -inf
          %2664 = vmax.xlane.f32.xlu0 %v2663
          %v2665 = vpop.xlane.xlu0 %2664
          %v2666 = vsel %vm2491, %v2654, -inf
          %2667 = vmax.xlane.f32.xlu0 %v2666
          %v2668 = vpop.xlane.xlu0 %2667
          %v2669 = vsel %vm2491, %v2655, -inf
          %2670 = vmax.xlane.f32.xlu0 %v2669
          %v2671 = vpop.xlane.xlu0 %2670
          %v2672 = vsel %vm2491, %v2656, -inf
          %2673 = vmax.xlane.f32.xlu0 %v2672
          %v2674 = vpop.xlane.xlu0 %2673
          %v2675 = vsel %vm2491, %v2657, -inf
          %2676 = vmax.xlane.f32.xlu0 %v2675
          %v2677 = vpop.xlane.xlu0 %2676
          %v2678 = vsel %vm2491, %v2658, -inf
          %2679 = vmax.xlane.f32.xlu0 %v2678
          %v2680 = vpop.xlane.xlu0 %2679
          %v2681 = vsel %vm2491, %v2659, -inf
          %2682 = vmax.xlane.f32.xlu0 %v2681
          %v2683 = vpop.xlane.xlu0 %2682
          %v2684 = vsub.f32 %v2652, %v2662
          %v2685 = vsub.f32 %v2653, %v2665
          %v2686 = vsub.f32 %v2654, %v2668
          %v2687 = vsub.f32 %v2655, %v2671
          %v2688 = vsub.f32 %v2656, %v2674
          %v2689 = vsub.f32 %v2657, %v2677
          %v2690 = vsub.f32 %v2658, %v2680
          %v2691 = vsub.f32 %v2659, %v2683
          %v2692 = vmul.f32 %v2684, 1.442695
          %v2693 = vpow.pop %v2692
          %v2694 = vmul.f32 %v2685, 1.442695
          %v2695 = vpow.pop %v2694
          %v2696 = vmul.f32 %v2686, 1.442695
          %v2697 = vpow.pop %v2696
          %v2698 = vmul.f32 %v2687, 1.442695
          %v2699 = vpow.pop %v2698
          %v2700 = vmul.f32 %v2688, 1.442695
          %v2701 = vpow.pop %v2700
          %v2702 = vmul.f32 %v2689, 1.442695
          %v2703 = vpow.pop %v2702
          %v2704 = vmul.f32 %v2690, 1.442695
          %v2705 = vpow.pop %v2704
          %v2706 = vmul.f32 %v2691, 1.442695
          %v2707 = vpow.pop %v2706
          %v2708 = vsel %vm2491, %v2693, 0.0
          %2709 = vadd.xlane.f32.xlu0 %v2708
          %v2710 = vpop.xlane.xlu0 %2709
          %v2711 = vsel %vm2491, %v2695, 0.0
          %2712 = vadd.xlane.f32.xlu0 %v2711
          %v2713 = vpop.xlane.xlu0 %2712
          %v2714 = vsel %vm2491, %v2697, 0.0
          %2715 = vadd.xlane.f32.xlu0 %v2714
          %v2716 = vpop.xlane.xlu0 %2715
          %v2717 = vsel %vm2491, %v2699, 0.0
          %2718 = vadd.xlane.f32.xlu0 %v2717
          %v2719 = vpop.xlane.xlu0 %2718
          %v2720 = vsel %vm2491, %v2701, 0.0
          %2721 = vadd.xlane.f32.xlu0 %v2720
          %v2722 = vpop.xlane.xlu0 %2721
          %v2723 = vsel %vm2491, %v2703, 0.0
          %2724 = vadd.xlane.f32.xlu0 %v2723
          %v2725 = vpop.xlane.xlu0 %2724
          %v2726 = vsel %vm2491, %v2705, 0.0
          %2727 = vadd.xlane.f32.xlu0 %v2726
          %v2728 = vpop.xlane.xlu0 %2727
          %v2729 = vsel %vm2491, %v2707, 0.0
          %2730 = vadd.xlane.f32.xlu0 %v2729
          %v2731 = vpop.xlane.xlu0 %2730
          %v2732 = vrcp.pop %v2710
          %v2733 = vrcp.pop %v2713
          %v2734 = vrcp.pop %v2716
          %v2735 = vrcp.pop %v2719
          %v2736 = vrcp.pop %v2722
          %v2737 = vrcp.pop %v2725
          %v2738 = vrcp.pop %v2728
          %v2739 = vrcp.pop %v2731
          %v2740 = vmul.f32 %v2693, %v2732
          %v2741 = vmul.f32 %v2695, %v2733
          %v2742 = vmul.f32 %v2697, %v2734
          %v2743 = vmul.f32 %v2699, %v2735
          %v2744 = vmul.f32 %v2701, %v2736
          %v2745 = vmul.f32 %v2703, %v2737
          %v2746 = vmul.f32 %v2705, %v2738
          %v2747 = vmul.f32 %v2707, %v2739
          %v2748 = vpack.c.bf16 %v2740, %v2740
          %v2749 = vpack.c.bf16 %v2741, %v2741
          %v2750 = vpack.c.bf16 %v2742, %v2742
          %v2751 = vpack.c.bf16 %v2743, %v2743
          %v2752 = vpack.c.bf16 %v2744, %v2744
          %v2753 = vpack.c.bf16 %v2745, %v2745
          %v2754 = vpack.c.bf16 %v2746, %v2746
          %v2755 = vpack.c.bf16 %v2747, %v2747
          %v2756 = vpack.c.bf16 %v2414, %v2414
          %v2757 = vpack.c.bf16 %v2416, %v2416
          %v2758 = vpack.c.bf16 %v2418, %v2418
          %v2759 = vpack.c.bf16 %v2420, %v2420
          %v2760 = vpack.c.bf16 %v2468, %v2468
          %v2761 = vpack.c.bf16 %v2470, %v2470
          %v2762 = vpack.c.bf16 %v2472, %v2472
          %v2763 = vpack.c.bf16 %v2474, %v2474
          %v2765 = vsel %vm2491, %v2748, 0
          %vm2767 = vcmask 1043456
          %v2769 = vsel %vm2767, %v2756, 0
          %2771 = vmatpush.bf16.msra.mxu0 0
          %2772 = vmatpush.bf16.msra.mxu0 0
          %2773 = vmatpush.bf16.msra.mxu0 0
          %2774 = vmatpush.bf16.msra.mxu0 0
          %2775 = vmatpush.bf16.msra.mxu0 0
          %2776 = vmatpush.bf16.msra.mxu0 0
          %2777 = vmatpush.bf16.msra.mxu0 0
          %2778 = vmatpush.bf16.msra.mxu0 %v2769
          %2779 = vmatmul.bf16.gmra.mxu0 %v2765
          %v2780 = vpop.f32.mrf.mxu0
          %v2781 = vadd.f32 0.0, %v2780
          %v2782 = vpop.f32.mrf.mxu0
          %2783 = vdwg.mxu0
          %v2785 = vsel %vm2491, %v2749, 0
          %v2788 = vsel %vm2767, %v2757, 0
          %2790 = vmatpush.bf16.msra.mxu0 0
          %2791 = vmatpush.bf16.msra.mxu0 0
          %2792 = vmatpush.bf16.msra.mxu0 0
          %2793 = vmatpush.bf16.msra.mxu0 0
          %2794 = vmatpush.bf16.msra.mxu0 0
          %2795 = vmatpush.bf16.msra.mxu0 0
          %2796 = vmatpush.bf16.msra.mxu0 0
          %2797 = vmatpush.bf16.msra.mxu0 %v2788
          %2798 = vmatmul.bf16.gmra.mxu0 %v2785
          %v2799 = vpop.f32.mrf.mxu0
          %v2800 = vadd.f32 0.0, %v2799
          %v2801 = vpop.f32.mrf.mxu0
          %2802 = vdwg.mxu0
          %v2804 = vsel %vm2491, %v2750, 0
          %v2807 = vsel %vm2767, %v2758, 0
          %2809 = vmatpush.bf16.msra.mxu0 0
          %2810 = vmatpush.bf16.msra.mxu0 0
          %2811 = vmatpush.bf16.msra.mxu0 0
          %2812 = vmatpush.bf16.msra.mxu0 0
          %2813 = vmatpush.bf16.msra.mxu0 0
          %2814 = vmatpush.bf16.msra.mxu0 0
          %2815 = vmatpush.bf16.msra.mxu0 0
          %2816 = vmatpush.bf16.msra.mxu0 %v2807
          %2817 = vmatmul.bf16.gmra.mxu0 %v2804
          %v2818 = vpop.f32.mrf.mxu0
          %v2819 = vadd.f32 0.0, %v2818
          %v2820 = vpop.f32.mrf.mxu0
          %2821 = vdwg.mxu0
          %v2823 = vsel %vm2491, %v2751, 0
          %v2826 = vsel %vm2767, %v2759, 0
          %2828 = vmatpush.bf16.msra.mxu0 0
          %2829 = vmatpush.bf16.msra.mxu0 0
          %2830 = vmatpush.bf16.msra.mxu0 0
          %2831 = vmatpush.bf16.msra.mxu0 0
          %2832 = vmatpush.bf16.msra.mxu0 0
          %2833 = vmatpush.bf16.msra.mxu0 0
          %2834 = vmatpush.bf16.msra.mxu0 0
          %2835 = vmatpush.bf16.msra.mxu0 %v2826
          %2836 = vmatmul.bf16.gmra.mxu0 %v2823
          %v2837 = vpop.f32.mrf.mxu0
          %v2838 = vadd.f32 0.0, %v2837
          %v2839 = vpop.f32.mrf.mxu0
          %2840 = vdwg.mxu0
          %v2842 = vsel %vm2491, %v2752, 0
          %v2845 = vsel %vm2767, %v2760, 0
          %2847 = vmatpush.bf16.msra.mxu0 0
          %2848 = vmatpush.bf16.msra.mxu0 0
          %2849 = vmatpush.bf16.msra.mxu0 0
          %2850 = vmatpush.bf16.msra.mxu0 0
          %2851 = vmatpush.bf16.msra.mxu0 0
          %2852 = vmatpush.bf16.msra.mxu0 0
          %2853 = vmatpush.bf16.msra.mxu0 0
          %2854 = vmatpush.bf16.msra.mxu0 %v2845
          %2855 = vmatmul.bf16.gmra.mxu0 %v2842
          %v2856 = vpop.f32.mrf.mxu0
          %v2857 = vadd.f32 0.0, %v2856
          %v2858 = vpop.f32.mrf.mxu0
          %2859 = vdwg.mxu0
          %v2861 = vsel %vm2491, %v2753, 0
          %v2864 = vsel %vm2767, %v2761, 0
          %2866 = vmatpush.bf16.msra.mxu0 0
          %2867 = vmatpush.bf16.msra.mxu0 0
          %2868 = vmatpush.bf16.msra.mxu0 0
          %2869 = vmatpush.bf16.msra.mxu0 0
          %2870 = vmatpush.bf16.msra.mxu0 0
          %2871 = vmatpush.bf16.msra.mxu0 0
          %2872 = vmatpush.bf16.msra.mxu0 0
          %2873 = vmatpush.bf16.msra.mxu0 %v2864
          %2874 = vmatmul.bf16.gmra.mxu0 %v2861
          %v2875 = vpop.f32.mrf.mxu0
          %v2876 = vadd.f32 0.0, %v2875
          %v2877 = vpop.f32.mrf.mxu0
          %2878 = vdwg.mxu0
          %v2880 = vsel %vm2491, %v2754, 0
          %v2883 = vsel %vm2767, %v2762, 0
          %2885 = vmatpush.bf16.msra.mxu0 0
          %2886 = vmatpush.bf16.msra.mxu0 0
          %2887 = vmatpush.bf16.msra.mxu0 0
          %2888 = vmatpush.bf16.msra.mxu0 0
          %2889 = vmatpush.bf16.msra.mxu0 0
          %2890 = vmatpush.bf16.msra.mxu0 0
          %2891 = vmatpush.bf16.msra.mxu0 0
          %2892 = vmatpush.bf16.msra.mxu0 %v2883
          %2893 = vmatmul.bf16.gmra.mxu0 %v2880
          %v2894 = vpop.f32.mrf.mxu0
          %v2895 = vadd.f32 0.0, %v2894
          %v2896 = vpop.f32.mrf.mxu0
          %2897 = vdwg.mxu0
          %v2899 = vsel %vm2491, %v2755, 0
          %v2902 = vsel %vm2767, %v2763, 0
          %2904 = vmatpush.bf16.msra.mxu0 0
          %2905 = vmatpush.bf16.msra.mxu0 0
          %2906 = vmatpush.bf16.msra.mxu0 0
          %2907 = vmatpush.bf16.msra.mxu0 0
          %2908 = vmatpush.bf16.msra.mxu0 0
          %2909 = vmatpush.bf16.msra.mxu0 0
          %2910 = vmatpush.bf16.msra.mxu0 0
          %2911 = vmatpush.bf16.msra.mxu0 %v2902
          %2912 = vmatmul.bf16.gmra.mxu0 %v2899
          %v2913 = vpop.f32.mrf.mxu0
          %v2914 = vadd.f32 0.0, %v2913
          %v2915 = vpop.f32.mrf.mxu0
          %2916 = vdwg.mxu0
          %v2917 = vrot.slane %v2819, 4
          %v2918 = vsel %vm1723, %v2917, %v2781
          %v2919 = vrot.slane %v2781, 4
          %v2920 = vsel %vm1723, %v2819, %v2919
          %v2922 = vunpack.c.l.s4 1983009808
          %v2923 = vunpack.c.0.s8 %v2922
          %v2924 = vperm.slane %v2918, %v2923
          %v2926 = vunpack.c.l.s4 1983009808
          %v2927 = vunpack.c.0.s8 %v2926
          %v2928 = vperm.slane %v2920, %v2927
          %v2929 = vrot.slane %v2838, 4
          %v2930 = vsel %vm1723, %v2929, %v2800
          %v2931 = vrot.slane %v2800, 4
          %v2932 = vsel %vm1723, %v2838, %v2931
          %v2934 = vunpack.c.l.s4 1983009808
          %v2935 = vunpack.c.0.s8 %v2934
          %v2936 = vperm.slane %v2930, %v2935
          %v2938 = vunpack.c.l.s4 1983009808
          %v2939 = vunpack.c.0.s8 %v2938
          %v2940 = vperm.slane %v2932, %v2939
          %v2941 = vrot.slane %v2936, 4
          %v2942 = vsel %vm1723, %v2941, %v2924
          %v2943 = vrot.slane %v2924, 4
          %v2944 = vsel %vm1723, %v2936, %v2943
          %v2946 = vunpack.c.l.s4 1934713408
          %v2947 = vunpack.c.0.s8 %v2946
          %v2948 = vperm.slane %v2942, %v2947
          %v2950 = vunpack.c.l.s4 1934713408
          %v2951 = vunpack.c.0.s8 %v2950
          %v2952 = vperm.slane %v2944, %v2951
          %v2953 = vrot.slane %v2940, 4
          %v2954 = vsel %vm1723, %v2953, %v2928
          %v2955 = vrot.slane %v2928, 4
          %v2956 = vsel %vm1723, %v2940, %v2955
          %v2958 = vunpack.c.l.s4 1934713408
          %v2959 = vunpack.c.0.s8 %v2958
          %v2960 = vperm.slane %v2954, %v2959
          %v2962 = vunpack.c.l.s4 1934713408
          %v2963 = vunpack.c.0.s8 %v2962
          %v2964 = vperm.slane %v2956, %v2963
          %v2965 = vrot.slane %v2948, 4
          %v2966 = vsel %vm1723, 0.0, %v2965
          %v2967 = vrot.slane %v2952, 4
          %v2968 = vsel %vm1723, 0.0, %v2967
          %v2969 = vrot.slane %v2960, 4
          %v2970 = vsel %vm1723, 0.0, %v2969
          %v2971 = vrot.slane %v2964, 4
          %v2972 = vsel %vm1723, 0.0, %v2971
          %v2973 = vrot.slane %v2895, 4
          %v2974 = vsel %vm1723, %v2973, %v2857
          %v2975 = vrot.slane %v2857, 4
          %v2976 = vsel %vm1723, %v2895, %v2975
          %v2978 = vunpack.c.l.s4 1983009808
          %v2979 = vunpack.c.0.s8 %v2978
          %v2980 = vperm.slane %v2974, %v2979
          %v2982 = vunpack.c.l.s4 1983009808
          %v2983 = vunpack.c.0.s8 %v2982
          %v2984 = vperm.slane %v2976, %v2983
          %v2985 = vrot.slane %v2914, 4
          %v2986 = vsel %vm1723, %v2985, %v2876
          %v2987 = vrot.slane %v2876, 4
          %v2988 = vsel %vm1723, %v2914, %v2987
          %v2990 = vunpack.c.l.s4 1983009808
          %v2991 = vunpack.c.0.s8 %v2990
          %v2992 = vperm.slane %v2986, %v2991
          %v2994 = vunpack.c.l.s4 1983009808
          %v2995 = vunpack.c.0.s8 %v2994
          %v2996 = vperm.slane %v2988, %v2995
          %v2997 = vrot.slane %v2992, 4
          %v2998 = vsel %vm1723, %v2997, %v2980
          %v2999 = vrot.slane %v2980, 4
          %v3000 = vsel %vm1723, %v2992, %v2999
          %v3002 = vunpack.c.l.s4 1934713408
          %v3003 = vunpack.c.0.s8 %v3002
          %v3004 = vperm.slane %v2998, %v3003
          %v3006 = vunpack.c.l.s4 1934713408
          %v3007 = vunpack.c.0.s8 %v3006
          %v3008 = vperm.slane %v3000, %v3007
          %v3009 = vrot.slane %v2996, 4
          %v3010 = vsel %vm1723, %v3009, %v2984
          %v3011 = vrot.slane %v2984, 4
          %v3012 = vsel %vm1723, %v2996, %v3011
          %v3014 = vunpack.c.l.s4 1934713408
          %v3015 = vunpack.c.0.s8 %v3014
          %v3016 = vperm.slane %v3010, %v3015
          %v3018 = vunpack.c.l.s4 1934713408
          %v3019 = vunpack.c.0.s8 %v3018
          %v3020 = vperm.slane %v3012, %v3019
          %v3021 = vrot.slane %v3004, 4
          %v3022 = vsel %vm1723, 0.0, %v3021
          %v3023 = vrot.slane %v3008, 4
          %v3024 = vsel %vm1723, 0.0, %v3023
          %v3025 = vrot.slane %v3016, 4
          %v3026 = vsel %vm1723, 0.0, %v3025
          %v3027 = vrot.slane %v3020, 4
          %v3028 = vsel %vm1723, 0.0, %v3027
          %v3029 = vsel %vm1723, %v2967, %v2948
          %v3031 = vunpack.c.l.s4 1983009808
          %v3032 = vunpack.c.0.s8 %v3031
          %v3033 = vperm.slane %v3029, %v3032
          %v3034 = vrot.slane %v2968, 4
          %v3035 = vsel %vm1723, %v3034, %v2966
          %v3037 = vunpack.c.l.s4 1983009808
          %v3038 = vunpack.c.0.s8 %v3037
          %v3039 = vperm.slane %v3035, %v3038
          %v3040 = vsel %vm1723, %v2971, %v2960
          %v3042 = vunpack.c.l.s4 1983009808
          %v3043 = vunpack.c.0.s8 %v3042
          %v3044 = vperm.slane %v3040, %v3043
          %v3045 = vrot.slane %v2972, 4
          %v3046 = vsel %vm1723, %v3045, %v2970
          %v3048 = vunpack.c.l.s4 1983009808
          %v3049 = vunpack.c.0.s8 %v3048
          %v3050 = vperm.slane %v3046, %v3049
          %v3051 = vrot.slane %v3039, 4
          %v3052 = vsel %vm1723, %v3051, %v3033
          %v3053 = vrot.slane %v3033, 4
          %v3054 = vsel %vm1723, %v3039, %v3053
          %v3056 = vunpack.c.l.s4 1934713408
          %v3057 = vunpack.c.0.s8 %v3056
          %v3058 = vperm.slane %v3052, %v3057
          %v3060 = vunpack.c.l.s4 1934713408
          %v3061 = vunpack.c.0.s8 %v3060
          %v3062 = vperm.slane %v3054, %v3061
          %v3063 = vrot.slane %v3050, 4
          %v3064 = vsel %vm1723, %v3063, %v3044
          %v3065 = vrot.slane %v3044, 4
          %v3066 = vsel %vm1723, %v3050, %v3065
          %v3068 = vunpack.c.l.s4 1934713408
          %v3069 = vunpack.c.0.s8 %v3068
          %v3070 = vperm.slane %v3064, %v3069
          %v3072 = vunpack.c.l.s4 1934713408
          %v3073 = vunpack.c.0.s8 %v3072
          %v3074 = vperm.slane %v3066, %v3073
          %v3075 = vrot.slane %v3070, 4
          %v3076 = vsel %vm1723, %v3075, %v3058
          %v3077 = vrot.slane %v3058, 4
          %v3078 = vsel %vm1723, %v3070, %v3077
          %v3079 = vrot.slane %v3074, 4
          %v3080 = vsel %vm1723, %v3079, %v3062
          %v3081 = vrot.slane %v3062, 4
          %v3082 = vsel %vm1723, %v3074, %v3081
          %v3083 = vsel %vm1723, %v3023, %v3004
          %v3085 = vunpack.c.l.s4 1983009808
          %v3086 = vunpack.c.0.s8 %v3085
          %v3087 = vperm.slane %v3083, %v3086
          %v3088 = vrot.slane %v3024, 4
          %v3089 = vsel %vm1723, %v3088, %v3022
          %v3091 = vunpack.c.l.s4 1983009808
          %v3092 = vunpack.c.0.s8 %v3091
          %v3093 = vperm.slane %v3089, %v3092
          %v3094 = vsel %vm1723, %v3027, %v3016
          %v3096 = vunpack.c.l.s4 1983009808
          %v3097 = vunpack.c.0.s8 %v3096
          %v3098 = vperm.slane %v3094, %v3097
          %v3099 = vrot.slane %v3028, 4
          %v3100 = vsel %vm1723, %v3099, %v3026
          %v3102 = vunpack.c.l.s4 1983009808
          %v3103 = vunpack.c.0.s8 %v3102
          %v3104 = vperm.slane %v3100, %v3103
          %v3105 = vrot.slane %v3093, 4
          %v3106 = vsel %vm1723, %v3105, %v3087
          %v3107 = vrot.slane %v3087, 4
          %v3108 = vsel %vm1723, %v3093, %v3107
          %v3110 = vunpack.c.l.s4 1934713408
          %v3111 = vunpack.c.0.s8 %v3110
          %v3112 = vperm.slane %v3106, %v3111
          %v3114 = vunpack.c.l.s4 1934713408
          %v3115 = vunpack.c.0.s8 %v3114
          %v3116 = vperm.slane %v3108, %v3115
          %v3117 = vrot.slane %v3104, 4
          %v3118 = vsel %vm1723, %v3117, %v3098
          %v3119 = vrot.slane %v3098, 4
          %v3120 = vsel %vm1723, %v3104, %v3119
          %v3122 = vunpack.c.l.s4 1934713408
          %v3123 = vunpack.c.0.s8 %v3122
          %v3124 = vperm.slane %v3118, %v3123
          %v3126 = vunpack.c.l.s4 1934713408
          %v3127 = vunpack.c.0.s8 %v3126
          %v3128 = vperm.slane %v3120, %v3127
          %v3129 = vrot.slane %v3124, 4
          %v3130 = vsel %vm1723, %v3129, %v3112
          %v3131 = vrot.slane %v3112, 4
          %v3132 = vsel %vm1723, %v3124, %v3131
          %v3133 = vrot.slane %v3128, 4
          %v3134 = vsel %vm1723, %v3133, %v3116
          %v3135 = vrot.slane %v3116, 4
          %v3136 = vsel %vm1723, %v3128, %v3135
          %3139 = vrot.lane.b32.xlu0 %v3078, 8
          %v3140 = vpop.permute.xlu0 %3139
          %3141 = vrot.lane.b32.xlu0 %v3132, 8
          %v3142 = vpop.permute.xlu0 %3141
          %3147 = vrot.lane.b32.xlu0 %v3080, 16
          %v3148 = vpop.permute.xlu0 %3147
          %3149 = vrot.lane.b32.xlu0 %v3134, 16
          %v3150 = vpop.permute.xlu0 %3149
          %3155 = vrot.lane.b32.xlu0 %v3082, 24
          %v3156 = vpop.permute.xlu0 %3155
          %3157 = vrot.lane.b32.xlu0 %v3136, 24
          %v3158 = vpop.permute.xlu0 %3157
          %v3161 = vsel %vm2491, %v3076, %v3140
          %v3162 = vsel %vm2491, %v3130, %v3142
          %vm3163 = vcmask 130048
          %v3164 = vsel %vm3163, %v3161, %v3148
          %v3165 = vsel %vm3163, %v3162, %v3150
          %vm3166 = vcmask 195584
          %v3167 = vsel %vm3166, %v3164, %v3156
          %v3168 = vsel %vm3166, %v3165, %v3158
          %v3169 = vpack.c.bf16 %v3168, %v3167
          %v3174 = vunpack.c.l.b16 %v1666
          %v3175 = vunpack.c.l.b16 %v1667
          %v3176 = vunpack.c.l.b16 %v1668
          %v3177 = vunpack.c.l.b16 %v1669
          %v3178 = vpack.c.b16 %v3175, %v3174
          %v3179 = vpack.c.b16 %v3177, %v3176
          %v3183 = vsel %vm1684, %v3169, 0
          %3185 = vmatpush.bf16.msra.mxu0 0
          %3186 = vmatpush.bf16.msra.mxu0 0
          %3187 = vmatpush.bf16.msra.mxu0 0
          %3188 = vmatpush.bf16.msra.mxu0 0
          %3189 = vmatpush.bf16.msra.mxu0 0
          %3190 = vmatpush.bf16.msra.mxu0 0
          %3191 = vmatpush.bf16.msra.mxu0 %v3179
          %3192 = vmatpush.bf16.msra.mxu0 %v3178
          %3193 = vmatmul.bf16.gmra.mxu0 %v3183
          %v3194 = vpop.f32.mrf.mxu0
          %v3195 = vadd.f32 0.0, %v3194
          %v3196 = vpop.f32.mrf.mxu0
          %v3197 = vadd.f32 0.0, %v3196
          %3198 = vdwg.mxu0
          %v3199 = vadd.f32 %v1647, %v3195
          %v3200 = vadd.f32 %v1648, %v3197
          %v3201 = vld [vmem:[%s1332] sm:$0x1]
          %v3202 = vld [vmem:[%s1341] sm:$0x1]
          %v3203 = vsel %vm1684, %v3199, 0.0
          %3204 = vadd.xlane.f32.xlu0 %v3203
          %v3205 = vpop.xlane.xlu0 %3204
          %v3206 = vsel %vm1684, %v3200, 0.0
          %3207 = vadd.xlane.f32.xlu0 %v3206
          %v3208 = vpop.xlane.xlu0 %3207
          %v3209 = vrcp.pop 32.0
          %v3210 = vmul.f32 32.0, %v3209
          %v3211 = vsub.f32 1.0, %v3210
          %v3212 = vmul.f32 %v3209, %v3211
          %v3213 = vadd.f32 %v3209, %v3212
          %vm3214 = vweird.f32 %v3209
          %v3215 = vsel %vm3214, %v3209, %v3213
          %v3216 = vmul.f32 %v3205, %v3215
          %v3217 = vmul.f32 %v3208, %v3215
          %v3218 = vmul.f32 %v3199, %v3199
          %v3219 = vmul.f32 %v3200, %v3200
          %v3220 = vsel %vm1684, %v3218, 0.0
          %3221 = vadd.xlane.f32.xlu0 %v3220
          %v3222 = vpop.xlane.xlu0 %3221
          %v3223 = vsel %vm1684, %v3219, 0.0
          %3224 = vadd.xlane.f32.xlu0 %v3223
          %v3225 = vpop.xlane.xlu0 %3224
          %v3226 = vmul.f32 %v3222, %v3215
          %v3227 = vmul.f32 %v3225, %v3215
          %v3228 = vmul.f32 %v3216, %v3216
          %v3229 = vmul.f32 %v3217, %v3217
          %v3230 = vsub.f32 %v3226, %v3228
          %v3231 = vsub.f32 %v3227, %v3229
          %v3232 = vmax.f32 %v3230, 0.0
          %v3233 = vmax.f32 %v3231, 0.0
          %v3234 = vsub.f32 %v3199, %v3216
          %v3235 = vsub.f32 %v3200, %v3217
          %v3236 = vadd.f32 %v3232, 1e-05
          %v3237 = vadd.f32 %v3233, 1e-05
          %v3238 = vrsqrt.pop %v3236
          %v3239 = vmul.f32 %v3238, %v3236
          %v3240 = vmul.f32 %v3239, %v3238
          %v3241 = vmul.f32 0.5, %v3240
          %v3242 = vsub.f32 1.5, %v3241
          %v3243 = vmul.f32 %v3238, %v3242
          %vm3244 = vweird.f32 %v3236
          %vm3245 = vweird.f32 %v3238
          %vm3246 = vmor %vm3244, %vm3245
          %v3247 = vsel %vm3246, %v3238, %v3243
          %v3248 = vrsqrt.pop %v3237
          %v3249 = vmul.f32 %v3248, %v3237
          %v3250 = vmul.f32 %v3249, %v3248
          %v3251 = vmul.f32 0.5, %v3250
          %v3252 = vsub.f32 1.5, %v3251
          %v3253 = vmul.f32 %v3248, %v3252
          %vm3254 = vweird.f32 %v3237
          %vm3255 = vweird.f32 %v3248
          %vm3256 = vmor %vm3254, %vm3255
          %v3257 = vsel %vm3256, %v3248, %v3253
          %v3258 = vmul.f32 %v3234, %v3247
          %v3259 = vmul.f32 %v3235, %v3257
          %v3261 = vperm.slane %v3201, 0
          %v3263 = vmul.f32 %v3258, %v3261
          %v3264 = vmul.f32 %v3259, %v3261
          %v3266 = vperm.slane %v3202, 0
          %v3268 = vadd.f32 %v3263, %v3266
          %v3269 = vadd.f32 %v3264, %v3266
          %v3270 = vld [vmem:[#allocation6] sm:$0xf]
          %v3271 = vld [vmem:[#allocation6 + $0x4] sm:$0xf]
          %v3272 = vld [vmem:[%s1265] sm:$0xf]
          %v3273 = vld [vmem:[%s1265 + $0x4] sm:$0xf]
          %v3274 = vld [vmem:[%s1265 + $0x8] sm:$0xf]
          %v3275 = vld [vmem:[%s1265 + $0xc] sm:$0xf]
          %v3276 = vld [vmem:[%s1275] sm:$0xf]
          %v3277 = vld [vmem:[%s1275 + $0x4] sm:$0xf]
          %v3278 = vld [vmem:[%s1275 + $0x8] sm:$0xf]
          %v3279 = vld [vmem:[%s1275 + $0xc] sm:$0xf]
          %v3280 = vld [vmem:[%s1285] sm:$0xf]
          %v3281 = vld [vmem:[%s1285 + $0x4] sm:$0xf]
          %v3282 = vld [vmem:[%s1285 + $0x8] sm:$0xf]
          %v3283 = vld [vmem:[%s1285 + $0xc] sm:$0xf]
          %v3284 = vld [vmem:[%s1295] sm:$0xf]
          %v3285 = vld [vmem:[%s1295 + $0x4] sm:$0xf]
          %v3286 = vld [vmem:[%s1295 + $0x8] sm:$0xf]
          %v3287 = vld [vmem:[%s1295 + $0xc] sm:$0xf]
          %v3288 = vld [vmem:[#allocation9] sm:$0x1]
          %v3289 = vld [vmem:[#allocation9 + $0x1] sm:$0x1]
          %v3290 = vld [vmem:[#allocation9 + $0x2] sm:$0x1]
          %v3291 = vld [vmem:[#allocation9 + $0x3] sm:$0x1]
          %v3292 = vld [vmem:[#allocation9 + $0x4] sm:$0x1]
          %v3293 = vld [vmem:[#allocation9 + $0x5] sm:$0x1]
          %v3294 = vld [vmem:[#allocation9 + $0x6] sm:$0x1]
          %v3295 = vld [vmem:[#allocation9 + $0x7] sm:$0x1]
          %v3296 = vpack.c.bf16 %v3269, %v3268
          %v3301 = vunpack.c.l.b16 %v3272
          %v3302 = vunpack.c.l.b16 %v3273
          %v3303 = vunpack.c.l.b16 %v3274
          %v3304 = vunpack.c.l.b16 %v3275
          %v3305 = vpack.c.b16 %v3302, %v3301
          %v3306 = vpack.c.b16 %v3304, %v3303
          %v3310 = vsel %vm1684, %v3296, 0
          %3312 = vmatpush.bf16.msra.mxu0 0
          %3313 = vmatpush.bf16.msra.mxu0 0
          %3314 = vmatpush.bf16.msra.mxu0 0
          %3315 = vmatpush.bf16.msra.mxu0 0
          %3316 = vmatpush.bf16.msra.mxu0 0
          %3317 = vmatpush.bf16.msra.mxu0 0
          %3318 = vmatpush.bf16.msra.mxu0 %v3306
          %3319 = vmatpush.bf16.msra.mxu0 %v3305
          %3320 = vmatmul.bf16.gmra.mxu0 %v3310
          %v3321 = vpop.f32.mrf.mxu0
          %v3322 = vadd.f32 0.0, %v3321
          %v3323 = vpop.f32.mrf.mxu0
          %v3324 = vadd.f32 0.0, %v3323
          %3325 = vdwg.mxu0
          %3328 = vrot.lane.b32.xlu0 %v3322, 120
          %v3329 = vpop.permute.xlu0 %3328
          %3330 = vrot.lane.b32.xlu0 %v3324, 120
          %v3331 = vpop.permute.xlu0 %3330
          %3334 = vrot.lane.b32.xlu0 %v3322, 112
          %v3335 = vpop.permute.xlu0 %3334
          %3336 = vrot.lane.b32.xlu0 %v3324, 112
          %v3337 = vpop.permute.xlu0 %3336
          %3340 = vrot.lane.b32.xlu0 %v3322, 104
          %v3341 = vpop.permute.xlu0 %3340
          %3342 = vrot.lane.b32.xlu0 %v3324, 104
          %v3343 = vpop.permute.xlu0 %3342
          %v3346 = vrot.slane %v3335, 4
          %v3347 = vsel %vm1723, %v3346, %v3322
          %v3348 = vrot.slane %v3322, 4
          %v3349 = vsel %vm1723, %v3335, %v3348
          %v3351 = vunpack.c.l.s4 1983009808
          %v3352 = vunpack.c.0.s8 %v3351
          %v3353 = vperm.slane %v3347, %v3352
          %v3355 = vunpack.c.l.s4 1983009808
          %v3356 = vunpack.c.0.s8 %v3355
          %v3357 = vperm.slane %v3349, %v3356
          %v3358 = vrot.slane %v3341, 4
          %v3359 = vsel %vm1723, %v3358, %v3329
          %v3360 = vrot.slane %v3329, 4
          %v3361 = vsel %vm1723, %v3341, %v3360
          %v3363 = vunpack.c.l.s4 1983009808
          %v3364 = vunpack.c.0.s8 %v3363
          %v3365 = vperm.slane %v3359, %v3364
          %v3367 = vunpack.c.l.s4 1983009808
          %v3368 = vunpack.c.0.s8 %v3367
          %v3369 = vperm.slane %v3361, %v3368
          %v3370 = vrot.slane %v3365, 4
          %v3371 = vsel %vm1723, %v3370, %v3353
          %v3372 = vrot.slane %v3353, 4
          %v3373 = vsel %vm1723, %v3365, %v3372
          %v3375 = vunpack.c.l.s4 1934713408
          %v3376 = vunpack.c.0.s8 %v3375
          %v3377 = vperm.slane %v3371, %v3376
          %v3379 = vunpack.c.l.s4 1934713408
          %v3380 = vunpack.c.0.s8 %v3379
          %v3381 = vperm.slane %v3373, %v3380
          %v3382 = vrot.slane %v3369, 4
          %v3383 = vsel %vm1723, %v3382, %v3357
          %v3384 = vrot.slane %v3357, 4
          %v3385 = vsel %vm1723, %v3369, %v3384
          %v3387 = vunpack.c.l.s4 1934713408
          %v3388 = vunpack.c.0.s8 %v3387
          %v3389 = vperm.slane %v3383, %v3388
          %v3391 = vunpack.c.l.s4 1934713408
          %v3392 = vunpack.c.0.s8 %v3391
          %v3393 = vperm.slane %v3385, %v3392
          %v3394 = vrot.slane %v3377, 4
          %v3395 = vsel %vm1723, 0.0, %v3394
          %v3396 = vrot.slane %v3381, 4
          %v3397 = vsel %vm1723, 0.0, %v3396
          %v3398 = vrot.slane %v3389, 4
          %v3399 = vsel %vm1723, 0.0, %v3398
          %v3400 = vrot.slane %v3393, 4
          %v3401 = vsel %vm1723, 0.0, %v3400
          %v3402 = vrot.slane %v3337, 4
          %v3403 = vsel %vm1723, %v3402, %v3324
          %v3404 = vrot.slane %v3324, 4
          %v3405 = vsel %vm1723, %v3337, %v3404
          %v3407 = vunpack.c.l.s4 1983009808
          %v3408 = vunpack.c.0.s8 %v3407
          %v3409 = vperm.slane %v3403, %v3408
          %v3411 = vunpack.c.l.s4 1983009808
          %v3412 = vunpack.c.0.s8 %v3411
          %v3413 = vperm.slane %v3405, %v3412
          %v3414 = vrot.slane %v3343, 4
          %v3415 = vsel %vm1723, %v3414, %v3331
          %v3416 = vrot.slane %v3331, 4
          %v3417 = vsel %vm1723, %v3343, %v3416
          %v3419 = vunpack.c.l.s4 1983009808
          %v3420 = vunpack.c.0.s8 %v3419
          %v3421 = vperm.slane %v3415, %v3420
          %v3423 = vunpack.c.l.s4 1983009808
          %v3424 = vunpack.c.0.s8 %v3423
          %v3425 = vperm.slane %v3417, %v3424
          %v3426 = vrot.slane %v3421, 4
          %v3427 = vsel %vm1723, %v3426, %v3409
          %v3428 = vrot.slane %v3409, 4
          %v3429 = vsel %vm1723, %v3421, %v3428
          %v3431 = vunpack.c.l.s4 1934713408
          %v3432 = vunpack.c.0.s8 %v3431
          %v3433 = vperm.slane %v3427, %v3432
          %v3435 = vunpack.c.l.s4 1934713408
          %v3436 = vunpack.c.0.s8 %v3435
          %v3437 = vperm.slane %v3429, %v3436
          %v3438 = vrot.slane %v3425, 4
          %v3439 = vsel %vm1723, %v3438, %v3413
          %v3440 = vrot.slane %v3413, 4
          %v3441 = vsel %vm1723, %v3425, %v3440
          %v3443 = vunpack.c.l.s4 1934713408
          %v3444 = vunpack.c.0.s8 %v3443
          %v3445 = vperm.slane %v3439, %v3444
          %v3447 = vunpack.c.l.s4 1934713408
          %v3448 = vunpack.c.0.s8 %v3447
          %v3449 = vperm.slane %v3441, %v3448
          %v3450 = vrot.slane %v3433, 4
          %v3451 = vsel %vm1723, 0.0, %v3450
          %v3452 = vrot.slane %v3437, 4
          %v3453 = vsel %vm1723, 0.0, %v3452
          %v3454 = vrot.slane %v3445, 4
          %v3455 = vsel %vm1723, 0.0, %v3454
          %v3456 = vrot.slane %v3449, 4
          %v3457 = vsel %vm1723, 0.0, %v3456
          %v3458 = vsel %vm1723, %v3396, %v3377
          %v3460 = vunpack.c.l.s4 1983009808
          %v3461 = vunpack.c.0.s8 %v3460
          %v3462 = vperm.slane %v3458, %v3461
          %v3463 = vrot.slane %v3397, 4
          %v3464 = vsel %vm1723, %v3463, %v3395
          %v3466 = vunpack.c.l.s4 1983009808
          %v3467 = vunpack.c.0.s8 %v3466
          %v3468 = vperm.slane %v3464, %v3467
          %v3469 = vsel %vm1723, %v3400, %v3389
          %v3471 = vunpack.c.l.s4 1983009808
          %v3472 = vunpack.c.0.s8 %v3471
          %v3473 = vperm.slane %v3469, %v3472
          %v3474 = vrot.slane %v3401, 4
          %v3475 = vsel %vm1723, %v3474, %v3399
          %v3477 = vunpack.c.l.s4 1983009808
          %v3478 = vunpack.c.0.s8 %v3477
          %v3479 = vperm.slane %v3475, %v3478
          %v3480 = vrot.slane %v3468, 4
          %v3481 = vsel %vm1723, %v3480, %v3462
          %v3482 = vrot.slane %v3462, 4
          %v3483 = vsel %vm1723, %v3468, %v3482
          %v3485 = vunpack.c.l.s4 1934713408
          %v3486 = vunpack.c.0.s8 %v3485
          %v3487 = vperm.slane %v3481, %v3486
          %v3489 = vunpack.c.l.s4 1934713408
          %v3490 = vunpack.c.0.s8 %v3489
          %v3491 = vperm.slane %v3483, %v3490
          %v3492 = vrot.slane %v3479, 4
          %v3493 = vsel %vm1723, %v3492, %v3473
          %v3494 = vrot.slane %v3473, 4
          %v3495 = vsel %vm1723, %v3479, %v3494
          %v3497 = vunpack.c.l.s4 1934713408
          %v3498 = vunpack.c.0.s8 %v3497
          %v3499 = vperm.slane %v3493, %v3498
          %v3501 = vunpack.c.l.s4 1934713408
          %v3502 = vunpack.c.0.s8 %v3501
          %v3503 = vperm.slane %v3495, %v3502
          %v3504 = vrot.slane %v3499, 4
          %v3505 = vsel %vm1723, %v3504, %v3487
          %v3506 = vrot.slane %v3487, 4
          %v3507 = vsel %vm1723, %v3499, %v3506
          %v3508 = vrot.slane %v3503, 4
          %v3509 = vsel %vm1723, %v3508, %v3491
          %v3510 = vrot.slane %v3491, 4
          %v3511 = vsel %vm1723, %v3503, %v3510
          %v3512 = vsel %vm1723, %v3452, %v3433
          %v3514 = vunpack.c.l.s4 1983009808
          %v3515 = vunpack.c.0.s8 %v3514
          %v3516 = vperm.slane %v3512, %v3515
          %v3517 = vrot.slane %v3453, 4
          %v3518 = vsel %vm1723, %v3517, %v3451
          %v3520 = vunpack.c.l.s4 1983009808
          %v3521 = vunpack.c.0.s8 %v3520
          %v3522 = vperm.slane %v3518, %v3521
          %v3523 = vsel %vm1723, %v3456, %v3445
          %v3525 = vunpack.c.l.s4 1983009808
          %v3526 = vunpack.c.0.s8 %v3525
          %v3527 = vperm.slane %v3523, %v3526
          %v3528 = vrot.slane %v3457, 4
          %v3529 = vsel %vm1723, %v3528, %v3455
          %v3531 = vunpack.c.l.s4 1983009808
          %v3532 = vunpack.c.0.s8 %v3531
          %v3533 = vperm.slane %v3529, %v3532
          %v3534 = vrot.slane %v3522, 4
          %v3535 = vsel %vm1723, %v3534, %v3516
          %v3536 = vrot.slane %v3516, 4
          %v3537 = vsel %vm1723, %v3522, %v3536
          %v3539 = vunpack.c.l.s4 1934713408
          %v3540 = vunpack.c.0.s8 %v3539
          %v3541 = vperm.slane %v3535, %v3540
          %v3543 = vunpack.c.l.s4 1934713408
          %v3544 = vunpack.c.0.s8 %v3543
          %v3545 = vperm.slane %v3537, %v3544
          %v3546 = vrot.slane %v3533, 4
          %v3547 = vsel %vm1723, %v3546, %v3527
          %v3548 = vrot.slane %v3527, 4
          %v3549 = vsel %vm1723, %v3533, %v3548
          %v3551 = vunpack.c.l.s4 1934713408
          %v3552 = vunpack.c.0.s8 %v3551
          %v3553 = vperm.slane %v3547, %v3552
          %v3555 = vunpack.c.l.s4 1934713408
          %v3556 = vunpack.c.0.s8 %v3555
          %v3557 = vperm.slane %v3549, %v3556
          %v3558 = vrot.slane %v3553, 4
          %v3559 = vsel %vm1723, %v3558, %v3541
          %v3560 = vrot.slane %v3541, 4
          %v3561 = vsel %vm1723, %v3553, %v3560
          %v3562 = vrot.slane %v3557, 4
          %v3563 = vsel %vm1723, %v3562, %v3545
          %v3564 = vrot.slane %v3545, 4
          %v3565 = vsel %vm1723, %v3557, %v3564
          %v3568 = vunpack.c.l.b16 %v3270
          %v3569 = vunpack.c.l.b16 %v3271
          %v3570 = vpack.c.b16 %v3569, %v3568
          %v3575 = vunpack.c.l.b16 %v3276
          %v3576 = vunpack.c.l.b16 %v3277
          %v3577 = vunpack.c.l.b16 %v3278
          %v3578 = vunpack.c.l.b16 %v3279
          %v3579 = vpack.c.b16 %v3576, %v3575
          %v3580 = vpack.c.b16 %v3578, %v3577
          %v3584 = vsel %vm1684, %v3570, 0
          %3586 = vmatpush.bf16.msra.mxu0 0
          %3587 = vmatpush.bf16.msra.mxu0 0
          %3588 = vmatpush.bf16.msra.mxu0 0
          %3589 = vmatpush.bf16.msra.mxu0 0
          %3590 = vmatpush.bf16.msra.mxu0 0
          %3591 = vmatpush.bf16.msra.mxu0 0
          %3592 = vmatpush.bf16.msra.mxu0 %v3580
          %3593 = vmatpush.bf16.msra.mxu0 %v3579
          %3594 = vmatmul.bf16.gmra.mxu0 %v3584
          %v3595 = vpop.f32.mrf.mxu0
          %v3596 = vadd.f32 0.0, %v3595
          %v3597 = vpop.f32.mrf.mxu0
          %v3598 = vadd.f32 0.0, %v3597
          %3599 = vdwg.mxu0
          %3602 = vrot.lane.b32.xlu0 %v3596, 120
          %v3603 = vpop.permute.xlu0 %3602
          %3604 = vrot.lane.b32.xlu0 %v3598, 120
          %v3605 = vpop.permute.xlu0 %3604
          %3608 = vrot.lane.b32.xlu0 %v3596, 112
          %v3609 = vpop.permute.xlu0 %3608
          %3610 = vrot.lane.b32.xlu0 %v3598, 112
          %v3611 = vpop.permute.xlu0 %3610
          %3614 = vrot.lane.b32.xlu0 %v3596, 104
          %v3615 = vpop.permute.xlu0 %3614
          %3616 = vrot.lane.b32.xlu0 %v3598, 104
          %v3617 = vpop.permute.xlu0 %3616
          %v3620 = vrot.slane %v3609, 4
          %v3621 = vsel %vm1723, %v3620, %v3596
          %v3622 = vrot.slane %v3596, 4
          %v3623 = vsel %vm1723, %v3609, %v3622
          %v3625 = vunpack.c.l.s4 1983009808
          %v3626 = vunpack.c.0.s8 %v3625
          %v3627 = vperm.slane %v3621, %v3626
          %v3629 = vunpack.c.l.s4 1983009808
          %v3630 = vunpack.c.0.s8 %v3629
          %v3631 = vperm.slane %v3623, %v3630
          %v3632 = vrot.slane %v3615, 4
          %v3633 = vsel %vm1723, %v3632, %v3603
          %v3634 = vrot.slane %v3603, 4
          %v3635 = vsel %vm1723, %v3615, %v3634
          %v3637 = vunpack.c.l.s4 1983009808
          %v3638 = vunpack.c.0.s8 %v3637
          %v3639 = vperm.slane %v3633, %v3638
          %v3641 = vunpack.c.l.s4 1983009808
          %v3642 = vunpack.c.0.s8 %v3641
          %v3643 = vperm.slane %v3635, %v3642
          %v3644 = vrot.slane %v3639, 4
          %v3645 = vsel %vm1723, %v3644, %v3627
          %v3646 = vrot.slane %v3627, 4
          %v3647 = vsel %vm1723, %v3639, %v3646
          %v3649 = vunpack.c.l.s4 1934713408
          %v3650 = vunpack.c.0.s8 %v3649
          %v3651 = vperm.slane %v3645, %v3650
          %v3653 = vunpack.c.l.s4 1934713408
          %v3654 = vunpack.c.0.s8 %v3653
          %v3655 = vperm.slane %v3647, %v3654
          %v3656 = vrot.slane %v3643, 4
          %v3657 = vsel %vm1723, %v3656, %v3631
          %v3658 = vrot.slane %v3631, 4
          %v3659 = vsel %vm1723, %v3643, %v3658
          %v3661 = vunpack.c.l.s4 1934713408
          %v3662 = vunpack.c.0.s8 %v3661
          %v3663 = vperm.slane %v3657, %v3662
          %v3665 = vunpack.c.l.s4 1934713408
          %v3666 = vunpack.c.0.s8 %v3665
          %v3667 = vperm.slane %v3659, %v3666
          %v3668 = vrot.slane %v3651, 4
          %v3669 = vsel %vm1723, 0.0, %v3668
          %v3670 = vrot.slane %v3655, 4
          %v3671 = vsel %vm1723, 0.0, %v3670
          %v3672 = vrot.slane %v3663, 4
          %v3673 = vsel %vm1723, 0.0, %v3672
          %v3674 = vrot.slane %v3667, 4
          %v3675 = vsel %vm1723, 0.0, %v3674
          %v3676 = vrot.slane %v3611, 4
          %v3677 = vsel %vm1723, %v3676, %v3598
          %v3678 = vrot.slane %v3598, 4
          %v3679 = vsel %vm1723, %v3611, %v3678
          %v3681 = vunpack.c.l.s4 1983009808
          %v3682 = vunpack.c.0.s8 %v3681
          %v3683 = vperm.slane %v3677, %v3682
          %v3685 = vunpack.c.l.s4 1983009808
          %v3686 = vunpack.c.0.s8 %v3685
          %v3687 = vperm.slane %v3679, %v3686
          %v3688 = vrot.slane %v3617, 4
          %v3689 = vsel %vm1723, %v3688, %v3605
          %v3690 = vrot.slane %v3605, 4
          %v3691 = vsel %vm1723, %v3617, %v3690
          %v3693 = vunpack.c.l.s4 1983009808
          %v3694 = vunpack.c.0.s8 %v3693
          %v3695 = vperm.slane %v3689, %v3694
          %v3697 = vunpack.c.l.s4 1983009808
          %v3698 = vunpack.c.0.s8 %v3697
          %v3699 = vperm.slane %v3691, %v3698
          %v3700 = vrot.slane %v3695, 4
          %v3701 = vsel %vm1723, %v3700, %v3683
          %v3702 = vrot.slane %v3683, 4
          %v3703 = vsel %vm1723, %v3695, %v3702
          %v3705 = vunpack.c.l.s4 1934713408
          %v3706 = vunpack.c.0.s8 %v3705
          %v3707 = vperm.slane %v3701, %v3706
          %v3709 = vunpack.c.l.s4 1934713408
          %v3710 = vunpack.c.0.s8 %v3709
          %v3711 = vperm.slane %v3703, %v3710
          %v3712 = vrot.slane %v3699, 4
          %v3713 = vsel %vm1723, %v3712, %v3687
          %v3714 = vrot.slane %v3687, 4
          %v3715 = vsel %vm1723, %v3699, %v3714
          %v3717 = vunpack.c.l.s4 1934713408
          %v3718 = vunpack.c.0.s8 %v3717
          %v3719 = vperm.slane %v3713, %v3718
          %v3721 = vunpack.c.l.s4 1934713408
          %v3722 = vunpack.c.0.s8 %v3721
          %v3723 = vperm.slane %v3715, %v3722
          %v3724 = vrot.slane %v3707, 4
          %v3725 = vsel %vm1723, 0.0, %v3724
          %v3726 = vrot.slane %v3711, 4
          %v3727 = vsel %vm1723, 0.0, %v3726
          %v3728 = vrot.slane %v3719, 4
          %v3729 = vsel %vm1723, 0.0, %v3728
          %v3730 = vrot.slane %v3723, 4
          %v3731 = vsel %vm1723, 0.0, %v3730
          %v3732 = vsel %vm1723, %v3670, %v3651
          %v3734 = vunpack.c.l.s4 1983009808
          %v3735 = vunpack.c.0.s8 %v3734
          %v3736 = vperm.slane %v3732, %v3735
          %v3737 = vrot.slane %v3671, 4
          %v3738 = vsel %vm1723, %v3737, %v3669
          %v3740 = vunpack.c.l.s4 1983009808
          %v3741 = vunpack.c.0.s8 %v3740
          %v3742 = vperm.slane %v3738, %v3741
          %v3743 = vsel %vm1723, %v3674, %v3663
          %v3745 = vunpack.c.l.s4 1983009808
          %v3746 = vunpack.c.0.s8 %v3745
          %v3747 = vperm.slane %v3743, %v3746
          %v3748 = vrot.slane %v3675, 4
          %v3749 = vsel %vm1723, %v3748, %v3673
          %v3751 = vunpack.c.l.s4 1983009808
          %v3752 = vunpack.c.0.s8 %v3751
          %v3753 = vperm.slane %v3749, %v3752
          %v3754 = vrot.slane %v3742, 4
          %v3755 = vsel %vm1723, %v3754, %v3736
          %v3756 = vrot.slane %v3736, 4
          %v3757 = vsel %vm1723, %v3742, %v3756
          %v3759 = vunpack.c.l.s4 1934713408
          %v3760 = vunpack.c.0.s8 %v3759
          %v3761 = vperm.slane %v3755, %v3760
          %v3763 = vunpack.c.l.s4 1934713408
          %v3764 = vunpack.c.0.s8 %v3763
          %v3765 = vperm.slane %v3757, %v3764
          %v3766 = vrot.slane %v3753, 4
          %v3767 = vsel %vm1723, %v3766, %v3747
          %v3768 = vrot.slane %v3747, 4
          %v3769 = vsel %vm1723, %v3753, %v3768
          %v3771 = vunpack.c.l.s4 1934713408
          %v3772 = vunpack.c.0.s8 %v3771
          %v3773 = vperm.slane %v3767, %v3772
          %v3775 = vunpack.c.l.s4 1934713408
          %v3776 = vunpack.c.0.s8 %v3775
          %v3777 = vperm.slane %v3769, %v3776
          %v3778 = vrot.slane %v3773, 4
          %v3779 = vsel %vm1723, %v3778, %v3761
          %v3780 = vrot.slane %v3761, 4
          %v3781 = vsel %vm1723, %v3773, %v3780
          %v3782 = vrot.slane %v3777, 4
          %v3783 = vsel %vm1723, %v3782, %v3765
          %v3784 = vrot.slane %v3765, 4
          %v3785 = vsel %vm1723, %v3777, %v3784
          %v3786 = vsel %vm1723, %v3726, %v3707
          %v3788 = vunpack.c.l.s4 1983009808
          %v3789 = vunpack.c.0.s8 %v3788
          %v3790 = vperm.slane %v3786, %v3789
          %v3791 = vrot.slane %v3727, 4
          %v3792 = vsel %vm1723, %v3791, %v3725
          %v3794 = vunpack.c.l.s4 1983009808
          %v3795 = vunpack.c.0.s8 %v3794
          %v3796 = vperm.slane %v3792, %v3795
          %v3797 = vsel %vm1723, %v3730, %v3719
          %v3799 = vunpack.c.l.s4 1983009808
          %v3800 = vunpack.c.0.s8 %v3799
          %v3801 = vperm.slane %v3797, %v3800
          %v3802 = vrot.slane %v3731, 4
          %v3803 = vsel %vm1723, %v3802, %v3729
          %v3805 = vunpack.c.l.s4 1983009808
          %v3806 = vunpack.c.0.s8 %v3805
          %v3807 = vperm.slane %v3803, %v3806
          %v3808 = vrot.slane %v3796, 4
          %v3809 = vsel %vm1723, %v3808, %v3790
          %v3810 = vrot.slane %v3790, 4
          %v3811 = vsel %vm1723, %v3796, %v3810
          %v3813 = vunpack.c.l.s4 1934713408
          %v3814 = vunpack.c.0.s8 %v3813
          %v3815 = vperm.slane %v3809, %v3814
          %v3817 = vunpack.c.l.s4 1934713408
          %v3818 = vunpack.c.0.s8 %v3817
          %v3819 = vperm.slane %v3811, %v3818
          %v3820 = vrot.slane %v3807, 4
          %v3821 = vsel %vm1723, %v3820, %v3801
          %v3822 = vrot.slane %v3801, 4
          %v3823 = vsel %vm1723, %v3807, %v3822
          %v3825 = vunpack.c.l.s4 1934713408
          %v3826 = vunpack.c.0.s8 %v3825
          %v3827 = vperm.slane %v3821, %v3826
          %v3829 = vunpack.c.l.s4 1934713408
          %v3830 = vunpack.c.0.s8 %v3829
          %v3831 = vperm.slane %v3823, %v3830
          %v3832 = vrot.slane %v3827, 4
          %v3833 = vsel %vm1723, %v3832, %v3815
          %v3834 = vrot.slane %v3815, 4
          %v3835 = vsel %vm1723, %v3827, %v3834
          %v3836 = vrot.slane %v3831, 4
          %v3837 = vsel %vm1723, %v3836, %v3819
          %v3838 = vrot.slane %v3819, 4
          %v3839 = vsel %vm1723, %v3831, %v3838
          %v3844 = vunpack.c.l.b16 %v3280
          %v3845 = vunpack.c.l.b16 %v3281
          %v3846 = vunpack.c.l.b16 %v3282
          %v3847 = vunpack.c.l.b16 %v3283
          %v3848 = vpack.c.b16 %v3845, %v3844
          %v3849 = vpack.c.b16 %v3847, %v3846
          %3852 = vmatpush.bf16.msra.mxu0 0
          %3853 = vmatpush.bf16.msra.mxu0 0
          %3854 = vmatpush.bf16.msra.mxu0 0
          %3855 = vmatpush.bf16.msra.mxu0 0
          %3856 = vmatpush.bf16.msra.mxu0 0
          %3857 = vmatpush.bf16.msra.mxu0 0
          %3858 = vmatpush.bf16.msra.mxu0 %v3849
          %3859 = vmatpush.bf16.msra.mxu0 %v3848
          %3860 = vmatmul.bf16.gmra.mxu0 %v3584
          %v3861 = vpop.f32.mrf.mxu0
          %v3862 = vadd.f32 0.0, %v3861
          %v3863 = vpop.f32.mrf.mxu0
          %v3864 = vadd.f32 0.0, %v3863
          %3865 = vdwg.mxu0
          %3868 = vrot.lane.b32.xlu0 %v3862, 120
          %v3869 = vpop.permute.xlu0 %3868
          %3870 = vrot.lane.b32.xlu0 %v3864, 120
          %v3871 = vpop.permute.xlu0 %3870
          %3874 = vrot.lane.b32.xlu0 %v3862, 112
          %v3875 = vpop.permute.xlu0 %3874
          %3876 = vrot.lane.b32.xlu0 %v3864, 112
          %v3877 = vpop.permute.xlu0 %3876
          %3880 = vrot.lane.b32.xlu0 %v3862, 104
          %v3881 = vpop.permute.xlu0 %3880
          %3882 = vrot.lane.b32.xlu0 %v3864, 104
          %v3883 = vpop.permute.xlu0 %3882
          %v3886 = vrot.slane %v3875, 4
          %v3887 = vsel %vm1723, %v3886, %v3862
          %v3888 = vrot.slane %v3862, 4
          %v3889 = vsel %vm1723, %v3875, %v3888
          %v3891 = vunpack.c.l.s4 1983009808
          %v3892 = vunpack.c.0.s8 %v3891
          %v3893 = vperm.slane %v3887, %v3892
          %v3895 = vunpack.c.l.s4 1983009808
          %v3896 = vunpack.c.0.s8 %v3895
          %v3897 = vperm.slane %v3889, %v3896
          %v3898 = vrot.slane %v3881, 4
          %v3899 = vsel %vm1723, %v3898, %v3869
          %v3900 = vrot.slane %v3869, 4
          %v3901 = vsel %vm1723, %v3881, %v3900
          %v3903 = vunpack.c.l.s4 1983009808
          %v3904 = vunpack.c.0.s8 %v3903
          %v3905 = vperm.slane %v3899, %v3904
          %v3907 = vunpack.c.l.s4 1983009808
          %v3908 = vunpack.c.0.s8 %v3907
          %v3909 = vperm.slane %v3901, %v3908
          %v3910 = vrot.slane %v3905, 4
          %v3911 = vsel %vm1723, %v3910, %v3893
          %v3912 = vrot.slane %v3893, 4
          %v3913 = vsel %vm1723, %v3905, %v3912
          %v3915 = vunpack.c.l.s4 1934713408
          %v3916 = vunpack.c.0.s8 %v3915
          %v3917 = vperm.slane %v3911, %v3916
          %v3919 = vunpack.c.l.s4 1934713408
          %v3920 = vunpack.c.0.s8 %v3919
          %v3921 = vperm.slane %v3913, %v3920
          %v3922 = vrot.slane %v3909, 4
          %v3923 = vsel %vm1723, %v3922, %v3897
          %v3924 = vrot.slane %v3897, 4
          %v3925 = vsel %vm1723, %v3909, %v3924
          %v3927 = vunpack.c.l.s4 1934713408
          %v3928 = vunpack.c.0.s8 %v3927
          %v3929 = vperm.slane %v3923, %v3928
          %v3931 = vunpack.c.l.s4 1934713408
          %v3932 = vunpack.c.0.s8 %v3931
          %v3933 = vperm.slane %v3925, %v3932
          %v3934 = vrot.slane %v3917, 4
          %v3935 = vsel %vm1723, 0.0, %v3934
          %v3936 = vrot.slane %v3921, 4
          %v3937 = vsel %vm1723, 0.0, %v3936
          %v3938 = vrot.slane %v3929, 4
          %v3939 = vsel %vm1723, 0.0, %v3938
          %v3940 = vrot.slane %v3933, 4
          %v3941 = vsel %vm1723, 0.0, %v3940
          %v3942 = vrot.slane %v3877, 4
          %v3943 = vsel %vm1723, %v3942, %v3864
          %v3944 = vrot.slane %v3864, 4
          %v3945 = vsel %vm1723, %v3877, %v3944
          %v3947 = vunpack.c.l.s4 1983009808
          %v3948 = vunpack.c.0.s8 %v3947
          %v3949 = vperm.slane %v3943, %v3948
          %v3951 = vunpack.c.l.s4 1983009808
          %v3952 = vunpack.c.0.s8 %v3951
          %v3953 = vperm.slane %v3945, %v3952
          %v3954 = vrot.slane %v3883, 4
          %v3955 = vsel %vm1723, %v3954, %v3871
          %v3956 = vrot.slane %v3871, 4
          %v3957 = vsel %vm1723, %v3883, %v3956
          %v3959 = vunpack.c.l.s4 1983009808
          %v3960 = vunpack.c.0.s8 %v3959
          %v3961 = vperm.slane %v3955, %v3960
          %v3963 = vunpack.c.l.s4 1983009808
          %v3964 = vunpack.c.0.s8 %v3963
          %v3965 = vperm.slane %v3957, %v3964
          %v3966 = vrot.slane %v3961, 4
          %v3967 = vsel %vm1723, %v3966, %v3949
          %v3968 = vrot.slane %v3949, 4
          %v3969 = vsel %vm1723, %v3961, %v3968
          %v3971 = vunpack.c.l.s4 1934713408
          %v3972 = vunpack.c.0.s8 %v3971
          %v3973 = vperm.slane %v3967, %v3972
          %v3975 = vunpack.c.l.s4 1934713408
          %v3976 = vunpack.c.0.s8 %v3975
          %v3977 = vperm.slane %v3969, %v3976
          %v3978 = vrot.slane %v3965, 4
          %v3979 = vsel %vm1723, %v3978, %v3953
          %v3980 = vrot.slane %v3953, 4
          %v3981 = vsel %vm1723, %v3965, %v3980
          %v3983 = vunpack.c.l.s4 1934713408
          %v3984 = vunpack.c.0.s8 %v3983
          %v3985 = vperm.slane %v3979, %v3984
          %v3987 = vunpack.c.l.s4 1934713408
          %v3988 = vunpack.c.0.s8 %v3987
          %v3989 = vperm.slane %v3981, %v3988
          %v3990 = vrot.slane %v3973, 4
          %v3991 = vsel %vm1723, 0.0, %v3990
          %v3992 = vrot.slane %v3977, 4
          %v3993 = vsel %vm1723, 0.0, %v3992
          %v3994 = vrot.slane %v3985, 4
          %v3995 = vsel %vm1723, 0.0, %v3994
          %v3996 = vrot.slane %v3989, 4
          %v3997 = vsel %vm1723, 0.0, %v3996
          %v3998 = vsel %vm1723, %v3936, %v3917
          %v4000 = vunpack.c.l.s4 1983009808
          %v4001 = vunpack.c.0.s8 %v4000
          %v4002 = vperm.slane %v3998, %v4001
          %v4003 = vrot.slane %v3937, 4
          %v4004 = vsel %vm1723, %v4003, %v3935
          %v4006 = vunpack.c.l.s4 1983009808
          %v4007 = vunpack.c.0.s8 %v4006
          %v4008 = vperm.slane %v4004, %v4007
          %v4009 = vsel %vm1723, %v3940, %v3929
          %v4011 = vunpack.c.l.s4 1983009808
          %v4012 = vunpack.c.0.s8 %v4011
          %v4013 = vperm.slane %v4009, %v4012
          %v4014 = vrot.slane %v3941, 4
          %v4015 = vsel %vm1723, %v4014, %v3939
          %v4017 = vunpack.c.l.s4 1983009808
          %v4018 = vunpack.c.0.s8 %v4017
          %v4019 = vperm.slane %v4015, %v4018
          %v4020 = vrot.slane %v4008, 4
          %v4021 = vsel %vm1723, %v4020, %v4002
          %v4022 = vrot.slane %v4002, 4
          %v4023 = vsel %vm1723, %v4008, %v4022
          %v4025 = vunpack.c.l.s4 1934713408
          %v4026 = vunpack.c.0.s8 %v4025
          %v4027 = vperm.slane %v4021, %v4026
          %v4029 = vunpack.c.l.s4 1934713408
          %v4030 = vunpack.c.0.s8 %v4029
          %v4031 = vperm.slane %v4023, %v4030
          %v4032 = vrot.slane %v4019, 4
          %v4033 = vsel %vm1723, %v4032, %v4013
          %v4034 = vrot.slane %v4013, 4
          %v4035 = vsel %vm1723, %v4019, %v4034
          %v4037 = vunpack.c.l.s4 1934713408
          %v4038 = vunpack.c.0.s8 %v4037
          %v4039 = vperm.slane %v4033, %v4038
          %v4041 = vunpack.c.l.s4 1934713408
          %v4042 = vunpack.c.0.s8 %v4041
          %v4043 = vperm.slane %v4035, %v4042
          %v4044 = vrot.slane %v4039, 4
          %v4045 = vsel %vm1723, %v4044, %v4027
          %v4046 = vrot.slane %v4027, 4
          %v4047 = vsel %vm1723, %v4039, %v4046
          %v4048 = vrot.slane %v4043, 4
          %v4049 = vsel %vm1723, %v4048, %v4031
          %v4050 = vrot.slane %v4031, 4
          %v4051 = vsel %vm1723, %v4043, %v4050
          %v4052 = vsel %vm1723, %v3992, %v3973
          %v4054 = vunpack.c.l.s4 1983009808
          %v4055 = vunpack.c.0.s8 %v4054
          %v4056 = vperm.slane %v4052, %v4055
          %v4057 = vrot.slane %v3993, 4
          %v4058 = vsel %vm1723, %v4057, %v3991
          %v4060 = vunpack.c.l.s4 1983009808
          %v4061 = vunpack.c.0.s8 %v4060
          %v4062 = vperm.slane %v4058, %v4061
          %v4063 = vsel %vm1723, %v3996, %v3985
          %v4065 = vunpack.c.l.s4 1983009808
          %v4066 = vunpack.c.0.s8 %v4065
          %v4067 = vperm.slane %v4063, %v4066
          %v4068 = vrot.slane %v3997, 4
          %v4069 = vsel %vm1723, %v4068, %v3995
          %v4071 = vunpack.c.l.s4 1983009808
          %v4072 = vunpack.c.0.s8 %v4071
          %v4073 = vperm.slane %v4069, %v4072
          %v4074 = vrot.slane %v4062, 4
          %v4075 = vsel %vm1723, %v4074, %v4056
          %v4076 = vrot.slane %v4056, 4
          %v4077 = vsel %vm1723, %v4062, %v4076
          %v4079 = vunpack.c.l.s4 1934713408
          %v4080 = vunpack.c.0.s8 %v4079
          %v4081 = vperm.slane %v4075, %v4080
          %v4083 = vunpack.c.l.s4 1934713408
          %v4084 = vunpack.c.0.s8 %v4083
          %v4085 = vperm.slane %v4077, %v4084
          %v4086 = vrot.slane %v4073, 4
          %v4087 = vsel %vm1723, %v4086, %v4067
          %v4088 = vrot.slane %v4067, 4
          %v4089 = vsel %vm1723, %v4073, %v4088
          %v4091 = vunpack.c.l.s4 1934713408
          %v4092 = vunpack.c.0.s8 %v4091
          %v4093 = vperm.slane %v4087, %v4092
          %v4095 = vunpack.c.l.s4 1934713408
          %v4096 = vunpack.c.0.s8 %v4095
          %v4097 = vperm.slane %v4089, %v4096
          %v4098 = vrot.slane %v4093, 4
          %v4099 = vsel %vm1723, %v4098, %v4081
          %v4100 = vrot.slane %v4081, 4
          %v4101 = vsel %vm1723, %v4093, %v4100
          %v4102 = vrot.slane %v4097, 4
          %v4103 = vsel %vm1723, %v4102, %v4085
          %v4104 = vrot.slane %v4085, 4
          %v4105 = vsel %vm1723, %v4097, %v4104
          %v4106 = vpack.c.bf16 %v3505, %v3505
          %v4107 = vpack.c.bf16 %v3507, %v3507
          %v4108 = vpack.c.bf16 %v3509, %v3509
          %v4109 = vpack.c.bf16 %v3511, %v3511
          %v4110 = vpack.c.bf16 %v3559, %v3559
          %v4111 = vpack.c.bf16 %v3561, %v3561
          %v4112 = vpack.c.bf16 %v3563, %v3563
          %v4113 = vpack.c.bf16 %v3565, %v3565
          %v4114 = vpack.c.bf16 %v3779, %v3779
          %v4115 = vpack.c.bf16 %v3781, %v3781
          %v4116 = vpack.c.bf16 %v3783, %v3783
          %v4117 = vpack.c.bf16 %v3785, %v3785
          %v4118 = vpack.c.bf16 %v3833, %v3833
          %v4119 = vpack.c.bf16 %v3835, %v3835
          %v4120 = vpack.c.bf16 %v3837, %v3837
          %v4121 = vpack.c.bf16 %v3839, %v3839
          %v4123 = vsel %vm2491, %v4106, 0
          %v4126 = vsel %vm2491, %v4114, 0
          %4128 = vmatpush.bf16.xpose.msra.mxu0 0
          %4129 = vmatpush.bf16.xpose.msra.mxu0 0
          %4130 = vmatpush.bf16.xpose.msra.mxu0 0
          %4131 = vmatpush.bf16.xpose.msra.mxu0 0
          %4132 = vmatpush.bf16.xpose.msra.mxu0 0
          %4133 = vmatpush.bf16.xpose.msra.mxu0 0
          %4134 = vmatpush.bf16.xpose.msra.mxu0 0
          %4135 = vmatpush.bf16.xpose.msra.mxu0 %v4126
          %4136 = vmatmul.bf16.gmra.mxu0 %v4123
          %v4137 = vpop.f32.mrf.mxu0
          %v4138 = vadd.f32 0.0, %v4137
          %v4139 = vpop.f32.mrf.mxu0
          %4140 = vdwg.mxu0
          %v4142 = vsel %vm2491, %v4107, 0
          %v4145 = vsel %vm2491, %v4115, 0
          %4147 = vmatpush.bf16.xpose.msra.mxu0 0
          %4148 = vmatpush.bf16.xpose.msra.mxu0 0
          %4149 = vmatpush.bf16.xpose.msra.mxu0 0
          %4150 = vmatpush.bf16.xpose.msra.mxu0 0
          %4151 = vmatpush.bf16.xpose.msra.mxu0 0
          %4152 = vmatpush.bf16.xpose.msra.mxu0 0
          %4153 = vmatpush.bf16.xpose.msra.mxu0 0
          %4154 = vmatpush.bf16.xpose.msra.mxu0 %v4145
          %4155 = vmatmul.bf16.gmra.mxu0 %v4142
          %v4156 = vpop.f32.mrf.mxu0
          %v4157 = vadd.f32 0.0, %v4156
          %v4158 = vpop.f32.mrf.mxu0
          %4159 = vdwg.mxu0
          %v4161 = vsel %vm2491, %v4108, 0
          %v4164 = vsel %vm2491, %v4116, 0
          %4166 = vmatpush.bf16.xpose.msra.mxu0 0
          %4167 = vmatpush.bf16.xpose.msra.mxu0 0
          %4168 = vmatpush.bf16.xpose.msra.mxu0 0
          %4169 = vmatpush.bf16.xpose.msra.mxu0 0
          %4170 = vmatpush.bf16.xpose.msra.mxu0 0
          %4171 = vmatpush.bf16.xpose.msra.mxu0 0
          %4172 = vmatpush.bf16.xpose.msra.mxu0 0
          %4173 = vmatpush.bf16.xpose.msra.mxu0 %v4164
          %4174 = vmatmul.bf16.gmra.mxu0 %v4161
          %v4175 = vpop.f32.mrf.mxu0
          %v4176 = vadd.f32 0.0, %v4175
          %v4177 = vpop.f32.mrf.mxu0
          %4178 = vdwg.mxu0
          %v4180 = vsel %vm2491, %v4109, 0
          %v4183 = vsel %vm2491, %v4117, 0
          %4185 = vmatpush.bf16.xpose.msra.mxu0 0
          %4186 = vmatpush.bf16.xpose.msra.mxu0 0
          %4187 = vmatpush.bf16.xpose.msra.mxu0 0
          %4188 = vmatpush.bf16.xpose.msra.mxu0 0
          %4189 = vmatpush.bf16.xpose.msra.mxu0 0
          %4190 = vmatpush.bf16.xpose.msra.mxu0 0
          %4191 = vmatpush.bf16.xpose.msra.mxu0 0
          %4192 = vmatpush.bf16.xpose.msra.mxu0 %v4183
          %4193 = vmatmul.bf16.gmra.mxu0 %v4180
          %v4194 = vpop.f32.mrf.mxu0
          %v4195 = vadd.f32 0.0, %v4194
          %v4196 = vpop.f32.mrf.mxu0
          %4197 = vdwg.mxu0
          %v4199 = vsel %vm2491, %v4110, 0
          %v4202 = vsel %vm2491, %v4118, 0
          %4204 = vmatpush.bf16.xpose.msra.mxu0 0
          %4205 = vmatpush.bf16.xpose.msra.mxu0 0
          %4206 = vmatpush.bf16.xpose.msra.mxu0 0
          %4207 = vmatpush.bf16.xpose.msra.mxu0 0
          %4208 = vmatpush.bf16.xpose.msra.mxu0 0
          %4209 = vmatpush.bf16.xpose.msra.mxu0 0
          %4210 = vmatpush.bf16.xpose.msra.mxu0 0
          %4211 = vmatpush.bf16.xpose.msra.mxu0 %v4202
          %4212 = vmatmul.bf16.gmra.mxu0 %v4199
          %v4213 = vpop.f32.mrf.mxu0
          %v4214 = vadd.f32 0.0, %v4213
          %v4215 = vpop.f32.mrf.mxu0
          %4216 = vdwg.mxu0
          %v4218 = vsel %vm2491, %v4111, 0
          %v4221 = vsel %vm2491, %v4119, 0
          %4223 = vmatpush.bf16.xpose.msra.mxu0 0
          %4224 = vmatpush.bf16.xpose.msra.mxu0 0
          %4225 = vmatpush.bf16.xpose.msra.mxu0 0
          %4226 = vmatpush.bf16.xpose.msra.mxu0 0
          %4227 = vmatpush.bf16.xpose.msra.mxu0 0
          %4228 = vmatpush.bf16.xpose.msra.mxu0 0
          %4229 = vmatpush.bf16.xpose.msra.mxu0 0
          %4230 = vmatpush.bf16.xpose.msra.mxu0 %v4221
          %4231 = vmatmul.bf16.gmra.mxu0 %v4218
          %v4232 = vpop.f32.mrf.mxu0
          %v4233 = vadd.f32 0.0, %v4232
          %v4234 = vpop.f32.mrf.mxu0
          %4235 = vdwg.mxu0
          %v4237 = vsel %vm2491, %v4112, 0
          %v4240 = vsel %vm2491, %v4120, 0
          %4242 = vmatpush.bf16.xpose.msra.mxu0 0
          %4243 = vmatpush.bf16.xpose.msra.mxu0 0
          %4244 = vmatpush.bf16.xpose.msra.mxu0 0
          %4245 = vmatpush.bf16.xpose.msra.mxu0 0
          %4246 = vmatpush.bf16.xpose.msra.mxu0 0
          %4247 = vmatpush.bf16.xpose.msra.mxu0 0
          %4248 = vmatpush.bf16.xpose.msra.mxu0 0
          %4249 = vmatpush.bf16.xpose.msra.mxu0 %v4240
          %4250 = vmatmul.bf16.gmra.mxu0 %v4237
          %v4251 = vpop.f32.mrf.mxu0
          %v4252 = vadd.f32 0.0, %v4251
          %v4253 = vpop.f32.mrf.mxu0
          %4254 = vdwg.mxu0
          %v4256 = vsel %vm2491, %v4113, 0
          %v4259 = vsel %vm2491, %v4121, 0
          %4261 = vmatpush.bf16.xpose.msra.mxu0 0
          %4262 = vmatpush.bf16.xpose.msra.mxu0 0
          %4263 = vmatpush.bf16.xpose.msra.mxu0 0
          %4264 = vmatpush.bf16.xpose.msra.mxu0 0
          %4265 = vmatpush.bf16.xpose.msra.mxu0 0
          %4266 = vmatpush.bf16.xpose.msra.mxu0 0
          %4267 = vmatpush.bf16.xpose.msra.mxu0 0
          %4268 = vmatpush.bf16.xpose.msra.mxu0 %v4259
          %4269 = vmatmul.bf16.gmra.mxu0 %v4256
          %v4270 = vpop.f32.mrf.mxu0
          %v4271 = vadd.f32 0.0, %v4270
          %v4272 = vpop.f32.mrf.mxu0
          %4273 = vdwg.mxu0
          %v4274 = vmul.f32 %v4138, 0.35355338
          %v4275 = vmul.f32 %v4157, 0.35355338
          %v4276 = vmul.f32 %v4176, 0.35355338
          %v4277 = vmul.f32 %v4195, 0.35355338
          %v4278 = vmul.f32 %v4214, 0.35355338
          %v4279 = vmul.f32 %v4233, 0.35355338
          %v4280 = vmul.f32 %v4252, 0.35355338
          %v4281 = vmul.f32 %v4271, 0.35355338
          %v4290 = vperm.slane %v3288, 0
          %v4291 = vperm.slane %v3289, 0
          %v4292 = vperm.slane %v3290, 0
          %v4293 = vperm.slane %v3291, 0
          %v4294 = vperm.slane %v3292, 0
          %v4295 = vperm.slane %v3293, 0
          %v4296 = vperm.slane %v3294, 0
          %v4297 = vperm.slane %v3295, 0
          %v4306 = vadd.f32 %v4274, %v4290
          %v4307 = vadd.f32 %v4275, %v4291
          %v4308 = vadd.f32 %v4276, %v4292
          %v4309 = vadd.f32 %v4277, %v4293
          %v4310 = vadd.f32 %v4278, %v4294
          %v4311 = vadd.f32 %v4279, %v4295
          %v4312 = vadd.f32 %v4280, %v4296
          %v4313 = vadd.f32 %v4281, %v4297
          %v4314 = vsel %vm2491, %v4306, -inf
          %4315 = vmax.xlane.f32.xlu0 %v4314
          %v4316 = vpop.xlane.xlu0 %4315
          %v4317 = vsel %vm2491, %v4307, -inf
          %4318 = vmax.xlane.f32.xlu0 %v4317
          %v4319 = vpop.xlane.xlu0 %4318
          %v4320 = vsel %vm2491, %v4308, -inf
          %4321 = vmax.xlane.f32.xlu0 %v4320
          %v4322 = vpop.xlane.xlu0 %4321
          %v4323 = vsel %vm2491, %v4309, -inf
          %4324 = vmax.xlane.f32.xlu0 %v4323
          %v4325 = vpop.xlane.xlu0 %4324
          %v4326 = vsel %vm2491, %v4310, -inf
          %4327 = vmax.xlane.f32.xlu0 %v4326
          %v4328 = vpop.xlane.xlu0 %4327
          %v4329 = vsel %vm2491, %v4311, -inf
          %4330 = vmax.xlane.f32.xlu0 %v4329
          %v4331 = vpop.xlane.xlu0 %4330
          %v4332 = vsel %vm2491, %v4312, -inf
          %4333 = vmax.xlane.f32.xlu0 %v4332
          %v4334 = vpop.xlane.xlu0 %4333
          %v4335 = vsel %vm2491, %v4313, -inf
          %4336 = vmax.xlane.f32.xlu0 %v4335
          %v4337 = vpop.xlane.xlu0 %4336
          %v4338 = vsub.f32 %v4306, %v4316
          %v4339 = vsub.f32 %v4307, %v4319
          %v4340 = vsub.f32 %v4308, %v4322
          %v4341 = vsub.f32 %v4309, %v4325
          %v4342 = vsub.f32 %v4310, %v4328
          %v4343 = vsub.f32 %v4311, %v4331
          %v4344 = vsub.f32 %v4312, %v4334
          %v4345 = vsub.f32 %v4313, %v4337
          %v4346 = vmul.f32 %v4338, 1.442695
          %v4347 = vpow.pop %v4346
          %v4348 = vmul.f32 %v4339, 1.442695
          %v4349 = vpow.pop %v4348
          %v4350 = vmul.f32 %v4340, 1.442695
          %v4351 = vpow.pop %v4350
          %v4352 = vmul.f32 %v4341, 1.442695
          %v4353 = vpow.pop %v4352
          %v4354 = vmul.f32 %v4342, 1.442695
          %v4355 = vpow.pop %v4354
          %v4356 = vmul.f32 %v4343, 1.442695
          %v4357 = vpow.pop %v4356
          %v4358 = vmul.f32 %v4344, 1.442695
          %v4359 = vpow.pop %v4358
          %v4360 = vmul.f32 %v4345, 1.442695
          %v4361 = vpow.pop %v4360
          %v4362 = vsel %vm2491, %v4347, 0.0
          %4363 = vadd.xlane.f32.xlu0 %v4362
          %v4364 = vpop.xlane.xlu0 %4363
          %v4365 = vsel %vm2491, %v4349, 0.0
          %4366 = vadd.xlane.f32.xlu0 %v4365
          %v4367 = vpop.xlane.xlu0 %4366
          %v4368 = vsel %vm2491, %v4351, 0.0
          %4369 = vadd.xlane.f32.xlu0 %v4368
          %v4370 = vpop.xlane.xlu0 %4369
          %v4371 = vsel %vm2491, %v4353, 0.0
          %4372 = vadd.xlane.f32.xlu0 %v4371
          %v4373 = vpop.xlane.xlu0 %4372
          %v4374 = vsel %vm2491, %v4355, 0.0
          %4375 = vadd.xlane.f32.xlu0 %v4374
          %v4376 = vpop.xlane.xlu0 %4375
          %v4377 = vsel %vm2491, %v4357, 0.0
          %4378 = vadd.xlane.f32.xlu0 %v4377
          %v4379 = vpop.xlane.xlu0 %4378
          %v4380 = vsel %vm2491, %v4359, 0.0
          %4381 = vadd.xlane.f32.xlu0 %v4380
          %v4382 = vpop.xlane.xlu0 %4381
          %v4383 = vsel %vm2491, %v4361, 0.0
          %4384 = vadd.xlane.f32.xlu0 %v4383
          %v4385 = vpop.xlane.xlu0 %4384
          %v4386 = vrcp.pop %v4364
          %v4387 = vrcp.pop %v4367
          %v4388 = vrcp.pop %v4370
          %v4389 = vrcp.pop %v4373
          %v4390 = vrcp.pop %v4376
          %v4391 = vrcp.pop %v4379
          %v4392 = vrcp.pop %v4382
          %v4393 = vrcp.pop %v4385
          %v4394 = vmul.f32 %v4347, %v4386
          %v4395 = vmul.f32 %v4349, %v4387
          %v4396 = vmul.f32 %v4351, %v4388
          %v4397 = vmul.f32 %v4353, %v4389
          %v4398 = vmul.f32 %v4355, %v4390
          %v4399 = vmul.f32 %v4357, %v4391
          %v4400 = vmul.f32 %v4359, %v4392
          %v4401 = vmul.f32 %v4361, %v4393
          %v4402 = vpack.c.bf16 %v4394, %v4394
          %v4403 = vpack.c.bf16 %v4395, %v4395
          %v4404 = vpack.c.bf16 %v4396, %v4396
          %v4405 = vpack.c.bf16 %v4397, %v4397
          %v4406 = vpack.c.bf16 %v4398, %v4398
          %v4407 = vpack.c.bf16 %v4399, %v4399
          %v4408 = vpack.c.bf16 %v4400, %v4400
          %v4409 = vpack.c.bf16 %v4401, %v4401
          %v4410 = vpack.c.bf16 %v4045, %v4045
          %v4411 = vpack.c.bf16 %v4047, %v4047
          %v4412 = vpack.c.bf16 %v4049, %v4049
          %v4413 = vpack.c.bf16 %v4051, %v4051
          %v4414 = vpack.c.bf16 %v4099, %v4099
          %v4415 = vpack.c.bf16 %v4101, %v4101
          %v4416 = vpack.c.bf16 %v4103, %v4103
          %v4417 = vpack.c.bf16 %v4105, %v4105
          %v4419 = vsel %vm2491, %v4402, 0
          %v4422 = vsel %vm2767, %v4410, 0
          %4424 = vmatpush.bf16.msra.mxu0 0
          %4425 = vmatpush.bf16.msra.mxu0 0
          %4426 = vmatpush.bf16.msra.mxu0 0
          %4427 = vmatpush.bf16.msra.mxu0 0
          %4428 = vmatpush.bf16.msra.mxu0 0
          %4429 = vmatpush.bf16.msra.mxu0 0
          %4430 = vmatpush.bf16.msra.mxu0 0
          %4431 = vmatpush.bf16.msra.mxu0 %v4422
          %4432 = vmatmul.bf16.gmra.mxu0 %v4419
          %v4433 = vpop.f32.mrf.mxu0
          %v4434 = vadd.f32 0.0, %v4433
          %v4435 = vpop.f32.mrf.mxu0
          %4436 = vdwg.mxu0
          %v4438 = vsel %vm2491, %v4403, 0
          %v4441 = vsel %vm2767, %v4411, 0
          %4443 = vmatpush.bf16.msra.mxu0 0
          %4444 = vmatpush.bf16.msra.mxu0 0
          %4445 = vmatpush.bf16.msra.mxu0 0
          %4446 = vmatpush.bf16.msra.mxu0 0
          %4447 = vmatpush.bf16.msra.mxu0 0
          %4448 = vmatpush.bf16.msra.mxu0 0
          %4449 = vmatpush.bf16.msra.mxu0 0
          %4450 = vmatpush.bf16.msra.mxu0 %v4441
          %4451 = vmatmul.bf16.gmra.mxu0 %v4438
          %v4452 = vpop.f32.mrf.mxu0
          %v4453 = vadd.f32 0.0, %v4452
          %v4454 = vpop.f32.mrf.mxu0
          %4455 = vdwg.mxu0
          %v4457 = vsel %vm2491, %v4404, 0
          %v4460 = vsel %vm2767, %v4412, 0
          %4462 = vmatpush.bf16.msra.mxu0 0
          %4463 = vmatpush.bf16.msra.mxu0 0
          %4464 = vmatpush.bf16.msra.mxu0 0
          %4465 = vmatpush.bf16.msra.mxu0 0
          %4466 = vmatpush.bf16.msra.mxu0 0
          %4467 = vmatpush.bf16.msra.mxu0 0
          %4468 = vmatpush.bf16.msra.mxu0 0
          %4469 = vmatpush.bf16.msra.mxu0 %v4460
          %4470 = vmatmul.bf16.gmra.mxu0 %v4457
          %v4471 = vpop.f32.mrf.mxu0
          %v4472 = vadd.f32 0.0, %v4471
          %v4473 = vpop.f32.mrf.mxu0
          %4474 = vdwg.mxu0
          %v4476 = vsel %vm2491, %v4405, 0
          %v4479 = vsel %vm2767, %v4413, 0
          %4481 = vmatpush.bf16.msra.mxu0 0
          %4482 = vmatpush.bf16.msra.mxu0 0
          %4483 = vmatpush.bf16.msra.mxu0 0
          %4484 = vmatpush.bf16.msra.mxu0 0
          %4485 = vmatpush.bf16.msra.mxu0 0
          %4486 = vmatpush.bf16.msra.mxu0 0
          %4487 = vmatpush.bf16.msra.mxu0 0
          %4488 = vmatpush.bf16.msra.mxu0 %v4479
          %4489 = vmatmul.bf16.gmra.mxu0 %v4476
          %v4490 = vpop.f32.mrf.mxu0
          %v4491 = vadd.f32 0.0, %v4490
          %v4492 = vpop.f32.mrf.mxu0
          %4493 = vdwg.mxu0
          %v4495 = vsel %vm2491, %v4406, 0
          %v4498 = vsel %vm2767, %v4414, 0
          %4500 = vmatpush.bf16.msra.mxu0 0
          %4501 = vmatpush.bf16.msra.mxu0 0
          %4502 = vmatpush.bf16.msra.mxu0 0
          %4503 = vmatpush.bf16.msra.mxu0 0
          %4504 = vmatpush.bf16.msra.mxu0 0
          %4505 = vmatpush.bf16.msra.mxu0 0
          %4506 = vmatpush.bf16.msra.mxu0 0
          %4507 = vmatpush.bf16.msra.mxu0 %v4498
          %4508 = vmatmul.bf16.gmra.mxu0 %v4495
          %v4509 = vpop.f32.mrf.mxu0
          %v4510 = vadd.f32 0.0, %v4509
          %v4511 = vpop.f32.mrf.mxu0
          %4512 = vdwg.mxu0
          %v4514 = vsel %vm2491, %v4407, 0
          %v4517 = vsel %vm2767, %v4415, 0
          %4519 = vmatpush.bf16.msra.mxu0 0
          %4520 = vmatpush.bf16.msra.mxu0 0
          %4521 = vmatpush.bf16.msra.mxu0 0
          %4522 = vmatpush.bf16.msra.mxu0 0
          %4523 = vmatpush.bf16.msra.mxu0 0
          %4524 = vmatpush.bf16.msra.mxu0 0
          %4525 = vmatpush.bf16.msra.mxu0 0
          %4526 = vmatpush.bf16.msra.mxu0 %v4517
          %4527 = vmatmul.bf16.gmra.mxu0 %v4514
          %v4528 = vpop.f32.mrf.mxu0
          %v4529 = vadd.f32 0.0, %v4528
          %v4530 = vpop.f32.mrf.mxu0
          %4531 = vdwg.mxu0
          %v4533 = vsel %vm2491, %v4408, 0
          %v4536 = vsel %vm2767, %v4416, 0
          %4538 = vmatpush.bf16.msra.mxu0 0
          %4539 = vmatpush.bf16.msra.mxu0 0
          %4540 = vmatpush.bf16.msra.mxu0 0
          %4541 = vmatpush.bf16.msra.mxu0 0
          %4542 = vmatpush.bf16.msra.mxu0 0
          %4543 = vmatpush.bf16.msra.mxu0 0
          %4544 = vmatpush.bf16.msra.mxu0 0
          %4545 = vmatpush.bf16.msra.mxu0 %v4536
          %4546 = vmatmul.bf16.gmra.mxu0 %v4533
          %v4547 = vpop.f32.mrf.mxu0
          %v4548 = vadd.f32 0.0, %v4547
          %v4549 = vpop.f32.mrf.mxu0
          %4550 = vdwg.mxu0
          %v4552 = vsel %vm2491, %v4409, 0
          %v4555 = vsel %vm2767, %v4417, 0
          %4557 = vmatpush.bf16.msra.mxu0 0
          %4558 = vmatpush.bf16.msra.mxu0 0
          %4559 = vmatpush.bf16.msra.mxu0 0
          %4560 = vmatpush.bf16.msra.mxu0 0
          %4561 = vmatpush.bf16.msra.mxu0 0
          %4562 = vmatpush.bf16.msra.mxu0 0
          %4563 = vmatpush.bf16.msra.mxu0 0
          %4564 = vmatpush.bf16.msra.mxu0 %v4555
          %4565 = vmatmul.bf16.gmra.mxu0 %v4552
          %v4566 = vpop.f32.mrf.mxu0
          %v4567 = vadd.f32 0.0, %v4566
          %v4568 = vpop.f32.mrf.mxu0
          %4569 = vdwg.mxu0
          %v4570 = vrot.slane %v4472, 4
          %v4571 = vsel %vm1723, %v4570, %v4434
          %v4572 = vrot.slane %v4434, 4
          %v4573 = vsel %vm1723, %v4472, %v4572
          %v4575 = vunpack.c.l.s4 1983009808
          %v4576 = vunpack.c.0.s8 %v4575
          %v4577 = vperm.slane %v4571, %v4576
          %v4579 = vunpack.c.l.s4 1983009808
          %v4580 = vunpack.c.0.s8 %v4579
          %v4581 = vperm.slane %v4573, %v4580
          %v4582 = vrot.slane %v4491, 4
          %v4583 = vsel %vm1723, %v4582, %v4453
          %v4584 = vrot.slane %v4453, 4
          %v4585 = vsel %vm1723, %v4491, %v4584
          %v4587 = vunpack.c.l.s4 1983009808
          %v4588 = vunpack.c.0.s8 %v4587
          %v4589 = vperm.slane %v4583, %v4588
          %v4591 = vunpack.c.l.s4 1983009808
          %v4592 = vunpack.c.0.s8 %v4591
          %v4593 = vperm.slane %v4585, %v4592
          %v4594 = vrot.slane %v4589, 4
          %v4595 = vsel %vm1723, %v4594, %v4577
          %v4596 = vrot.slane %v4577, 4
          %v4597 = vsel %vm1723, %v4589, %v4596
          %v4599 = vunpack.c.l.s4 1934713408
          %v4600 = vunpack.c.0.s8 %v4599
          %v4601 = vperm.slane %v4595, %v4600
          %v4603 = vunpack.c.l.s4 1934713408
          %v4604 = vunpack.c.0.s8 %v4603
          %v4605 = vperm.slane %v4597, %v4604
          %v4606 = vrot.slane %v4593, 4
          %v4607 = vsel %vm1723, %v4606, %v4581
          %v4608 = vrot.slane %v4581, 4
          %v4609 = vsel %vm1723, %v4593, %v4608
          %v4611 = vunpack.c.l.s4 1934713408
          %v4612 = vunpack.c.0.s8 %v4611
          %v4613 = vperm.slane %v4607, %v4612
          %v4615 = vunpack.c.l.s4 1934713408
          %v4616 = vunpack.c.0.s8 %v4615
          %v4617 = vperm.slane %v4609, %v4616
          %v4618 = vrot.slane %v4601, 4
          %v4619 = vsel %vm1723, 0.0, %v4618
          %v4620 = vrot.slane %v4605, 4
          %v4621 = vsel %vm1723, 0.0, %v4620
          %v4622 = vrot.slane %v4613, 4
          %v4623 = vsel %vm1723, 0.0, %v4622
          %v4624 = vrot.slane %v4617, 4
          %v4625 = vsel %vm1723, 0.0, %v4624
          %v4626 = vrot.slane %v4548, 4
          %v4627 = vsel %vm1723, %v4626, %v4510
          %v4628 = vrot.slane %v4510, 4
          %v4629 = vsel %vm1723, %v4548, %v4628
          %v4631 = vunpack.c.l.s4 1983009808
          %v4632 = vunpack.c.0.s8 %v4631
          %v4633 = vperm.slane %v4627, %v4632
          %v4635 = vunpack.c.l.s4 1983009808
          %v4636 = vunpack.c.0.s8 %v4635
          %v4637 = vperm.slane %v4629, %v4636
          %v4638 = vrot.slane %v4567, 4
          %v4639 = vsel %vm1723, %v4638, %v4529
          %v4640 = vrot.slane %v4529, 4
          %v4641 = vsel %vm1723, %v4567, %v4640
          %v4643 = vunpack.c.l.s4 1983009808
          %v4644 = vunpack.c.0.s8 %v4643
          %v4645 = vperm.slane %v4639, %v4644
          %v4647 = vunpack.c.l.s4 1983009808
          %v4648 = vunpack.c.0.s8 %v4647
          %v4649 = vperm.slane %v4641, %v4648
          %v4650 = vrot.slane %v4645, 4
          %v4651 = vsel %vm1723, %v4650, %v4633
          %v4652 = vrot.slane %v4633, 4
          %v4653 = vsel %vm1723, %v4645, %v4652
          %v4655 = vunpack.c.l.s4 1934713408
          %v4656 = vunpack.c.0.s8 %v4655
          %v4657 = vperm.slane %v4651, %v4656
          %v4659 = vunpack.c.l.s4 1934713408
          %v4660 = vunpack.c.0.s8 %v4659
          %v4661 = vperm.slane %v4653, %v4660
          %v4662 = vrot.slane %v4649, 4
          %v4663 = vsel %vm1723, %v4662, %v4637
          %v4664 = vrot.slane %v4637, 4
          %v4665 = vsel %vm1723, %v4649, %v4664
          %v4667 = vunpack.c.l.s4 1934713408
          %v4668 = vunpack.c.0.s8 %v4667
          %v4669 = vperm.slane %v4663, %v4668
          %v4671 = vunpack.c.l.s4 1934713408
          %v4672 = vunpack.c.0.s8 %v4671
          %v4673 = vperm.slane %v4665, %v4672
          %v4674 = vrot.slane %v4657, 4
          %v4675 = vsel %vm1723, 0.0, %v4674
          %v4676 = vrot.slane %v4661, 4
          %v4677 = vsel %vm1723, 0.0, %v4676
          %v4678 = vrot.slane %v4669, 4
          %v4679 = vsel %vm1723, 0.0, %v4678
          %v4680 = vrot.slane %v4673, 4
          %v4681 = vsel %vm1723, 0.0, %v4680
          %v4682 = vsel %vm1723, %v4620, %v4601
          %v4684 = vunpack.c.l.s4 1983009808
          %v4685 = vunpack.c.0.s8 %v4684
          %v4686 = vperm.slane %v4682, %v4685
          %v4687 = vrot.slane %v4621, 4
          %v4688 = vsel %vm1723, %v4687, %v4619
          %v4690 = vunpack.c.l.s4 1983009808
          %v4691 = vunpack.c.0.s8 %v4690
          %v4692 = vperm.slane %v4688, %v4691
          %v4693 = vsel %vm1723, %v4624, %v4613
          %v4695 = vunpack.c.l.s4 1983009808
          %v4696 = vunpack.c.0.s8 %v4695
          %v4697 = vperm.slane %v4693, %v4696
          %v4698 = vrot.slane %v4625, 4
          %v4699 = vsel %vm1723, %v4698, %v4623
          %v4701 = vunpack.c.l.s4 1983009808
          %v4702 = vunpack.c.0.s8 %v4701
          %v4703 = vperm.slane %v4699, %v4702
          %v4704 = vrot.slane %v4692, 4
          %v4705 = vsel %vm1723, %v4704, %v4686
          %v4706 = vrot.slane %v4686, 4
          %v4707 = vsel %vm1723, %v4692, %v4706
          %v4709 = vunpack.c.l.s4 1934713408
          %v4710 = vunpack.c.0.s8 %v4709
          %v4711 = vperm.slane %v4705, %v4710
          %v4713 = vunpack.c.l.s4 1934713408
          %v4714 = vunpack.c.0.s8 %v4713
          %v4715 = vperm.slane %v4707, %v4714
          %v4716 = vrot.slane %v4703, 4
          %v4717 = vsel %vm1723, %v4716, %v4697
          %v4718 = vrot.slane %v4697, 4
          %v4719 = vsel %vm1723, %v4703, %v4718
          %v4721 = vunpack.c.l.s4 1934713408
          %v4722 = vunpack.c.0.s8 %v4721
          %v4723 = vperm.slane %v4717, %v4722
          %v4725 = vunpack.c.l.s4 1934713408
          %v4726 = vunpack.c.0.s8 %v4725
          %v4727 = vperm.slane %v4719, %v4726
          %v4728 = vrot.slane %v4723, 4
          %v4729 = vsel %vm1723, %v4728, %v4711
          %v4730 = vrot.slane %v4711, 4
          %v4731 = vsel %vm1723, %v4723, %v4730
          %v4732 = vrot.slane %v4727, 4
          %v4733 = vsel %vm1723, %v4732, %v4715
          %v4734 = vrot.slane %v4715, 4
          %v4735 = vsel %vm1723, %v4727, %v4734
          %v4736 = vsel %vm1723, %v4676, %v4657
          %v4738 = vunpack.c.l.s4 1983009808
          %v4739 = vunpack.c.0.s8 %v4738
          %v4740 = vperm.slane %v4736, %v4739
          %v4741 = vrot.slane %v4677, 4
          %v4742 = vsel %vm1723, %v4741, %v4675
          %v4744 = vunpack.c.l.s4 1983009808
          %v4745 = vunpack.c.0.s8 %v4744
          %v4746 = vperm.slane %v4742, %v4745
          %v4747 = vsel %vm1723, %v4680, %v4669
          %v4749 = vunpack.c.l.s4 1983009808
          %v4750 = vunpack.c.0.s8 %v4749
          %v4751 = vperm.slane %v4747, %v4750
          %v4752 = vrot.slane %v4681, 4
          %v4753 = vsel %vm1723, %v4752, %v4679
          %v4755 = vunpack.c.l.s4 1983009808
          %v4756 = vunpack.c.0.s8 %v4755
          %v4757 = vperm.slane %v4753, %v4756
          %v4758 = vrot.slane %v4746, 4
          %v4759 = vsel %vm1723, %v4758, %v4740
          %v4760 = vrot.slane %v4740, 4
          %v4761 = vsel %vm1723, %v4746, %v4760
          %v4763 = vunpack.c.l.s4 1934713408
          %v4764 = vunpack.c.0.s8 %v4763
          %v4765 = vperm.slane %v4759, %v4764
          %v4767 = vunpack.c.l.s4 1934713408
          %v4768 = vunpack.c.0.s8 %v4767
          %v4769 = vperm.slane %v4761, %v4768
          %v4770 = vrot.slane %v4757, 4
          %v4771 = vsel %vm1723, %v4770, %v4751
          %v4772 = vrot.slane %v4751, 4
          %v4773 = vsel %vm1723, %v4757, %v4772
          %v4775 = vunpack.c.l.s4 1934713408
          %v4776 = vunpack.c.0.s8 %v4775
          %v4777 = vperm.slane %v4771, %v4776
          %v4779 = vunpack.c.l.s4 1934713408
          %v4780 = vunpack.c.0.s8 %v4779
          %v4781 = vperm.slane %v4773, %v4780
          %v4782 = vrot.slane %v4777, 4
          %v4783 = vsel %vm1723, %v4782, %v4765
          %v4784 = vrot.slane %v4765, 4
          %v4785 = vsel %vm1723, %v4777, %v4784
          %v4786 = vrot.slane %v4781, 4
          %v4787 = vsel %vm1723, %v4786, %v4769
          %v4788 = vrot.slane %v4769, 4
          %v4789 = vsel %vm1723, %v4781, %v4788
          %4792 = vrot.lane.b32.xlu0 %v4731, 8
          %v4793 = vpop.permute.xlu0 %4792
          %4794 = vrot.lane.b32.xlu0 %v4785, 8
          %v4795 = vpop.permute.xlu0 %4794
          %4800 = vrot.lane.b32.xlu0 %v4733, 16
          %v4801 = vpop.permute.xlu0 %4800
          %4802 = vrot.lane.b32.xlu0 %v4787, 16
          %v4803 = vpop.permute.xlu0 %4802
          %4808 = vrot.lane.b32.xlu0 %v4735, 24
          %v4809 = vpop.permute.xlu0 %4808
          %4810 = vrot.lane.b32.xlu0 %v4789, 24
          %v4811 = vpop.permute.xlu0 %4810
          %v4814 = vsel %vm2491, %v4729, %v4793
          %v4815 = vsel %vm2491, %v4783, %v4795
          %v4816 = vsel %vm3163, %v4814, %v4801
          %v4817 = vsel %vm3163, %v4815, %v4803
          %v4818 = vsel %vm3166, %v4816, %v4809
          %v4819 = vsel %vm3166, %v4817, %v4811
          %v4820 = vpack.c.bf16 %v4819, %v4818
          %v4825 = vunpack.c.l.b16 %v3284
          %v4826 = vunpack.c.l.b16 %v3285
          %v4827 = vunpack.c.l.b16 %v3286
          %v4828 = vunpack.c.l.b16 %v3287
          %v4829 = vpack.c.b16 %v4826, %v4825
          %v4830 = vpack.c.b16 %v4828, %v4827
          %v4834 = vsel %vm1684, %v4820, 0
          %4836 = vmatpush.bf16.msra.mxu0 0
          %4837 = vmatpush.bf16.msra.mxu0 0
          %4838 = vmatpush.bf16.msra.mxu0 0
          %4839 = vmatpush.bf16.msra.mxu0 0
          %4840 = vmatpush.bf16.msra.mxu0 0
          %4841 = vmatpush.bf16.msra.mxu0 0
          %4842 = vmatpush.bf16.msra.mxu0 %v4830
          %4843 = vmatpush.bf16.msra.mxu0 %v4829
          %4844 = vmatmul.bf16.gmra.mxu0 %v4834
          %v4845 = vpop.f32.mrf.mxu0
          %v4846 = vadd.f32 0.0, %v4845
          %v4847 = vpop.f32.mrf.mxu0
          %v4848 = vadd.f32 0.0, %v4847
          %4849 = vdwg.mxu0
          %v4850 = vadd.f32 %v3268, %v4846
          %v4851 = vadd.f32 %v3269, %v4848
          %v4852 = vld [vmem:[%s1350] sm:$0x1]
          %v4853 = vld [vmem:[%s1359] sm:$0x1]
          %v4854 = vsel %vm1684, %v4850, 0.0
          %4855 = vadd.xlane.f32.xlu0 %v4854
          %v4856 = vpop.xlane.xlu0 %4855
          %v4857 = vsel %vm1684, %v4851, 0.0
          %4858 = vadd.xlane.f32.xlu0 %v4857
          %v4859 = vpop.xlane.xlu0 %4858
          %v4860 = vmul.f32 %v4856, %v3215
          %v4861 = vmul.f32 %v4859, %v3215
          %v4862 = vmul.f32 %v4850, %v4850
          %v4863 = vmul.f32 %v4851, %v4851
          %v4864 = vsel %vm1684, %v4862, 0.0
          %4865 = vadd.xlane.f32.xlu0 %v4864
          %v4866 = vpop.xlane.xlu0 %4865
          %v4867 = vsel %vm1684, %v4863, 0.0
          %4868 = vadd.xlane.f32.xlu0 %v4867
          %v4869 = vpop.xlane.xlu0 %4868
          %v4870 = vmul.f32 %v4866, %v3215
          %v4871 = vmul.f32 %v4869, %v3215
          %v4872 = vmul.f32 %v4860, %v4860
          %v4873 = vmul.f32 %v4861, %v4861
          %v4874 = vsub.f32 %v4870, %v4872
          %v4875 = vsub.f32 %v4871, %v4873
          %v4876 = vmax.f32 %v4874, 0.0
          %v4877 = vmax.f32 %v4875, 0.0
          %v4878 = vsub.f32 %v4850, %v4860
          %v4879 = vsub.f32 %v4851, %v4861
          %v4880 = vadd.f32 %v4876, 1e-05
          %v4881 = vadd.f32 %v4877, 1e-05
          %v4882 = vrsqrt.pop %v4880
          %v4883 = vmul.f32 %v4882, %v4880
          %v4884 = vmul.f32 %v4883, %v4882
          %v4885 = vmul.f32 0.5, %v4884
          %v4886 = vsub.f32 1.5, %v4885
          %v4887 = vmul.f32 %v4882, %v4886
          %vm4888 = vweird.f32 %v4880
          %vm4889 = vweird.f32 %v4882
          %vm4890 = vmor %vm4888, %vm4889
          %v4891 = vsel %vm4890, %v4882, %v4887
          %v4892 = vrsqrt.pop %v4881
          %v4893 = vmul.f32 %v4892, %v4881
          %v4894 = vmul.f32 %v4893, %v4892
          %v4895 = vmul.f32 0.5, %v4894
          %v4896 = vsub.f32 1.5, %v4895
          %v4897 = vmul.f32 %v4892, %v4896
          %vm4898 = vweird.f32 %v4881
          %vm4899 = vweird.f32 %v4892
          %vm4900 = vmor %vm4898, %vm4899
          %v4901 = vsel %vm4900, %v4892, %v4897
          %v4902 = vmul.f32 %v4878, %v4891
          %v4903 = vmul.f32 %v4879, %v4901
          %v4905 = vperm.slane %v4852, 0
          %v4907 = vmul.f32 %v4902, %v4905
          %v4908 = vmul.f32 %v4903, %v4905
          %v4910 = vperm.slane %v4853, 0
          %v4912 = vadd.f32 %v4907, %v4910
          %v4913 = vadd.f32 %v4908, %v4910
          %v4914 = vld [vmem:[%s1305] sm:$0xf]
          %v4915 = vld [vmem:[%s1305 + $0x4] sm:$0xf]
          %v4916 = vld [vmem:[%s1305 + $0x8] sm:$0xf]
          %v4917 = vld [vmem:[%s1305 + $0xc] sm:$0xf]
          %v4918 = vpack.c.bf16 %v4913, %v4912
          %v4919 = vld [vmem:[%s1314] sm:$0x1]
          %v4921 = vperm.slane %v4919, 0
          %v4927 = vunpack.c.l.b16 %v4914
          %v4928 = vunpack.c.l.b16 %v4915
          %v4929 = vunpack.c.l.b16 %v4916
          %v4930 = vunpack.c.l.b16 %v4917
          %v4931 = vpack.c.b16 %v4928, %v4927
          %v4932 = vpack.c.b16 %v4930, %v4929
          %v4936 = vsel %vm1684, %v4918, 0
          %4938 = vmatpush.bf16.msra.mxu0 0
          %4939 = vmatpush.bf16.msra.mxu0 0
          %4940 = vmatpush.bf16.msra.mxu0 0
          %4941 = vmatpush.bf16.msra.mxu0 0
          %4942 = vmatpush.bf16.msra.mxu0 0
          %4943 = vmatpush.bf16.msra.mxu0 0
          %4944 = vmatpush.bf16.msra.mxu0 %v4932
          %4945 = vmatpush.bf16.msra.mxu0 %v4931
          %4946 = vmatmul.bf16.gmra.mxu0 %v4936
          %v4947 = vpop.f32.mrf.mxu0
          %v4948 = vadd.f32 %v4921, %v4947
          %v4949 = vpop.f32.mrf.mxu0
          %v4950 = vadd.f32 %v4921, %v4949
          %4951 = vdwg.mxu0
          %v4952 = vmax.f32 %v4948, 0.0
          %v4953 = vmax.f32 %v4950, 0.0
          %v4954 = vld [vmem:[%s1587] sm:$0xf]
          %v4955 = vld [vmem:[%s1587 + $0x4] sm:$0xf]
          %v4956 = vld [vmem:[%s1587 + $0x8] sm:$0xf]
          %v4957 = vld [vmem:[%s1587 + $0xc] sm:$0xf]
          %v4958 = vld [vmem:[%s1587 + $0x10] sm:$0xf]
          %v4959 = vld [vmem:[%s1587 + $0x14] sm:$0xf]
          %v4960 = vld [vmem:[%s1587 + $0x18] sm:$0xf]
          %v4961 = vld [vmem:[%s1587 + $0x1c] sm:$0xf]
          %v4962 = vpack.c.bf16 %v4953, %v4952
          %v4963 = vld [vmem:[%s1323] sm:$0x1]
          %v4965 = vperm.slane %v4963, 0
          %v4975 = vunpack.c.l.b16 %v4954
          %v4976 = vunpack.c.l.b16 %v4955
          %v4977 = vunpack.c.l.b16 %v4956
          %v4978 = vunpack.c.l.b16 %v4957
          %v4979 = vunpack.c.l.b16 %v4958
          %v4980 = vunpack.c.l.b16 %v4959
          %v4981 = vunpack.c.l.b16 %v4960
          %v4982 = vunpack.c.l.b16 %v4961
          %v4983 = vpack.c.b16 %v4976, %v4975
          %v4984 = vpack.c.b16 %v4978, %v4977
          %v4985 = vpack.c.b16 %v4980, %v4979
          %v4986 = vpack.c.b16 %v4982, %v4981
          %vm4991 = vcmask 523264
          %v4993 = vsel %vm4991, %v4962, 0
          %4995 = vmatpush.bf16.msra.mxu0 0
          %4996 = vmatpush.bf16.msra.mxu0 0
          %4997 = vmatpush.bf16.msra.mxu0 0
          %4998 = vmatpush.bf16.msra.mxu0 0
          %4999 = vmatpush.bf16.msra.mxu0 %v4986
          %5000 = vmatpush.bf16.msra.mxu0 %v4985
          %5001 = vmatpush.bf16.msra.mxu0 %v4984
          %5002 = vmatpush.bf16.msra.mxu0 %v4983
          %5003 = vmatmul.bf16.gmra.mxu0 %v4993
          %v5004 = vpop.f32.mrf.mxu0
          %v5005 = vadd.f32 %v4965, %v5004
          %v5006 = vpop.f32.mrf.mxu0
          %v5007 = vadd.f32 %v4965, %v5006
          %5008 = vdwg.mxu0
          %v5009 = vadd.f32 %v4912, %v5005
          %v5010 = vadd.f32 %v4913, %v5007
          %v5011 = vld [vmem:[%s1604] sm:$0x1]
          %v5012 = vld [vmem:[%s1368] sm:$0x1]
          %v5013 = vsel %vm1684, %v5009, 0.0
          %5014 = vadd.xlane.f32.xlu0 %v5013
          %v5015 = vpop.xlane.xlu0 %5014
          %v5016 = vsel %vm1684, %v5010, 0.0
          %5017 = vadd.xlane.f32.xlu0 %v5016
          %v5018 = vpop.xlane.xlu0 %5017
          %v5019 = vmul.f32 %v5015, %v3215
          %v5020 = vmul.f32 %v5018, %v3215
          %v5021 = vmul.f32 %v5009, %v5009
          %v5022 = vmul.f32 %v5010, %v5010
          %v5023 = vsel %vm1684, %v5021, 0.0
          %5024 = vadd.xlane.f32.xlu0 %v5023
          %v5025 = vpop.xlane.xlu0 %5024
          %v5026 = vsel %vm1684, %v5022, 0.0
          %5027 = vadd.xlane.f32.xlu0 %v5026
          %v5028 = vpop.xlane.xlu0 %5027
          %v5029 = vmul.f32 %v5025, %v3215
          %v5030 = vmul.f32 %v5028, %v3215
          %v5031 = vmul.f32 %v5019, %v5019
          %v5032 = vmul.f32 %v5020, %v5020
          %v5033 = vsub.f32 %v5029, %v5031
          %v5034 = vsub.f32 %v5030, %v5032
          %v5035 = vmax.f32 %v5033, 0.0
          %v5036 = vmax.f32 %v5034, 0.0
          %v5037 = vsub.f32 %v5009, %v5019
          %v5038 = vsub.f32 %v5010, %v5020
          %v5039 = vadd.f32 %v5035, 1e-05
          %v5040 = vadd.f32 %v5036, 1e-05
          %v5041 = vrsqrt.pop %v5039
          %v5042 = vmul.f32 %v5041, %v5039
          %v5043 = vmul.f32 %v5042, %v5041
          %v5044 = vmul.f32 0.5, %v5043
          %v5045 = vsub.f32 1.5, %v5044
          %v5046 = vmul.f32 %v5041, %v5045
          %vm5047 = vweird.f32 %v5039
          %vm5048 = vweird.f32 %v5041
          %vm5049 = vmor %vm5047, %vm5048
          %v5050 = vsel %vm5049, %v5041, %v5046
          %v5051 = vrsqrt.pop %v5040
          %v5052 = vmul.f32 %v5051, %v5040
          %v5053 = vmul.f32 %v5052, %v5051
          %v5054 = vmul.f32 0.5, %v5053
          %v5055 = vsub.f32 1.5, %v5054
          %v5056 = vmul.f32 %v5051, %v5055
          %vm5057 = vweird.f32 %v5040
          %vm5058 = vweird.f32 %v5051
          %vm5059 = vmor %vm5057, %vm5058
          %v5060 = vsel %vm5059, %v5051, %v5056
          %v5061 = vmul.f32 %v5037, %v5050
          %v5062 = vmul.f32 %v5038, %v5060
          %v5064 = vperm.slane %v5011, 0
          %v5066 = vmul.f32 %v5061, %v5064
          %v5067 = vmul.f32 %v5062, %v5064
          %v5069 = vperm.slane %v5012, 0
          %v5071 = vadd.f32 %v5066, %v5069
          %v5072 = vadd.f32 %v5067, %v5069
          %5073 = vst.msk [vmem:[#allocation2] sm:$0xff] %vm1684, %v5071
          %5074 = vst.msk [vmem:[#allocation2 + $0x8] sm:$0xff] %vm1684, %v5072
        $region192: #{tpu_custom_call.1} parent=115 // pred_fallthru
          _
        %p5075 = scmp.ge.s32.totalorder %s46, 2
        // Predicated region
        $region193: #{tpu_custom_call.1} parent=115 // pred_check
          %p5076 = pneg %p5075
        $region194: #{tpu_custom_call.1} parent=115 // pred_check_branch
          %5078 = sbr.rel (%p5076) target = $region196
        $region195: #{tpu_custom_call.1} parent=115 // pred_region
          %v5079 = vld [vmem:[#allocation2] sm:$0xff]
          %v5080 = vld [vmem:[#allocation2 + $0x8] sm:$0xff]
          %v5081 = vld [vmem:[%s1615] sm:$0xf]
          %v5082 = vld [vmem:[%s1615 + $0x4] sm:$0xf]
          %v5083 = vld [vmem:[%s1615 + $0x8] sm:$0xf]
          %v5084 = vld [vmem:[%s1615 + $0xc] sm:$0xf]
          %v5085 = vpack.c.bf16 %v5080, %v5079
          %v5086 = vld [vmem:[%s1624] sm:$0x1]
          %v5088 = vperm.slane %v5086, 0
          %v5094 = vunpack.c.l.b16 %v5081
          %v5095 = vunpack.c.l.b16 %v5082
          %v5096 = vunpack.c.l.b16 %v5083
          %v5097 = vunpack.c.l.b16 %v5084
          %v5098 = vpack.c.b16 %v5095, %v5094
          %v5099 = vpack.c.b16 %v5097, %v5096
          %vm5102 = vcmask 261120
          %v5104 = vsel %vm5102, %v5085, 0
          %5106 = vmatpush.bf16.msra.mxu0 0
          %5107 = vmatpush.bf16.msra.mxu0 0
          %5108 = vmatpush.bf16.msra.mxu0 0
          %5109 = vmatpush.bf16.msra.mxu0 0
          %5110 = vmatpush.bf16.msra.mxu0 0
          %5111 = vmatpush.bf16.msra.mxu0 0
          %5112 = vmatpush.bf16.msra.mxu0 %v5099
          %5113 = vmatpush.bf16.msra.mxu0 %v5098
          %5114 = vmatmul.bf16.gmra.mxu0 %v5104
          %v5115 = vpop.f32.mrf.mxu0
          %v5116 = vadd.f32 %v5088, %v5115
          %v5117 = vpop.f32.mrf.mxu0
          %v5118 = vadd.f32 %v5088, %v5117
          %5119 = vdwg.mxu0
          %5120 = vst [vmem:[%s1532] sm:$0xff] %v5116
          %5121 = vst [vmem:[%s1532 + $0x8] sm:$0xff] %v5118
        $region196: #{tpu_custom_call.1} parent=115 // pred_fallthru
          _
        %s5122 = sand.u32 %s748, 1
        %s5123 = scalar_lea.sflag [#allocation5], %s5122
        %s5124 = sand.u32 %s748, 1
        %s5125 = smul.addr %s5124, 16
        %s5126 = scalar_lea.vmem [#allocation24], %s5125
        %s5127 = sand.u32 %s778, 1
        %s5128 = scalar_lea.sflag [#allocation26], %s5127
        %s5129 = sand.u32 %s778, 1
        %s5130 = smul.addr %s5129, 8
        %s5131 = scalar_lea.vmem [#allocation25], %s5130
        // Predicated region
        $region197: #{tpu_custom_call.1} parent=115 // pred_check
          %p5132 = pneg %p758
        $region198: #{tpu_custom_call.1} parent=115 // pred_check_branch
          %5134 = sbr.rel (%p5132) target = $region200
        $region199: #{tpu_custom_call.1} parent=115 // pred_region
          %s5135 = ssub.s32 %s46, 2
          %p5136 = scmp.gt.s32.totalorder %s5135, 0
          %s5137 = scalar_select %p5136, %s5135, 0
          %5139 = vsyncadd %s5123, 0
          %s5140 = smul.addr %s5137, 8
          %s5141 = scalar_lea.hbm %s24, %s5140
          %s5142 = sshll.u32 %s5126, 4
          %s5143 = int_to_ptr.vmem [resolvable:$true] %s5142
          %s5144 = sshll.u32 %s5141, 4
          %s5145 = int_to_ptr.hbm [resolvable:$true] %s5144
          %5150 = dma.vmem_to_hbm [thread:$0]  %s5143, 256, %s5145, %s5123, 128, 128, 8
        $region200: #{tpu_custom_call.1} parent=115 // pred_fallthru
          _
        // Predicated region
        $region201: #{tpu_custom_call.1} parent=115 // pred_check
          %p5151 = pneg %p788
        $region202: #{tpu_custom_call.1} parent=115 // pred_check_branch
          %5153 = sbr.rel (%p5151) target = $region204
        $region203: #{tpu_custom_call.1} parent=115 // pred_region
          %p5154 = scmp.lt.s32.totalorder %s46, 1
          %s5155 = scalar_select %p5154, %s46, 1
          %5157 = vsyncadd %s5128, 0
          %s5158 = smul.addr %s5155, 2
          %s5159 = smul.addr %s5158, 4
          %s5160 = scalar_lea.hbm %s25, %s5159
          %s5161 = sshll.u32 %s5131, 4
          %s5162 = int_to_ptr.vmem [resolvable:$true] %s5161
          %s5163 = sshll.u32 %s5160, 4
          %s5164 = int_to_ptr.hbm [resolvable:$true] %s5163
          %5169 = dma.vmem_to_hbm [thread:$0]  %s5162, 128, %s5164, %s5128, 64, 64, 4
        $region204: #{tpu_custom_call.1} parent=115 // pred_fallthru
          _
      $region116: #{tpu_custom_call.1} parent=5 // pred_fallthru
        _
      %p5170 = scmp.le.s32.totalorder 2, %s41
      // Predicated region
      $region205: #{tpu_custom_call.1} parent=5 // pred_check
        %p5171 = pneg %p5170
      $region206: #{tpu_custom_call.1} parent=5 // pred_check_branch
        %5173 = sbr.rel (%p5171) target = $region208
      $region207: #{tpu_custom_call.1} parent=5 // pred_region
        %s5174 = ssub.s32 %s41, 2
        // Predicated region
        $region209: #{tpu_custom_call.1} parent=207 // pred_check
          %p5175 = pneg %p764
        $region210: #{tpu_custom_call.1} parent=207 // pred_check_branch
          %5177 = sbr.rel (%p5175) target = $region212
        $region211: #{tpu_custom_call.1} parent=207 // pred_region
          %s5178 = sand.u32 %s749, 1
          %s5179 = scalar_lea.sflag [#allocation5], %s5178
          %s5180 = sand.u32 %s749, 1
          %s5181 = smul.addr %s5180, 16
          %s5182 = scalar_lea.vmem [#allocation24], %s5181
          %5184 = dma.done %s5179, 256
        $region212: #{tpu_custom_call.1} parent=207 // pred_fallthru
          _
        // Predicated region
        $region213: #{tpu_custom_call.1} parent=207 // pred_check
          %p5185 = pneg %p794
        $region214: #{tpu_custom_call.1} parent=207 // pred_check_branch
          %5187 = sbr.rel (%p5185) target = $region216
        $region215: #{tpu_custom_call.1} parent=207 // pred_region
          %s5188 = sand.u32 %s779, 1
          %s5189 = scalar_lea.sflag [#allocation26], %s5188
          %s5190 = sand.u32 %s779, 1
          %s5191 = smul.addr %s5190, 8
          %s5192 = scalar_lea.vmem [#allocation25], %s5191
          %5194 = dma.done %s5189, 128
        $region216: #{tpu_custom_call.1} parent=207 // pred_fallthru
          _
      $region208: #{tpu_custom_call.1} parent=5 // pred_fallthru
        _
    $region6: #{tpu_custom_call.1} parent=1 // loop_footer
      %s45 = sadd.s32 1, %s41
    $region7: #{tpu_custom_call.1} parent=1 // loop_footer_branch
      %40 = sbr.rel target = $region3
    $region8: #{tpu_custom_call.1} parent=1 // loop_exit
      _
    %5195 = vsyncpa [#allocation4], 1
    %s5196 = scalar_lea.sflag [#allocation4], 1
    %5197 = vsyncpa %s5196, 1
    %5198 = vsyncpa [#allocation7], 1
    %5199 = vsyncpa [#allocation10], 1
    %5200 = vsyncpa [#allocation5], 1
    %s5201 = scalar_lea.sflag [#allocation5], 1
    %5202 = vsyncpa %s5201, 1
    %5203 = vsyncpa [#allocation26], 1
    %s5204 = scalar_lea.sflag [#allocation26], 1
    %5205 = vsyncpa %s5204, 1

</llo_original>
